<compile_context>
chip_gen: v5e
topology: v5e:2x2
jax: 0.10.0
libtpu: 0.0.40
codegen_flags: <defaults>
</compile_context>

<pallas_src>
import functools

import numpy as np
import jax
import jax.numpy as jnp
from jax import lax
from jax.experimental import pallas as pl
from jax.experimental.pallas import tpu as pltpu

EPS = 1e-5
NEG_SLOPE = 0.2


# --------------------------- model structure ------------------------------- #

def _build_layers(isize, nc, ndf, n_extra_layers):
    """Mirror DCGAN_D's nn.Sequential: conv3x3(pad=1, no bias) [+ BN] + LeakyReLU."""
    layers = [dict(H=isize, W=isize, cin=nc, cout=ndf, stride=2, bn=False)]
    csize, cndf = isize // 2, ndf
    for _ in range(n_extra_layers):
        layers.append(dict(H=csize, W=csize, cin=cndf, cout=cndf, stride=1, bn=True))
    while csize > 2:
        layers.append(dict(H=csize, W=csize, cin=cndf, cout=2 * cndf, stride=2, bn=True))
        cndf *= 2
        csize //= 2
    return layers, csize, cndf          # final spatial (=2) and final channels


# ------------------------------- kernel ------------------------------------- #

def _zero_halo(pad_ref, n, hp, wp, cp):
    """Zero only the halo bands of the (n, hp, wp, cp) view of the shared pad
    scratch; the interior is fully overwritten by the activation store."""
    pad_ref[:, 0:1, 0:wp, 0:cp] = jnp.zeros((n, 1, wp, cp), jnp.float32)
    pad_ref[:, hp - 1:hp, 0:wp, 0:cp] = jnp.zeros((n, 1, wp, cp), jnp.float32)
    pad_ref[:, 0:hp, 0:1, 0:cp] = jnp.zeros((n, hp, 1, cp), jnp.float32)
    pad_ref[:, 0:hp, wp - 1:wp, 0:cp] = jnp.zeros((n, hp, 1, cp), jnp.float32)


def dcgan_d_kernel(*refs, layers, N, final_hw):
    """Whole DCGAN_D forward in one kernel; all intermediates stay in VMEM."""
    n_in = 2 + sum(1 + (2 if L["bn"] else 0) for L in layers)
    in_refs = refs[:n_in]
    out_ref = refs[n_in]
    pad_ref = refs[n_in + 1]      # shared zero-haloed image scratch (max layer)
    flat_ref = refs[n_in + 2]     # small staging buffer for parity splits

    k = 0
    # layer-0 input arrives parity-split (space-to-depth): (N*Ho*Wo, 4*nc)
    h = in_refs[k][...].astype(jnp.float32)
    k += 1

    for li, L in enumerate(layers):
        w_mat = in_refs[k][...]
        k += 1
        g = b = None
        if L["bn"]:
            g = in_refs[k][...]
            b = in_refs[k + 1][...]
            k += 2

        cin = L["cin"]
        if L["stride"] == 2:
            # ---- stride-2 conv: slab built ONLY at the strided output pixels.
            Ho, Wo = L["H"] // 2, L["W"] // 2
            Cp = 4 * cin                                 # 4 parity planes
            Hp, Wp = Ho + 2, Wo + 2
            _zero_halo(pad_ref, N, Hp, Wp, Cp)
            if li == 0:
                pad_ref[:, 1:1 + Ho, 1:1 + Wo, 0:Cp] = h.reshape(N, Ho, Wo, Cp)
            else:
                # parity-split the dense (n,i,j) activation:
                #   j-parity -> two stride-2 row reads of a flat scratch copy
                #   i-parity -> leading-dim split (rows are (n, i, jo))
                R_in = N * L["H"] * L["W"]
                flat_ref[0:R_in, 0:cin] = h
                he = flat_ref[pl.ds(0, R_in // 2, 2), 0:cin]    # even columns
                ho = flat_ref[pl.ds(1, R_in // 2, 2), 0:cin]    # odd columns
                eo = jnp.concatenate([he, ho], axis=-1)          # (N*H*Wo, 2*cin)
                eo4 = eo.reshape(N * Ho, 2, Wo, 2 * cin)         # (n*io, i-par, jo, :)
                pad_ref[:, 1:1 + Ho, 1:1 + Wo, 0:2 * cin] = (
                    eo4[:, 0, :, :].reshape(N, Ho, Wo, 2 * cin))
                pad_ref[:, 1:1 + Ho, 1:1 + Wo, 2 * cin:Cp] = (
                    eo4[:, 1, :, :].reshape(N, Ho, Wo, 2 * cin))
            # tap (dy,dx): input pixel (2io+dy-1, 2jo+dx-1) = plane (pi,pj)
            # at (io+di, jo+dj) with di,dj in {-1,0} -> contiguous windows.
            taps = []
            for dy in range(3):
                di, pi = (-1, 1) if dy == 0 else (0, dy - 1)
                for dx in range(3):
                    dj, pj = (-1, 1) if dx == 0 else (0, dx - 1)
                    q = 2 * pi + pj
                    taps.append(pad_ref[:, 1 + di:1 + di + Ho,
                                        1 + dj:1 + dj + Wo,
                                        q * cin:(q + 1) * cin])
            rows, out_h, out_w = N * Ho * Wo, Ho, Wo
        else:
            # ---- stride-1 conv: zero-haloed padded image, 9 shifted windows.
            H, W = L["H"], L["W"]
            Hp, Wp = H + 2, W + 2
            _zero_halo(pad_ref, N, Hp, Wp, cin)
            pad_ref[:, 1:1 + H, 1:1 + W, 0:cin] = h.reshape(N, H, W, cin)
            taps = [pad_ref[:, dy:dy + H, dx:dx + W, 0:cin]
                    for dy in range(3) for dx in range(3)]
            rows, out_h, out_w = N * H * W, H, W

        # im2col slab assembled by concatenating the 9 windows in registers
        # (no per-tap narrow stores, no masks) -> one K=9*cin MXU matmul.
        slab = jnp.concatenate(taps, axis=-1).reshape(rows, 9 * cin)
        y = jnp.dot(slab.astype(w_mat.dtype), w_mat,
                    preferred_element_type=jnp.float32)

        if L["bn"]:      # PyTorch training-mode BatchNorm2d (biased variance)
            mean = jnp.mean(y, axis=0, keepdims=True)
            var = jnp.mean((y - mean) ** 2, axis=0, keepdims=True)
            y = (y - mean) * lax.rsqrt(var + EPS) * g + b
        h = jnp.maximum(y, NEG_SLOPE * y)                    # LeakyReLU(0.2)

    # flatten (NCHW order via the pre-permuted linear weight) + Linear(-> 1):
    # broadcast the (Hf*Wf, cf) weight and reduce per image (no N-tiled weight,
    # no (N, N*Hf*Wf) selection matmul).
    wl = in_refs[k][...]                                     # (Hf*Wf, cf)
    cf = wl.shape[1]
    prod = h.reshape(N, final_hw, cf) * wl[None, :, :]       # (N, Hf*Wf, cf)
    per_pix = jnp.sum(prod, axis=2, keepdims=True)           # (N, Hf*Wf, 1)
    out_ref[...] = jnp.sum(per_pix, axis=1)                  # (N, 1)


# ------------------------------- wrapper ------------------------------------ #

def dcgan_d_forward(x_nchw, params, *, isize, nc, ndf, n_extra_layers,
                    matmul_dtype=jnp.float32):
    N = x_nchw.shape[0]
    layers, csize_f, cndf_f = _build_layers(isize, nc, ndf, n_extra_layers)
    Hf = Wf = csize_f
    cf = cndf_f

    # Layer-0 input as space-to-depth (2x2 parity planes) -- pure layout
    # plumbing done once by XLA so the in-kernel stride-2 slab reads are
    # contiguous.  Row (n, io, jo); channels [q*nc:(q+1)*nc], q = 2*pi + pj.
    Ho0 = Wo0 = isize // 2
    x_nhwc = jnp.transpose(x_nchw, (0, 2, 3, 1)).astype(jnp.float32)
    xs = (x_nhwc.reshape(N, Ho0, 2, Wo0, 2, nc)
          .transpose(0, 1, 3, 2, 4, 5)
          .reshape(N * Ho0 * Wo0, 4 * nc))

    in_arrays = [xs]
    for li, L in enumerate(layers):
        cin, cout = L["cin"], L["cout"]
        # HWIO -> tap-major (9*cin, cout); cast to matmul dtype (bf16 for v6e/v7x)
        in_arrays.append(params[f"w{li}"].reshape(9 * cin, cout).astype(matmul_dtype))
        if L["bn"]:
            in_arrays.append(params[f"g{li}"].reshape(1, cout).astype(jnp.float32))
            in_arrays.append(params[f"b{li}"].reshape(1, cout).astype(jnp.float32))
    # final Linear weight re-ordered so our (io,jo)-major rows match PyTorch's
    # NCHW flatten (index order c, h, w); broadcast happens in-kernel.
    w_out = params["w_out"].astype(jnp.float32)              # (1, cf*Hf*Wf)
    in_arrays.append(w_out.reshape(cf, Hf * Wf).T)            # (Hf*Wf, cf)

    # shared scratch sized for the LARGEST layer (peak VMEM = max, not sum)
    hp_m = wp_m = cp_m = 1
    flat_rows, flat_cols = 8, 8
    for li, L in enumerate(layers):
        if L["stride"] == 2:
            hp, wp, cp = L["H"] // 2 + 2, L["W"] // 2 + 2, 4 * L["cin"]
            if li > 0:
                flat_rows = max(flat_rows, N * L["H"] * L["W"])
                flat_cols = max(flat_cols, L["cin"])
        else:
            hp, wp, cp = L["H"] + 2, L["W"] + 2, L["cin"]
        hp_m, wp_m, cp_m = max(hp_m, hp), max(wp_m, wp), max(cp_m, cp)

    vmem = pl.BlockSpec(memory_space=pltpu.MemorySpace.VMEM)
    kernel = functools.partial(dcgan_d_kernel, layers=layers, N=N,
                               final_hw=Hf * Wf)
    return pl.pallas_call(
        kernel,
        out_shape=jax.ShapeDtypeStruct((N, 1), jnp.float32),
        in_specs=[vmem] * len(in_arrays),
        out_specs=vmem,
        scratch_shapes=[
            pltpu.VMEM((N, hp_m, wp_m, cp_m), jnp.float32),   # padded image
            pltpu.VMEM((flat_rows, flat_cols), jnp.float32),  # parity staging
        ],
    )(*in_arrays)


# -------------------------- plain-JAX reference ----------------------------- #

def ref_forward(x, params, *, isize, nc, ndf, n_extra_layers):
    layers, _, _ = _build_layers(isize, nc, ndf, n_extra_layers)
    dn = ("NCHW", "OIHW", "NCHW")
    h = x
    for li, L in enumerate(layers):
        w = jnp.transpose(params[f"w{li}"], (3, 2, 0, 1))       # HWIO -> OIHW
        h = lax.conv_general_dilated(h, w, (L["stride"], L["stride"]),
                                     [(1, 1), (1, 1)], dimension_numbers=dn)
        if L["bn"]:
            mean = h.mean(axis=(0, 2, 3), keepdims=True)
            var = ((h - mean) ** 2).mean(axis=(0, 2, 3), keepdims=True)
            h = ((h - mean) / jnp.sqrt(var + EPS)
                 * params[f"g{li}"].reshape(1, -1, 1, 1)
                 + params[f"b{li}"].reshape(1, -1, 1, 1))
        h = jnp.maximum(h, NEG_SLOPE * h)
    flat = h.reshape(h.shape[0], -1)                            # NCHW flatten
    return flat @ params["w_out"].T


# ---------------------------------- main ------------------------------------ #

if __name__ == "__main__":
    N, isize, nc, ndf, n_extra = 2, 16, 3, 8, 2     # isize must be multiple of 16
    layers, csize_f, cndf_f = _build_layers(isize, nc, ndf, n_extra)
    finalsize = csize_f * csize_f * cndf_f          # = 128 for this config

    key = jax.random.PRNGKey(0)
    keys = jax.random.split(key, 20)
    x = jax.random.normal(keys[0], (N, nc, isize, isize), jnp.float32)

    params = {}
    ki = 1
    for li, L in enumerate(layers):
        fan_in = 9 * L["cin"]
        params[f"w{li}"] = (jax.random.normal(
            keys[ki], (3, 3, L["cin"], L["cout"]), jnp.float32) / np.sqrt(fan_in))
        ki += 1
        if L["bn"]:
            params[f"g{li}"] = (1.0 + 0.1 * jax.random.normal(
                keys[ki], (L["cout"],), jnp.float32)); ki += 1
            params[f"b{li}"] = 0.1 * jax.random.normal(
                keys[ki], (L["cout"],), jnp.float32); ki += 1
    params["w_out"] = (jax.random.normal(keys[ki], (1, finalsize), jnp.float32)
                       / np.sqrt(finalsize))

    y = jax.block_until_ready(dcgan_d_forward(
        x, params, isize=isize, nc=nc, ndf=ndf, n_extra_layers=n_extra))
    y_ref = jax.block_until_ready(ref_forward(
        x, params, isize=isize, nc=nc, ndf=ndf, n_extra_layers=n_extra))

    assert y.shape == (N, 1), y.shape
    max_err = float(jnp.max(jnp.abs(y - y_ref)))
    assert jnp.allclose(y, y_ref, atol=1e-3, rtol=1e-3), max_err
    print("KERNEL_OK")
</pallas_src>

<mosaic_0001>
module attributes {stable_mosaic.version = 11 : i64} {
  func.func @dcgan_d_kernel(%arg0: memref<128x12xf32, #tpu.memory_space<vmem>>, %arg1: memref<27x8xf32, #tpu.memory_space<vmem>>, %arg2: memref<72x8xf32, #tpu.memory_space<vmem>>, %arg3: memref<1x8xf32, #tpu.memory_space<vmem>>, %arg4: memref<1x8xf32, #tpu.memory_space<vmem>>, %arg5: memref<72x8xf32, #tpu.memory_space<vmem>>, %arg6: memref<1x8xf32, #tpu.memory_space<vmem>>, %arg7: memref<1x8xf32, #tpu.memory_space<vmem>>, %arg8: memref<72x16xf32, #tpu.memory_space<vmem>>, %arg9: memref<1x16xf32, #tpu.memory_space<vmem>>, %arg10: memref<1x16xf32, #tpu.memory_space<vmem>>, %arg11: memref<144x32xf32, #tpu.memory_space<vmem>>, %arg12: memref<1x32xf32, #tpu.memory_space<vmem>>, %arg13: memref<1x32xf32, #tpu.memory_space<vmem>>, %arg14: memref<4x32xf32, #tpu.memory_space<vmem>>, %arg15: memref<2x1xf32, #tpu.memory_space<vmem>>, %arg16: memref<2x10x10x64xf32, #tpu.memory_space<vmem>>, %arg17: memref<128x16xf32, #tpu.memory_space<vmem>>) attributes {dimension_semantics = [], scalar_prefetch = 0 : i64, scratch_operands = 2 : i64, tpu.core_type = #tpu.core_type<tc>} {
    %c0 = arith.constant 0 : index
    %c0_0 = arith.constant 0 : index
    %0 = vector.load %arg0[%c0, %c0_0] : memref<128x12xf32, #tpu.memory_space<vmem>>, vector<128x12xf32>
    %c0_1 = arith.constant 0 : index
    %c0_2 = arith.constant 0 : index
    %1 = vector.load %arg1[%c0_1, %c0_2] : memref<27x8xf32, #tpu.memory_space<vmem>>, vector<27x8xf32>
    %cst = arith.constant 0.000000e+00 : f32
    %2 = vector.broadcast %cst : f32 to vector<2x1x10x12xf32>
    %c0_3 = arith.constant 0 : index
    %c0_4 = arith.constant 0 : index
    %c0_5 = arith.constant 0 : index
    %c0_6 = arith.constant 0 : index
    %3 = vector.load %arg16[%c0_3, %c0_4, %c0_5, %c0_6] : memref<2x10x10x64xf32, #tpu.memory_space<vmem>>, vector<2x1x10x12xf32>
    tpu.vector_store %arg16[%c0_3, %c0_4, %c0_5, %c0_6], %2 {strides = array<i32>} : memref<2x10x10x64xf32, #tpu.memory_space<vmem>>, vector<2x1x10x12xf32>,
    %cst_7 = arith.constant 0.000000e+00 : f32
    %4 = vector.broadcast %cst_7 : f32 to vector<2x1x10x12xf32>
    %c0_8 = arith.constant 0 : index
    %c9 = arith.constant 9 : index
    %c0_9 = arith.constant 0 : index
    %c0_10 = arith.constant 0 : index
    %5 = vector.load %arg16[%c0_8, %c9, %c0_9, %c0_10] : memref<2x10x10x64xf32, #tpu.memory_space<vmem>>, vector<2x1x10x12xf32>
    tpu.vector_store %arg16[%c0_8, %c9, %c0_9, %c0_10], %4 {strides = array<i32>} : memref<2x10x10x64xf32, #tpu.memory_space<vmem>>, vector<2x1x10x12xf32>,
    %cst_11 = arith.constant 0.000000e+00 : f32
    %6 = vector.broadcast %cst_11 : f32 to vector<2x10x1x12xf32>
    %c0_12 = arith.constant 0 : index
    %c0_13 = arith.constant 0 : index
    %c0_14 = arith.constant 0 : index
    %c0_15 = arith.constant 0 : index
    %7 = vector.load %arg16[%c0_12, %c0_13, %c0_14, %c0_15] : memref<2x10x10x64xf32, #tpu.memory_space<vmem>>, vector<2x10x1x12xf32>
    tpu.vector_store %arg16[%c0_12, %c0_13, %c0_14, %c0_15], %6 {strides = array<i32>} : memref<2x10x10x64xf32, #tpu.memory_space<vmem>>, vector<2x10x1x12xf32>,
    %cst_16 = arith.constant 0.000000e+00 : f32
    %8 = vector.broadcast %cst_16 : f32 to vector<2x10x1x12xf32>
    %c0_17 = arith.constant 0 : index
    %c0_18 = arith.constant 0 : index
    %c9_19 = arith.constant 9 : index
    %c0_20 = arith.constant 0 : index
    %9 = vector.load %arg16[%c0_17, %c0_18, %c9_19, %c0_20] : memref<2x10x10x64xf32, #tpu.memory_space<vmem>>, vector<2x10x1x12xf32>
    tpu.vector_store %arg16[%c0_17, %c0_18, %c9_19, %c0_20], %8 {strides = array<i32>} : memref<2x10x10x64xf32, #tpu.memory_space<vmem>>, vector<2x10x1x12xf32>,
    %10 = vector.shape_cast %0 : vector<128x12xf32> to vector<2x8x8x12xf32>
    %c0_21 = arith.constant 0 : index
    %c1 = arith.constant 1 : index
    %c1_22 = arith.constant 1 : index
    %c0_23 = arith.constant 0 : index
    %11 = vector.load %arg16[%c0_21, %c1, %c1_22, %c0_23] : memref<2x10x10x64xf32, #tpu.memory_space<vmem>>, vector<2x8x8x12xf32>
    tpu.vector_store %arg16[%c0_21, %c1, %c1_22, %c0_23], %10 {strides = array<i32>} : memref<2x10x10x64xf32, #tpu.memory_space<vmem>>, vector<2x8x8x12xf32>,
    %c0_24 = arith.constant 0 : index
    %c0_25 = arith.constant 0 : index
    %c0_26 = arith.constant 0 : index
    %c9_27 = arith.constant 9 : index
    %12 = vector.load %arg16[%c0_24, %c0_25, %c0_26, %c9_27] : memref<2x10x10x64xf32, #tpu.memory_space<vmem>>, vector<2x8x8x3xf32>
    %c0_28 = arith.constant 0 : index
    %c0_29 = arith.constant 0 : index
    %c1_30 = arith.constant 1 : index
    %c6 = arith.constant 6 : index
    %13 = vector.load %arg16[%c0_28, %c0_29, %c1_30, %c6] : memref<2x10x10x64xf32, #tpu.memory_space<vmem>>, vector<2x8x8x3xf32>
    %c0_31 = arith.constant 0 : index
    %c0_32 = arith.constant 0 : index
    %c1_33 = arith.constant 1 : index
    %c9_34 = arith.constant 9 : index
    %14 = vector.load %arg16[%c0_31, %c0_32, %c1_33, %c9_34] : memref<2x10x10x64xf32, #tpu.memory_space<vmem>>, vector<2x8x8x3xf32>
    %c0_35 = arith.constant 0 : index
    %c1_36 = arith.constant 1 : index
    %c0_37 = arith.constant 0 : index
    %c3 = arith.constant 3 : index
    %15 = vector.load %arg16[%c0_35, %c1_36, %c0_37, %c3] : memref<2x10x10x64xf32, #tpu.memory_space<vmem>>, vector<2x8x8x3xf32>
    %c0_38 = arith.constant 0 : index
    %c1_39 = arith.constant 1 : index
    %c1_40 = arith.constant 1 : index
    %c0_41 = arith.constant 0 : index
    %16 = vector.load %arg16[%c0_38, %c1_39, %c1_40, %c0_41] : memref<2x10x10x64xf32, #tpu.memory_space<vmem>>, vector<2x8x8x3xf32>
    %c0_42 = arith.constant 0 : index
    %c1_43 = arith.constant 1 : index
    %c1_44 = arith.constant 1 : index
    %c3_45 = arith.constant 3 : index
    %17 = vector.load %arg16[%c0_42, %c1_43, %c1_44, %c3_45] : memref<2x10x10x64xf32, #tpu.memory_space<vmem>>, vector<2x8x8x3xf32>
    %c0_46 = arith.constant 0 : index
    %c1_47 = arith.constant 1 : index
    %c0_48 = arith.constant 0 : index
    %c9_49 = arith.constant 9 : index
    %18 = vector.load %arg16[%c0_46, %c1_47, %c0_48, %c9_49] : memref<2x10x10x64xf32, #tpu.memory_space<vmem>>, vector<2x8x8x3xf32>
    %c0_50 = arith.constant 0 : index
    %c1_51 = arith.constant 1 : index
    %c1_52 = arith.constant 1 : index
    %c6_53 = arith.constant 6 : index
    %19 = vector.load %arg16[%c0_50, %c1_51, %c1_52, %c6_53] : memref<2x10x10x64xf32, #tpu.memory_space<vmem>>, vector<2x8x8x3xf32>
    %c0_54 = arith.constant 0 : index
    %c1_55 = arith.constant 1 : index
    %c1_56 = arith.constant 1 : index
    %c9_57 = arith.constant 9 : index
    %20 = vector.load %arg16[%c0_54, %c1_55, %c1_56, %c9_57] : memref<2x10x10x64xf32, #tpu.memory_space<vmem>>, vector<2x8x8x3xf32>
    %21 = tpu.concatenate %12, %13, %14, %15, %16, %17, %18, %19, %20 in 3 : vector<2x8x8x3xf32>, vector<2x8x8x3xf32>, vector<2x8x8x3xf32>, vector<2x8x8x3xf32>, vector<2x8x8x3xf32>, vector<2x8x8x3xf32>, vector<2x8x8x3xf32>, vector<2x8x8x3xf32>, vector<2x8x8x3xf32> -> vector<2x8x8x27xf32>
    %22 = vector.shape_cast %21 : vector<2x8x8x27xf32> to vector<128x27xf32>
    %cst_58 = arith.constant dense<0.000000e+00> : vector<128x8xf32>
    %23 = tpu.matmul %22, %1, %cst_58 {dimension_numbers = #tpu.dot_dimension_numbers<[1], [0], [0], [1], [0, 0, 1, 1], [], []>} : vector<128x27xf32>, vector<27x8xf32>, vector<128x8xf32> -> vector<128x8xf32>
    %cst_59 = arith.constant 2.000000e-01 : f32
    %24 = vector.broadcast %cst_59 : f32 to vector<128x8xf32>
    %25 = arith.mulf %24, %23 : vector<128x8xf32>
    %26 = arith.maximumf %23, %25 : vector<128x8xf32>
    %c0_60 = arith.constant 0 : index
    %c0_61 = arith.constant 0 : index
    %27 = vector.load %arg2[%c0_60, %c0_61] : memref<72x8xf32, #tpu.memory_space<vmem>>, vector<72x8xf32>
    %c0_62 = arith.constant 0 : index
    %c0_63 = arith.constant 0 : index
    %28 = vector.load %arg3[%c0_62, %c0_63] : memref<1x8xf32, #tpu.memory_space<vmem>>, vector<1x8xf32>
    %c0_64 = arith.constant 0 : index
    %c0_65 = arith.constant 0 : index
    %29 = vector.load %arg4[%c0_64, %c0_65] : memref<1x8xf32, #tpu.memory_space<vmem>>, vector<1x8xf32>
    %cst_66 = arith.constant 0.000000e+00 : f32
    %30 = vector.broadcast %cst_66 : f32 to vector<2x1x10x8xf32>
    %c0_67 = arith.constant 0 : index
    %c0_68 = arith.constant 0 : index
    %c0_69 = arith.constant 0 : index
    %c0_70 = arith.constant 0 : index
    %31 = vector.load %arg16[%c0_67, %c0_68, %c0_69, %c0_70] : memref<2x10x10x64xf32, #tpu.memory_space<vmem>>, vector<2x1x10x8xf32>
    tpu.vector_store %arg16[%c0_67, %c0_68, %c0_69, %c0_70], %30 {strides = array<i32>} : memref<2x10x10x64xf32, #tpu.memory_space<vmem>>, vector<2x1x10x8xf32>,
    %cst_71 = arith.constant 0.000000e+00 : f32
    %32 = vector.broadcast %cst_71 : f32 to vector<2x1x10x8xf32>
    %c0_72 = arith.constant 0 : index
    %c9_73 = arith.constant 9 : index
    %c0_74 = arith.constant 0 : index
    %c0_75 = arith.constant 0 : index
    %33 = vector.load %arg16[%c0_72, %c9_73, %c0_74, %c0_75] : memref<2x10x10x64xf32, #tpu.memory_space<vmem>>, vector<2x1x10x8xf32>
    tpu.vector_store %arg16[%c0_72, %c9_73, %c0_74, %c0_75], %32 {strides = array<i32>} : memref<2x10x10x64xf32, #tpu.memory_space<vmem>>, vector<2x1x10x8xf32>,
    %cst_76 = arith.constant 0.000000e+00 : f32
    %34 = vector.broadcast %cst_76 : f32 to vector<2x10x1x8xf32>
    %c0_77 = arith.constant 0 : index
    %c0_78 = arith.constant 0 : index
    %c0_79 = arith.constant 0 : index
    %c0_80 = arith.constant 0 : index
    %35 = vector.load %arg16[%c0_77, %c0_78, %c0_79, %c0_80] : memref<2x10x10x64xf32, #tpu.memory_space<vmem>>, vector<2x10x1x8xf32>
    tpu.vector_store %arg16[%c0_77, %c0_78, %c0_79, %c0_80], %34 {strides = array<i32>} : memref<2x10x10x64xf32, #tpu.memory_space<vmem>>, vector<2x10x1x8xf32>,
    %cst_81 = arith.constant 0.000000e+00 : f32
    %36 = vector.broadcast %cst_81 : f32 to vector<2x10x1x8xf32>
    %c0_82 = arith.constant 0 : index
    %c0_83 = arith.constant 0 : index
    %c9_84 = arith.constant 9 : index
    %c0_85 = arith.constant 0 : index
    %37 = vector.load %arg16[%c0_82, %c0_83, %c9_84, %c0_85] : memref<2x10x10x64xf32, #tpu.memory_space<vmem>>, vector<2x10x1x8xf32>
    tpu.vector_store %arg16[%c0_82, %c0_83, %c9_84, %c0_85], %36 {strides = array<i32>} : memref<2x10x10x64xf32, #tpu.memory_space<vmem>>, vector<2x10x1x8xf32>,
    %38 = vector.shape_cast %26 : vector<128x8xf32> to vector<2x8x8x8xf32>
    %c0_86 = arith.constant 0 : index
    %c1_87 = arith.constant 1 : index
    %c1_88 = arith.constant 1 : index
    %c0_89 = arith.constant 0 : index
    %39 = vector.load %arg16[%c0_86, %c1_87, %c1_88, %c0_89] : memref<2x10x10x64xf32, #tpu.memory_space<vmem>>, vector<2x8x8x8xf32>
    tpu.vector_store %arg16[%c0_86, %c1_87, %c1_88, %c0_89], %38 {strides = array<i32>} : memref<2x10x10x64xf32, #tpu.memory_space<vmem>>, vector<2x8x8x8xf32>,
    %c0_90 = arith.constant 0 : index
    %c0_91 = arith.constant 0 : index
    %c0_92 = arith.constant 0 : index
    %c0_93 = arith.constant 0 : index
    %40 = vector.load %arg16[%c0_90, %c0_91, %c0_92, %c0_93] : memref<2x10x10x64xf32, #tpu.memory_space<vmem>>, vector<2x8x8x8xf32>
    %c0_94 = arith.constant 0 : index
    %c0_95 = arith.constant 0 : index
    %c1_96 = arith.constant 1 : index
    %c0_97 = arith.constant 0 : index
    %41 = vector.load %arg16[%c0_94, %c0_95, %c1_96, %c0_97] : memref<2x10x10x64xf32, #tpu.memory_space<vmem>>, vector<2x8x8x8xf32>
    %c0_98 = arith.constant 0 : index
    %c0_99 = arith.constant 0 : index
    %c2 = arith.constant 2 : index
    %c0_100 = arith.constant 0 : index
    %42 = vector.load %arg16[%c0_98, %c0_99, %c2, %c0_100] : memref<2x10x10x64xf32, #tpu.memory_space<vmem>>, vector<2x8x8x8xf32>
    %c0_101 = arith.constant 0 : index
    %c1_102 = arith.constant 1 : index
    %c0_103 = arith.constant 0 : index
    %c0_104 = arith.constant 0 : index
    %43 = vector.load %arg16[%c0_101, %c1_102, %c0_103, %c0_104] : memref<2x10x10x64xf32, #tpu.memory_space<vmem>>, vector<2x8x8x8xf32>
    %c0_105 = arith.constant 0 : index
    %c1_106 = arith.constant 1 : index
    %c1_107 = arith.constant 1 : index
    %c0_108 = arith.constant 0 : index
    %44 = vector.load %arg16[%c0_105, %c1_106, %c1_107, %c0_108] : memref<2x10x10x64xf32, #tpu.memory_space<vmem>>, vector<2x8x8x8xf32>
    %c0_109 = arith.constant 0 : index
    %c1_110 = arith.constant 1 : index
    %c2_111 = arith.constant 2 : index
    %c0_112 = arith.constant 0 : index
    %45 = vector.load %arg16[%c0_109, %c1_110, %c2_111, %c0_112] : memref<2x10x10x64xf32, #tpu.memory_space<vmem>>, vector<2x8x8x8xf32>
    %c0_113 = arith.constant 0 : index
    %c2_114 = arith.constant 2 : index
    %c0_115 = arith.constant 0 : index
    %c0_116 = arith.constant 0 : index
    %46 = vector.load %arg16[%c0_113, %c2_114, %c0_115, %c0_116] : memref<2x10x10x64xf32, #tpu.memory_space<vmem>>, vector<2x8x8x8xf32>
    %c0_117 = arith.constant 0 : index
    %c2_118 = arith.constant 2 : index
    %c1_119 = arith.constant 1 : index
    %c0_120 = arith.constant 0 : index
    %47 = vector.load %arg16[%c0_117, %c2_118, %c1_119, %c0_120] : memref<2x10x10x64xf32, #tpu.memory_space<vmem>>, vector<2x8x8x8xf32>
    %c0_121 = arith.constant 0 : index
    %c2_122 = arith.constant 2 : index
    %c2_123 = arith.constant 2 : index
    %c0_124 = arith.constant 0 : index
    %48 = vector.load %arg16[%c0_121, %c2_122, %c2_123, %c0_124] : memref<2x10x10x64xf32, #tpu.memory_space<vmem>>, vector<2x8x8x8xf32>
    %49 = tpu.concatenate %40, %41, %42, %43, %44, %45, %46, %47, %48 in 3 : vector<2x8x8x8xf32>, vector<2x8x8x8xf32>, vector<2x8x8x8xf32>, vector<2x8x8x8xf32>, vector<2x8x8x8xf32>, vector<2x8x8x8xf32>, vector<2x8x8x8xf32>, vector<2x8x8x8xf32>, vector<2x8x8x8xf32> -> vector<2x8x8x72xf32>
    %50 = vector.shape_cast %49 : vector<2x8x8x72xf32> to vector<128x72xf32>
    %cst_125 = arith.constant dense<0.000000e+00> : vector<128x8xf32>
    %51 = tpu.matmul %50, %27, %cst_125 {dimension_numbers = #tpu.dot_dimension_numbers<[1], [0], [0], [1], [0, 0, 1, 1], [], []>} : vector<128x72xf32>, vector<72x8xf32>, vector<128x8xf32> -> vector<128x8xf32>
    %cst_126 = arith.constant dense<0.000000e+00> : vector<8xf32>
    %52 = vector.multi_reduction <add>, %51, %cst_126 [0] : vector<128x8xf32> to vector<8xf32>
    %53 = vector.shape_cast %52 : vector<8xf32> to vector<1x8xf32>
    %cst_127 = arith.constant 1.280000e+02 : f32
    %54 = vector.broadcast %cst_127 : f32 to vector<1x8xf32>
    %55 = arith.divf %53, %54 : vector<1x8xf32>
    %56 = vector.broadcast %55 : vector<1x8xf32> to vector<128x8xf32>
    %57 = arith.subf %51, %56 : vector<128x8xf32>
    %58 = arith.mulf %57, %57 : vector<128x8xf32>
    %cst_128 = arith.constant dense<0.000000e+00> : vector<8xf32>
    %59 = vector.multi_reduction <add>, %58, %cst_128 [0] : vector<128x8xf32> to vector<8xf32>
    %60 = vector.shape_cast %59 : vector<8xf32> to vector<1x8xf32>
    %cst_129 = arith.constant 1.280000e+02 : f32
    %61 = vector.broadcast %cst_129 : f32 to vector<1x8xf32>
    %62 = arith.divf %60, %61 : vector<1x8xf32>
    %63 = vector.broadcast %55 : vector<1x8xf32> to vector<128x8xf32>
    %64 = arith.subf %51, %63 : vector<128x8xf32>
    %cst_130 = arith.constant 9.99999974E-6 : f32
    %65 = vector.broadcast %cst_130 : f32 to vector<1x8xf32>
    %66 = arith.addf %62, %65 : vector<1x8xf32>
    %67 = math.rsqrt %66 : vector<1x8xf32>
    %68 = vector.broadcast %67 : vector<1x8xf32> to vector<128x8xf32>
    %69 = arith.mulf %64, %68 : vector<128x8xf32>
    %70 = vector.broadcast %28 : vector<1x8xf32> to vector<128x8xf32>
    %71 = arith.mulf %69, %70 : vector<128x8xf32>
    %72 = vector.broadcast %29 : vector<1x8xf32> to vector<128x8xf32>
    %73 = arith.addf %71, %72 : vector<128x8xf32>
    %cst_131 = arith.constant 2.000000e-01 : f32
    %74 = vector.broadcast %cst_131 : f32 to vector<128x8xf32>
    %75 = arith.mulf %74, %73 : vector<128x8xf32>
    %76 = arith.maximumf %73, %75 : vector<128x8xf32>
    %c0_132 = arith.constant 0 : index
    %c0_133 = arith.constant 0 : index
    %77 = vector.load %arg5[%c0_132, %c0_133] : memref<72x8xf32, #tpu.memory_space<vmem>>, vector<72x8xf32>
    %c0_134 = arith.constant 0 : index
    %c0_135 = arith.constant 0 : index
    %78 = vector.load %arg6[%c0_134, %c0_135] : memref<1x8xf32, #tpu.memory_space<vmem>>, vector<1x8xf32>
    %c0_136 = arith.constant 0 : index
    %c0_137 = arith.constant 0 : index
    %79 = vector.load %arg7[%c0_136, %c0_137] : memref<1x8xf32, #tpu.memory_space<vmem>>, vector<1x8xf32>
    %cst_138 = arith.constant 0.000000e+00 : f32
    %80 = vector.broadcast %cst_138 : f32 to vector<2x1x10x8xf32>
    %c0_139 = arith.constant 0 : index
    %c0_140 = arith.constant 0 : index
    %c0_141 = arith.constant 0 : index
    %c0_142 = arith.constant 0 : index
    %81 = vector.load %arg16[%c0_139, %c0_140, %c0_141, %c0_142] : memref<2x10x10x64xf32, #tpu.memory_space<vmem>>, vector<2x1x10x8xf32>
    tpu.vector_store %arg16[%c0_139, %c0_140, %c0_141, %c0_142], %80 {strides = array<i32>} : memref<2x10x10x64xf32, #tpu.memory_space<vmem>>, vector<2x1x10x8xf32>,
    %cst_143 = arith.constant 0.000000e+00 : f32
    %82 = vector.broadcast %cst_143 : f32 to vector<2x1x10x8xf32>
    %c0_144 = arith.constant 0 : index
    %c9_145 = arith.constant 9 : index
    %c0_146 = arith.constant 0 : index
    %c0_147 = arith.constant 0 : index
    %83 = vector.load %arg16[%c0_144, %c9_145, %c0_146, %c0_147] : memref<2x10x10x64xf32, #tpu.memory_space<vmem>>, vector<2x1x10x8xf32>
    tpu.vector_store %arg16[%c0_144, %c9_145, %c0_146, %c0_147], %82 {strides = array<i32>} : memref<2x10x10x64xf32, #tpu.memory_space<vmem>>, vector<2x1x10x8xf32>,
    %cst_148 = arith.constant 0.000000e+00 : f32
    %84 = vector.broadcast %cst_148 : f32 to vector<2x10x1x8xf32>
    %c0_149 = arith.constant 0 : index
    %c0_150 = arith.constant 0 : index
    %c0_151 = arith.constant 0 : index
    %c0_152 = arith.constant 0 : index
    %85 = vector.load %arg16[%c0_149, %c0_150, %c0_151, %c0_152] : memref<2x10x10x64xf32, #tpu.memory_space<vmem>>, vector<2x10x1x8xf32>
    tpu.vector_store %arg16[%c0_149, %c0_150, %c0_151, %c0_152], %84 {strides = array<i32>} : memref<2x10x10x64xf32, #tpu.memory_space<vmem>>, vector<2x10x1x8xf32>,
    %cst_153 = arith.constant 0.000000e+00 : f32
    %86 = vector.broadcast %cst_153 : f32 to vector<2x10x1x8xf32>
    %c0_154 = arith.constant 0 : index
    %c0_155 = arith.constant 0 : index
    %c9_156 = arith.constant 9 : index
    %c0_157 = arith.constant 0 : index
    %87 = vector.load %arg16[%c0_154, %c0_155, %c9_156, %c0_157] : memref<2x10x10x64xf32, #tpu.memory_space<vmem>>, vector<2x10x1x8xf32>
    tpu.vector_store %arg16[%c0_154, %c0_155, %c9_156, %c0_157], %86 {strides = array<i32>} : memref<2x10x10x64xf32, #tpu.memory_space<vmem>>, vector<2x10x1x8xf32>,
    %88 = vector.shape_cast %76 : vector<128x8xf32> to vector<2x8x8x8xf32>
    %c0_158 = arith.constant 0 : index
    %c1_159 = arith.constant 1 : index
    %c1_160 = arith.constant 1 : index
    %c0_161 = arith.constant 0 : index
    %89 = vector.load %arg16[%c0_158, %c1_159, %c1_160, %c0_161] : memref<2x10x10x64xf32, #tpu.memory_space<vmem>>, vector<2x8x8x8xf32>
    tpu.vector_store %arg16[%c0_158, %c1_159, %c1_160, %c0_161], %88 {strides = array<i32>} : memref<2x10x10x64xf32, #tpu.memory_space<vmem>>, vector<2x8x8x8xf32>,
    %c0_162 = arith.constant 0 : index
    %c0_163 = arith.constant 0 : index
    %c0_164 = arith.constant 0 : index
    %c0_165 = arith.constant 0 : index
    %90 = vector.load %arg16[%c0_162, %c0_163, %c0_164, %c0_165] : memref<2x10x10x64xf32, #tpu.memory_space<vmem>>, vector<2x8x8x8xf32>
    %c0_166 = arith.constant 0 : index
    %c0_167 = arith.constant 0 : index
    %c1_168 = arith.constant 1 : index
    %c0_169 = arith.constant 0 : index
    %91 = vector.load %arg16[%c0_166, %c0_167, %c1_168, %c0_169] : memref<2x10x10x64xf32, #tpu.memory_space<vmem>>, vector<2x8x8x8xf32>
    %c0_170 = arith.constant 0 : index
    %c0_171 = arith.constant 0 : index
    %c2_172 = arith.constant 2 : index
    %c0_173 = arith.constant 0 : index
    %92 = vector.load %arg16[%c0_170, %c0_171, %c2_172, %c0_173] : memref<2x10x10x64xf32, #tpu.memory_space<vmem>>, vector<2x8x8x8xf32>
    %c0_174 = arith.constant 0 : index
    %c1_175 = arith.constant 1 : index
    %c0_176 = arith.constant 0 : index
    %c0_177 = arith.constant 0 : index
    %93 = vector.load %arg16[%c0_174, %c1_175, %c0_176, %c0_177] : memref<2x10x10x64xf32, #tpu.memory_space<vmem>>, vector<2x8x8x8xf32>
    %c0_178 = arith.constant 0 : index
    %c1_179 = arith.constant 1 : index
    %c1_180 = arith.constant 1 : index
    %c0_181 = arith.constant 0 : index
    %94 = vector.load %arg16[%c0_178, %c1_179, %c1_180, %c0_181] : memref<2x10x10x64xf32, #tpu.memory_space<vmem>>, vector<2x8x8x8xf32>
    %c0_182 = arith.constant 0 : index
    %c1_183 = arith.constant 1 : index
    %c2_184 = arith.constant 2 : index
    %c0_185 = arith.constant 0 : index
    %95 = vector.load %arg16[%c0_182, %c1_183, %c2_184, %c0_185] : memref<2x10x10x64xf32, #tpu.memory_space<vmem>>, vector<2x8x8x8xf32>
    %c0_186 = arith.constant 0 : index
    %c2_187 = arith.constant 2 : index
    %c0_188 = arith.constant 0 : index
    %c0_189 = arith.constant 0 : index
    %96 = vector.load %arg16[%c0_186, %c2_187, %c0_188, %c0_189] : memref<2x10x10x64xf32, #tpu.memory_space<vmem>>, vector<2x8x8x8xf32>
    %c0_190 = arith.constant 0 : index
    %c2_191 = arith.constant 2 : index
    %c1_192 = arith.constant 1 : index
    %c0_193 = arith.constant 0 : index
    %97 = vector.load %arg16[%c0_190, %c2_191, %c1_192, %c0_193] : memref<2x10x10x64xf32, #tpu.memory_space<vmem>>, vector<2x8x8x8xf32>
    %c0_194 = arith.constant 0 : index
    %c2_195 = arith.constant 2 : index
    %c2_196 = arith.constant 2 : index
    %c0_197 = arith.constant 0 : index
    %98 = vector.load %arg16[%c0_194, %c2_195, %c2_196, %c0_197] : memref<2x10x10x64xf32, #tpu.memory_space<vmem>>, vector<2x8x8x8xf32>
    %99 = tpu.concatenate %90, %91, %92, %93, %94, %95, %96, %97, %98 in 3 : vector<2x8x8x8xf32>, vector<2x8x8x8xf32>, vector<2x8x8x8xf32>, vector<2x8x8x8xf32>, vector<2x8x8x8xf32>, vector<2x8x8x8xf32>, vector<2x8x8x8xf32>, vector<2x8x8x8xf32>, vector<2x8x8x8xf32> -> vector<2x8x8x72xf32>
    %100 = vector.shape_cast %99 : vector<2x8x8x72xf32> to vector<128x72xf32>
    %cst_198 = arith.constant dense<0.000000e+00> : vector<128x8xf32>
    %101 = tpu.matmul %100, %77, %cst_198 {dimension_numbers = #tpu.dot_dimension_numbers<[1], [0], [0], [1], [0, 0, 1, 1], [], []>} : vector<128x72xf32>, vector<72x8xf32>, vector<128x8xf32> -> vector<128x8xf32>
    %cst_199 = arith.constant dense<0.000000e+00> : vector<8xf32>
    %102 = vector.multi_reduction <add>, %101, %cst_199 [0] : vector<128x8xf32> to vector<8xf32>
    %103 = vector.shape_cast %102 : vector<8xf32> to vector<1x8xf32>
    %cst_200 = arith.constant 1.280000e+02 : f32
    %104 = vector.broadcast %cst_200 : f32 to vector<1x8xf32>
    %105 = arith.divf %103, %104 : vector<1x8xf32>
    %106 = vector.broadcast %105 : vector<1x8xf32> to vector<128x8xf32>
    %107 = arith.subf %101, %106 : vector<128x8xf32>
    %108 = arith.mulf %107, %107 : vector<128x8xf32>
    %cst_201 = arith.constant dense<0.000000e+00> : vector<8xf32>
    %109 = vector.multi_reduction <add>, %108, %cst_201 [0] : vector<128x8xf32> to vector<8xf32>
    %110 = vector.shape_cast %109 : vector<8xf32> to vector<1x8xf32>
    %cst_202 = arith.constant 1.280000e+02 : f32
    %111 = vector.broadcast %cst_202 : f32 to vector<1x8xf32>
    %112 = arith.divf %110, %111 : vector<1x8xf32>
    %113 = vector.broadcast %105 : vector<1x8xf32> to vector<128x8xf32>
    %114 = arith.subf %101, %113 : vector<128x8xf32>
    %cst_203 = arith.constant 9.99999974E-6 : f32
    %115 = vector.broadcast %cst_203 : f32 to vector<1x8xf32>
    %116 = arith.addf %112, %115 : vector<1x8xf32>
    %117 = math.rsqrt %116 : vector<1x8xf32>
    %118 = vector.broadcast %117 : vector<1x8xf32> to vector<128x8xf32>
    %119 = arith.mulf %114, %118 : vector<128x8xf32>
    %120 = vector.broadcast %78 : vector<1x8xf32> to vector<128x8xf32>
    %121 = arith.mulf %119, %120 : vector<128x8xf32>
    %122 = vector.broadcast %79 : vector<1x8xf32> to vector<128x8xf32>
    %123 = arith.addf %121, %122 : vector<128x8xf32>
    %cst_204 = arith.constant 2.000000e-01 : f32
    %124 = vector.broadcast %cst_204 : f32 to vector<128x8xf32>
    %125 = arith.mulf %124, %123 : vector<128x8xf32>
    %126 = arith.maximumf %123, %125 : vector<128x8xf32>
    %c0_205 = arith.constant 0 : index
    %c0_206 = arith.constant 0 : index
    %127 = vector.load %arg8[%c0_205, %c0_206] : memref<72x16xf32, #tpu.memory_space<vmem>>, vector<72x16xf32>
    %c0_207 = arith.constant 0 : index
    %c0_208 = arith.constant 0 : index
    %128 = vector.load %arg9[%c0_207, %c0_208] : memref<1x16xf32, #tpu.memory_space<vmem>>, vector<1x16xf32>
    %c0_209 = arith.constant 0 : index
    %c0_210 = arith.constant 0 : index
    %129 = vector.load %arg10[%c0_209, %c0_210] : memref<1x16xf32, #tpu.memory_space<vmem>>, vector<1x16xf32>
    %cst_211 = arith.constant 0.000000e+00 : f32
    %130 = vector.broadcast %cst_211 : f32 to vector<2x1x6x32xf32>
    %c0_212 = arith.constant 0 : index
    %c0_213 = arith.constant 0 : index
    %c0_214 = arith.constant 0 : index
    %c0_215 = arith.constant 0 : index
    %131 = vector.load %arg16[%c0_212, %c0_213, %c0_214, %c0_215] : memref<2x10x10x64xf32, #tpu.memory_space<vmem>>, vector<2x1x6x32xf32>
    tpu.vector_store %arg16[%c0_212, %c0_213, %c0_214, %c0_215], %130 {strides = array<i32>} : memref<2x10x10x64xf32, #tpu.memory_space<vmem>>, vector<2x1x6x32xf32>,
    %cst_216 = arith.constant 0.000000e+00 : f32
    %132 = vector.broadcast %cst_216 : f32 to vector<2x1x6x32xf32>
    %c0_217 = arith.constant 0 : index
    %c5 = arith.constant 5 : index
    %c0_218 = arith.constant 0 : index
    %c0_219 = arith.constant 0 : index
    %133 = vector.load %arg16[%c0_217, %c5, %c0_218, %c0_219] : memref<2x10x10x64xf32, #tpu.memory_space<vmem>>, vector<2x1x6x32xf32>
    tpu.vector_store %arg16[%c0_217, %c5, %c0_218, %c0_219], %132 {strides = array<i32>} : memref<2x10x10x64xf32, #tpu.memory_space<vmem>>, vector<2x1x6x32xf32>,
    %cst_220 = arith.constant 0.000000e+00 : f32
    %134 = vector.broadcast %cst_220 : f32 to vector<2x6x1x32xf32>
    %c0_221 = arith.constant 0 : index
    %c0_222 = arith.constant 0 : index
    %c0_223 = arith.constant 0 : index
    %c0_224 = arith.constant 0 : index
    %135 = vector.load %arg16[%c0_221, %c0_222, %c0_223, %c0_224] : memref<2x10x10x64xf32, #tpu.memory_space<vmem>>, vector<2x6x1x32xf32>
    tpu.vector_store %arg16[%c0_221, %c0_222, %c0_223, %c0_224], %134 {strides = array<i32>} : memref<2x10x10x64xf32, #tpu.memory_space<vmem>>, vector<2x6x1x32xf32>,
    %cst_225 = arith.constant 0.000000e+00 : f32
    %136 = vector.broadcast %cst_225 : f32 to vector<2x6x1x32xf32>
    %c0_226 = arith.constant 0 : index
    %c0_227 = arith.constant 0 : index
    %c5_228 = arith.constant 5 : index
    %c0_229 = arith.constant 0 : index
    %137 = vector.load %arg16[%c0_226, %c0_227, %c5_228, %c0_229] : memref<2x10x10x64xf32, #tpu.memory_space<vmem>>, vector<2x6x1x32xf32>
    tpu.vector_store %arg16[%c0_226, %c0_227, %c5_228, %c0_229], %136 {strides = array<i32>} : memref<2x10x10x64xf32, #tpu.memory_space<vmem>>, vector<2x6x1x32xf32>,
    %c0_230 = arith.constant 0 : index
    %c0_231 = arith.constant 0 : index
    %138 = vector.load %arg17[%c0_230, %c0_231] : memref<128x16xf32, #tpu.memory_space<vmem>>, vector<128x8xf32>
    tpu.vector_store %arg17[%c0_230, %c0_231], %126 {strides = array<i32>} : memref<128x16xf32, #tpu.memory_space<vmem>>, vector<128x8xf32>,
    %c0_232 = arith.constant 0 : index
    %c0_233 = arith.constant 0 : index
    %139 = tpu.strided_load %arg17[%c0_232, %c0_233] {strides = array<i32: 2, 1>} : memref<128x16xf32, #tpu.memory_space<vmem>>, vector<64x8xf32>
    %c1_234 = arith.constant 1 : index
    %c0_235 = arith.constant 0 : index
    %140 = tpu.strided_load %arg17[%c1_234, %c0_235] {strides = array<i32: 2, 1>} : memref<128x16xf32, #tpu.memory_space<vmem>>, vector<64x8xf32>
    %141 = tpu.concatenate %139, %140 in 1 : vector<64x8xf32>, vector<64x8xf32> -> vector<64x16xf32>
    %142 = vector.shape_cast %141 : vector<64x16xf32> to vector<8x2x4x16xf32>
    %143 = vector.extract_strided_slice %142 {offsets = [0, 0, 0, 0], sizes = [8, 1, 4, 16], strides = [1, 1, 1, 1]} : vector<8x2x4x16xf32> to vector<8x1x4x16xf32>
    %144 = vector.shape_cast %143 : vector<8x1x4x16xf32> to vector<8x4x16xf32>
    %145 = vector.shape_cast %144 : vector<8x4x16xf32> to vector<2x4x4x16xf32>
    %c0_236 = arith.constant 0 : index
    %c1_237 = arith.constant 1 : index
    %c1_238 = arith.constant 1 : index
    %c0_239 = arith.constant 0 : index
    %146 = vector.load %arg16[%c0_236, %c1_237, %c1_238, %c0_239] : memref<2x10x10x64xf32, #tpu.memory_space<vmem>>, vector<2x4x4x16xf32>
    tpu.vector_store %arg16[%c0_236, %c1_237, %c1_238, %c0_239], %145 {strides = array<i32>} : memref<2x10x10x64xf32, #tpu.memory_space<vmem>>, vector<2x4x4x16xf32>,
    %147 = vector.extract_strided_slice %142 {offsets = [0, 1, 0, 0], sizes = [8, 1, 4, 16], strides = [1, 1, 1, 1]} : vector<8x2x4x16xf32> to vector<8x1x4x16xf32>
    %148 = vector.shape_cast %147 : vector<8x1x4x16xf32> to vector<8x4x16xf32>
    %149 = vector.shape_cast %148 : vector<8x4x16xf32> to vector<2x4x4x16xf32>
    %c0_240 = arith.constant 0 : index
    %c1_241 = arith.constant 1 : index
    %c1_242 = arith.constant 1 : index
    %c16 = arith.constant 16 : index
    %150 = vector.load %arg16[%c0_240, %c1_241, %c1_242, %c16] : memref<2x10x10x64xf32, #tpu.memory_space<vmem>>, vector<2x4x4x16xf32>
    tpu.vector_store %arg16[%c0_240, %c1_241, %c1_242, %c16], %149 {strides = array<i32>} : memref<2x10x10x64xf32, #tpu.memory_space<vmem>>, vector<2x4x4x16xf32>,
    %c0_243 = arith.constant 0 : index
    %c0_244 = arith.constant 0 : index
    %c0_245 = arith.constant 0 : index
    %c24 = arith.constant 24 : index
    %151 = vector.load %arg16[%c0_243, %c0_244, %c0_245, %c24] : memref<2x10x10x64xf32, #tpu.memory_space<vmem>>, vector<2x4x4x8xf32>
    %c0_246 = arith.constant 0 : index
    %c0_247 = arith.constant 0 : index
    %c1_248 = arith.constant 1 : index
    %c16_249 = arith.constant 16 : index
    %152 = vector.load %arg16[%c0_246, %c0_247, %c1_248, %c16_249] : memref<2x10x10x64xf32, #tpu.memory_space<vmem>>, vector<2x4x4x8xf32>
    %c0_250 = arith.constant 0 : index
    %c0_251 = arith.constant 0 : index
    %c1_252 = arith.constant 1 : index
    %c24_253 = arith.constant 24 : index
    %153 = vector.load %arg16[%c0_250, %c0_251, %c1_252, %c24_253] : memref<2x10x10x64xf32, #tpu.memory_space<vmem>>, vector<2x4x4x8xf32>
    %c0_254 = arith.constant 0 : index
    %c1_255 = arith.constant 1 : index
    %c0_256 = arith.constant 0 : index
    %c8 = arith.constant 8 : index
    %154 = vector.load %arg16[%c0_254, %c1_255, %c0_256, %c8] : memref<2x10x10x64xf32, #tpu.memory_space<vmem>>, vector<2x4x4x8xf32>
    %c0_257 = arith.constant 0 : index
    %c1_258 = arith.constant 1 : index
    %c1_259 = arith.constant 1 : index
    %c0_260 = arith.constant 0 : index
    %155 = vector.load %arg16[%c0_257, %c1_258, %c1_259, %c0_260] : memref<2x10x10x64xf32, #tpu.memory_space<vmem>>, vector<2x4x4x8xf32>
    %c0_261 = arith.constant 0 : index
    %c1_262 = arith.constant 1 : index
    %c1_263 = arith.constant 1 : index
    %c8_264 = arith.constant 8 : index
    %156 = vector.load %arg16[%c0_261, %c1_262, %c1_263, %c8_264] : memref<2x10x10x64xf32, #tpu.memory_space<vmem>>, vector<2x4x4x8xf32>
    %c0_265 = arith.constant 0 : index
    %c1_266 = arith.constant 1 : index
    %c0_267 = arith.constant 0 : index
    %c24_268 = arith.constant 24 : index
    %157 = vector.load %arg16[%c0_265, %c1_266, %c0_267, %c24_268] : memref<2x10x10x64xf32, #tpu.memory_space<vmem>>, vector<2x4x4x8xf32>
    %c0_269 = arith.constant 0 : index
    %c1_270 = arith.constant 1 : index
    %c1_271 = arith.constant 1 : index
    %c16_272 = arith.constant 16 : index
    %158 = vector.load %arg16[%c0_269, %c1_270, %c1_271, %c16_272] : memref<2x10x10x64xf32, #tpu.memory_space<vmem>>, vector<2x4x4x8xf32>
    %c0_273 = arith.constant 0 : index
    %c1_274 = arith.constant 1 : index
    %c1_275 = arith.constant 1 : index
    %c24_276 = arith.constant 24 : index
    %159 = vector.load %arg16[%c0_273, %c1_274, %c1_275, %c24_276] : memref<2x10x10x64xf32, #tpu.memory_space<vmem>>, vector<2x4x4x8xf32>
    %160 = tpu.concatenate %151, %152, %153, %154, %155, %156, %157, %158, %159 in 3 : vector<2x4x4x8xf32>, vector<2x4x4x8xf32>, vector<2x4x4x8xf32>, vector<2x4x4x8xf32>, vector<2x4x4x8xf32>, vector<2x4x4x8xf32>, vector<2x4x4x8xf32>, vector<2x4x4x8xf32>, vector<2x4x4x8xf32> -> vector<2x4x4x72xf32>
    %161 = vector.shape_cast %160 : vector<2x4x4x72xf32> to vector<32x72xf32>
    %cst_277 = arith.constant dense<0.000000e+00> : vector<32x16xf32>
    %162 = tpu.matmul %161, %127, %cst_277 {dimension_numbers = #tpu.dot_dimension_numbers<[1], [0], [0], [1], [0, 0, 1, 1], [], []>} : vector<32x72xf32>, vector<72x16xf32>, vector<32x16xf32> -> vector<32x16xf32>
    %cst_278 = arith.constant dense<0.000000e+00> : vector<16xf32>
    %163 = vector.multi_reduction <add>, %162, %cst_278 [0] : vector<32x16xf32> to vector<16xf32>
    %164 = vector.shape_cast %163 : vector<16xf32> to vector<1x16xf32>
    %cst_279 = arith.constant 3.200000e+01 : f32
    %165 = vector.broadcast %cst_279 : f32 to vector<1x16xf32>
    %166 = arith.divf %164, %165 : vector<1x16xf32>
    %167 = vector.broadcast %166 : vector<1x16xf32> to vector<32x16xf32>
    %168 = arith.subf %162, %167 : vector<32x16xf32>
    %169 = arith.mulf %168, %168 : vector<32x16xf32>
    %cst_280 = arith.constant dense<0.000000e+00> : vector<16xf32>
    %170 = vector.multi_reduction <add>, %169, %cst_280 [0] : vector<32x16xf32> to vector<16xf32>
    %171 = vector.shape_cast %170 : vector<16xf32> to vector<1x16xf32>
    %cst_281 = arith.constant 3.200000e+01 : f32
    %172 = vector.broadcast %cst_281 : f32 to vector<1x16xf32>
    %173 = arith.divf %171, %172 : vector<1x16xf32>
    %174 = vector.broadcast %166 : vector<1x16xf32> to vector<32x16xf32>
    %175 = arith.subf %162, %174 : vector<32x16xf32>
    %cst_282 = arith.constant 9.99999974E-6 : f32
    %176 = vector.broadcast %cst_282 : f32 to vector<1x16xf32>
    %177 = arith.addf %173, %176 : vector<1x16xf32>
    %178 = math.rsqrt %177 : vector<1x16xf32>
    %179 = vector.broadcast %178 : vector<1x16xf32> to vector<32x16xf32>
    %180 = arith.mulf %175, %179 : vector<32x16xf32>
    %181 = vector.broadcast %128 : vector<1x16xf32> to vector<32x16xf32>
    %182 = arith.mulf %180, %181 : vector<32x16xf32>
    %183 = vector.broadcast %129 : vector<1x16xf32> to vector<32x16xf32>
    %184 = arith.addf %182, %183 : vector<32x16xf32>
    %cst_283 = arith.constant 2.000000e-01 : f32
    %185 = vector.broadcast %cst_283 : f32 to vector<32x16xf32>
    %186 = arith.mulf %185, %184 : vector<32x16xf32>
    %187 = arith.maximumf %184, %186 : vector<32x16xf32>
    %c0_284 = arith.constant 0 : index
    %c0_285 = arith.constant 0 : index
    %188 = vector.load %arg11[%c0_284, %c0_285] : memref<144x32xf32, #tpu.memory_space<vmem>>, vector<144x32xf32>
    %c0_286 = arith.constant 0 : index
    %c0_287 = arith.constant 0 : index
    %189 = vector.load %arg12[%c0_286, %c0_287] : memref<1x32xf32, #tpu.memory_space<vmem>>, vector<1x32xf32>
    %c0_288 = arith.constant 0 : index
    %c0_289 = arith.constant 0 : index
    %190 = vector.load %arg13[%c0_288, %c0_289] : memref<1x32xf32, #tpu.memory_space<vmem>>, vector<1x32xf32>
    %cst_290 = arith.constant 0.000000e+00 : f32
    %191 = vector.broadcast %cst_290 : f32 to vector<2x1x4x64xf32>
    %c0_291 = arith.constant 0 : index
    %c0_292 = arith.constant 0 : index
    %c0_293 = arith.constant 0 : index
    %c0_294 = arith.constant 0 : index
    %192 = vector.load %arg16[%c0_291, %c0_292, %c0_293, %c0_294] : memref<2x10x10x64xf32, #tpu.memory_space<vmem>>, vector<2x1x4x64xf32>
    tpu.vector_store %arg16[%c0_291, %c0_292, %c0_293, %c0_294], %191 {strides = array<i32>} : memref<2x10x10x64xf32, #tpu.memory_space<vmem>>, vector<2x1x4x64xf32>,
    %cst_295 = arith.constant 0.000000e+00 : f32
    %193 = vector.broadcast %cst_295 : f32 to vector<2x1x4x64xf32>
    %c0_296 = arith.constant 0 : index
    %c3_297 = arith.constant 3 : index
    %c0_298 = arith.constant 0 : index
    %c0_299 = arith.constant 0 : index
    %194 = vector.load %arg16[%c0_296, %c3_297, %c0_298, %c0_299] : memref<2x10x10x64xf32, #tpu.memory_space<vmem>>, vector<2x1x4x64xf32>
    tpu.vector_store %arg16[%c0_296, %c3_297, %c0_298, %c0_299], %193 {strides = array<i32>} : memref<2x10x10x64xf32, #tpu.memory_space<vmem>>, vector<2x1x4x64xf32>,
    %cst_300 = arith.constant 0.000000e+00 : f32
    %195 = vector.broadcast %cst_300 : f32 to vector<2x4x1x64xf32>
    %c0_301 = arith.constant 0 : index
    %c0_302 = arith.constant 0 : index
    %c0_303 = arith.constant 0 : index
    %c0_304 = arith.constant 0 : index
    %196 = vector.load %arg16[%c0_301, %c0_302, %c0_303, %c0_304] : memref<2x10x10x64xf32, #tpu.memory_space<vmem>>, vector<2x4x1x64xf32>
    tpu.vector_store %arg16[%c0_301, %c0_302, %c0_303, %c0_304], %195 {strides = array<i32>} : memref<2x10x10x64xf32, #tpu.memory_space<vmem>>, vector<2x4x1x64xf32>,
    %cst_305 = arith.constant 0.000000e+00 : f32
    %197 = vector.broadcast %cst_305 : f32 to vector<2x4x1x64xf32>
    %c0_306 = arith.constant 0 : index
    %c0_307 = arith.constant 0 : index
    %c3_308 = arith.constant 3 : index
    %c0_309 = arith.constant 0 : index
    %198 = vector.load %arg16[%c0_306, %c0_307, %c3_308, %c0_309] : memref<2x10x10x64xf32, #tpu.memory_space<vmem>>, vector<2x4x1x64xf32>
    tpu.vector_store %arg16[%c0_306, %c0_307, %c3_308, %c0_309], %197 {strides = array<i32>} : memref<2x10x10x64xf32, #tpu.memory_space<vmem>>, vector<2x4x1x64xf32>,
    %c0_310 = arith.constant 0 : index
    %c0_311 = arith.constant 0 : index
    %199 = vector.load %arg17[%c0_310, %c0_311] : memref<128x16xf32, #tpu.memory_space<vmem>>, vector<32x16xf32>
    tpu.vector_store %arg17[%c0_310, %c0_311], %187 {strides = array<i32>} : memref<128x16xf32, #tpu.memory_space<vmem>>, vector<32x16xf32>,
    %c0_312 = arith.constant 0 : index
    %c0_313 = arith.constant 0 : index
    %200 = tpu.strided_load %arg17[%c0_312, %c0_313] {strides = array<i32: 2, 1>} : memref<128x16xf32, #tpu.memory_space<vmem>>, vector<16x16xf32>
    %c1_314 = arith.constant 1 : index
    %c0_315 = arith.constant 0 : index
    %201 = tpu.strided_load %arg17[%c1_314, %c0_315] {strides = array<i32: 2, 1>} : memref<128x16xf32, #tpu.memory_space<vmem>>, vector<16x16xf32>
    %202 = tpu.concatenate %200, %201 in 1 : vector<16x16xf32>, vector<16x16xf32> -> vector<16x32xf32>
    %203 = vector.shape_cast %202 : vector<16x32xf32> to vector<4x2x2x32xf32>
    %204 = vector.extract_strided_slice %203 {offsets = [0, 0, 0, 0], sizes = [4, 1, 2, 32], strides = [1, 1, 1, 1]} : vector<4x2x2x32xf32> to vector<4x1x2x32xf32>
    %205 = vector.shape_cast %204 : vector<4x1x2x32xf32> to vector<4x2x32xf32>
    %206 = vector.shape_cast %205 : vector<4x2x32xf32> to vector<2x2x2x32xf32>
    %c0_316 = arith.constant 0 : index
    %c1_317 = arith.constant 1 : index
    %c1_318 = arith.constant 1 : index
    %c0_319 = arith.constant 0 : index
    %207 = vector.load %arg16[%c0_316, %c1_317, %c1_318, %c0_319] : memref<2x10x10x64xf32, #tpu.memory_space<vmem>>, vector<2x2x2x32xf32>
    tpu.vector_store %arg16[%c0_316, %c1_317, %c1_318, %c0_319], %206 {strides = array<i32>} : memref<2x10x10x64xf32, #tpu.memory_space<vmem>>, vector<2x2x2x32xf32>,
    %208 = vector.extract_strided_slice %203 {offsets = [0, 1, 0, 0], sizes = [4, 1, 2, 32], strides = [1, 1, 1, 1]} : vector<4x2x2x32xf32> to vector<4x1x2x32xf32>
    %209 = vector.shape_cast %208 : vector<4x1x2x32xf32> to vector<4x2x32xf32>
    %210 = vector.shape_cast %209 : vector<4x2x32xf32> to vector<2x2x2x32xf32>
    %c0_320 = arith.constant 0 : index
    %c1_321 = arith.constant 1 : index
    %c1_322 = arith.constant 1 : index
    %c32 = arith.constant 32 : index
    %211 = vector.load %arg16[%c0_320, %c1_321, %c1_322, %c32] : memref<2x10x10x64xf32, #tpu.memory_space<vmem>>, vector<2x2x2x32xf32>
    tpu.vector_store %arg16[%c0_320, %c1_321, %c1_322, %c32], %210 {strides = array<i32>} : memref<2x10x10x64xf32, #tpu.memory_space<vmem>>, vector<2x2x2x32xf32>,
    %c0_323 = arith.constant 0 : index
    %c0_324 = arith.constant 0 : index
    %c0_325 = arith.constant 0 : index
    %c48 = arith.constant 48 : index
    %212 = vector.load %arg16[%c0_323, %c0_324, %c0_325, %c48] : memref<2x10x10x64xf32, #tpu.memory_space<vmem>>, vector<2x2x2x16xf32>
    %c0_326 = arith.constant 0 : index
    %c0_327 = arith.constant 0 : index
    %c1_328 = arith.constant 1 : index
    %c32_329 = arith.constant 32 : index
    %213 = vector.load %arg16[%c0_326, %c0_327, %c1_328, %c32_329] : memref<2x10x10x64xf32, #tpu.memory_space<vmem>>, vector<2x2x2x16xf32>
    %c0_330 = arith.constant 0 : index
    %c0_331 = arith.constant 0 : index
    %c1_332 = arith.constant 1 : index
    %c48_333 = arith.constant 48 : index
    %214 = vector.load %arg16[%c0_330, %c0_331, %c1_332, %c48_333] : memref<2x10x10x64xf32, #tpu.memory_space<vmem>>, vector<2x2x2x16xf32>
    %c0_334 = arith.constant 0 : index
    %c1_335 = arith.constant 1 : index
    %c0_336 = arith.constant 0 : index
    %c16_337 = arith.constant 16 : index
    %215 = vector.load %arg16[%c0_334, %c1_335, %c0_336, %c16_337] : memref<2x10x10x64xf32, #tpu.memory_space<vmem>>, vector<2x2x2x16xf32>
    %c0_338 = arith.constant 0 : index
    %c1_339 = arith.constant 1 : index
    %c1_340 = arith.constant 1 : index
    %c0_341 = arith.constant 0 : index
    %216 = vector.load %arg16[%c0_338, %c1_339, %c1_340, %c0_341] : memref<2x10x10x64xf32, #tpu.memory_space<vmem>>, vector<2x2x2x16xf32>
    %c0_342 = arith.constant 0 : index
    %c1_343 = arith.constant 1 : index
    %c1_344 = arith.constant 1 : index
    %c16_345 = arith.constant 16 : index
    %217 = vector.load %arg16[%c0_342, %c1_343, %c1_344, %c16_345] : memref<2x10x10x64xf32, #tpu.memory_space<vmem>>, vector<2x2x2x16xf32>
    %c0_346 = arith.constant 0 : index
    %c1_347 = arith.constant 1 : index
    %c0_348 = arith.constant 0 : index
    %c48_349 = arith.constant 48 : index
    %218 = vector.load %arg16[%c0_346, %c1_347, %c0_348, %c48_349] : memref<2x10x10x64xf32, #tpu.memory_space<vmem>>, vector<2x2x2x16xf32>
    %c0_350 = arith.constant 0 : index
    %c1_351 = arith.constant 1 : index
    %c1_352 = arith.constant 1 : index
    %c32_353 = arith.constant 32 : index
    %219 = vector.load %arg16[%c0_350, %c1_351, %c1_352, %c32_353] : memref<2x10x10x64xf32, #tpu.memory_space<vmem>>, vector<2x2x2x16xf32>
    %c0_354 = arith.constant 0 : index
    %c1_355 = arith.constant 1 : index
    %c1_356 = arith.constant 1 : index
    %c48_357 = arith.constant 48 : index
    %220 = vector.load %arg16[%c0_354, %c1_355, %c1_356, %c48_357] : memref<2x10x10x64xf32, #tpu.memory_space<vmem>>, vector<2x2x2x16xf32>
    %221 = tpu.concatenate %212, %213, %214, %215, %216, %217, %218, %219, %220 in 3 : vector<2x2x2x16xf32>, vector<2x2x2x16xf32>, vector<2x2x2x16xf32>, vector<2x2x2x16xf32>, vector<2x2x2x16xf32>, vector<2x2x2x16xf32>, vector<2x2x2x16xf32>, vector<2x2x2x16xf32>, vector<2x2x2x16xf32> -> vector<2x2x2x144xf32>
    %222 = vector.shape_cast %221 : vector<2x2x2x144xf32> to vector<8x144xf32>
    %cst_358 = arith.constant dense<0.000000e+00> : vector<8x32xf32>
    %223 = tpu.matmul %222, %188, %cst_358 {dimension_numbers = #tpu.dot_dimension_numbers<[1], [0], [0], [1], [0, 0, 1, 1], [], []>} : vector<8x144xf32>, vector<144x32xf32>, vector<8x32xf32> -> vector<8x32xf32>
    %cst_359 = arith.constant dense<0.000000e+00> : vector<32xf32>
    %224 = vector.multi_reduction <add>, %223, %cst_359 [0] : vector<8x32xf32> to vector<32xf32>
    %225 = vector.shape_cast %224 : vector<32xf32> to vector<1x32xf32>
    %cst_360 = arith.constant 8.000000e+00 : f32
    %226 = vector.broadcast %cst_360 : f32 to vector<1x32xf32>
    %227 = arith.divf %225, %226 : vector<1x32xf32>
    %228 = vector.broadcast %227 : vector<1x32xf32> to vector<8x32xf32>
    %229 = arith.subf %223, %228 : vector<8x32xf32>
    %230 = arith.mulf %229, %229 : vector<8x32xf32>
    %cst_361 = arith.constant dense<0.000000e+00> : vector<32xf32>
    %231 = vector.multi_reduction <add>, %230, %cst_361 [0] : vector<8x32xf32> to vector<32xf32>
    %232 = vector.shape_cast %231 : vector<32xf32> to vector<1x32xf32>
    %cst_362 = arith.constant 8.000000e+00 : f32
    %233 = vector.broadcast %cst_362 : f32 to vector<1x32xf32>
    %234 = arith.divf %232, %233 : vector<1x32xf32>
    %235 = vector.broadcast %227 : vector<1x32xf32> to vector<8x32xf32>
    %236 = arith.subf %223, %235 : vector<8x32xf32>
    %cst_363 = arith.constant 9.99999974E-6 : f32
    %237 = vector.broadcast %cst_363 : f32 to vector<1x32xf32>
    %238 = arith.addf %234, %237 : vector<1x32xf32>
    %239 = math.rsqrt %238 : vector<1x32xf32>
    %240 = vector.broadcast %239 : vector<1x32xf32> to vector<8x32xf32>
    %241 = arith.mulf %236, %240 : vector<8x32xf32>
    %242 = vector.broadcast %189 : vector<1x32xf32> to vector<8x32xf32>
    %243 = arith.mulf %241, %242 : vector<8x32xf32>
    %244 = vector.broadcast %190 : vector<1x32xf32> to vector<8x32xf32>
    %245 = arith.addf %243, %244 : vector<8x32xf32>
    %cst_364 = arith.constant 2.000000e-01 : f32
    %246 = vector.broadcast %cst_364 : f32 to vector<8x32xf32>
    %247 = arith.mulf %246, %245 : vector<8x32xf32>
    %248 = arith.maximumf %245, %247 : vector<8x32xf32>
    %c0_365 = arith.constant 0 : index
    %c0_366 = arith.constant 0 : index
    %249 = vector.load %arg14[%c0_365, %c0_366] : memref<4x32xf32, #tpu.memory_space<vmem>>, vector<4x32xf32>
    %250 = vector.shape_cast %248 : vector<8x32xf32> to vector<2x4x32xf32>
    %251 = vector.shape_cast %249 : vector<4x32xf32> to vector<1x4x32xf32>
    %252 = vector.broadcast %251 : vector<1x4x32xf32> to vector<2x4x32xf32>
    %253 = arith.mulf %250, %252 : vector<2x4x32xf32>
    %cst_367 = arith.constant dense<0.000000e+00> : vector<2x4xf32>
    %254 = vector.multi_reduction <add>, %253, %cst_367 [2] : vector<2x4x32xf32> to vector<2x4xf32>
    %255 = vector.shape_cast %254 : vector<2x4xf32> to vector<2x4x1xf32>
    %cst_368 = arith.constant dense<0.000000e+00> : vector<2x1xf32>
    %256 = vector.multi_reduction <add>, %255, %cst_368 [1] : vector<2x4x1xf32> to vector<2x1xf32>
    %c0_369 = arith.constant 0 : index
    %c0_370 = arith.constant 0 : index
    %257 = vector.load %arg15[%c0_369, %c0_370] : memref<2x1xf32, #tpu.memory_space<vmem>>, vector<2x1xf32>
    tpu.vector_store %arg15[%c0_369, %c0_370], %256 {strides = array<i32>} : memref<2x1xf32, #tpu.memory_space<vmem>>, vector<2x1xf32>,
    return
  }
}

</mosaic_0001>

<llo_original>
// kernel: tpu_custom_call.1
$region0: #{tpu_custom_call.1}
  #allocation0 [shape = 'u32[]', space=smem, size = 0x4, offset = 0x4, fixed_abs, tag = 'smem constant byte address 0x4 - core index']
  #allocation1 [shape = 'u32[72,128]{1,0:T(1,128)}', space=vmem, size = 0x9000, scoped, tag = 'internal scratch']
  #allocation2 [shape = 'f32[2,10,10,64]{3,2,1,0:T(8,128)}', space=vmem, size = 0x28000, scoped, tag = 'scratch operand']
  #allocation3 [shape = 'f32[128,16]{1,0:T(8,128)}', space=vmem, size = 0x10000, scoped, tag = 'scratch operand']
  %s0 = inlined_call_operand.vmem [shape: f32[128,12], index: 0, kind: input, shape index: {}]
  %s1 = inlined_call_operand.vmem [shape: f32[27,8], index: 1, kind: input, shape index: {}]
  %s2 = inlined_call_operand.vmem [shape: f32[72,8], index: 2, kind: input, shape index: {}]
  %s3 = inlined_call_operand.vmem [shape: f32[1,8], index: 3, kind: input, shape index: {}]
  %s4 = inlined_call_operand.vmem [shape: f32[1,8], index: 4, kind: input, shape index: {}]
  %s5 = inlined_call_operand.vmem [shape: f32[72,8], index: 5, kind: input, shape index: {}]
  %s6 = inlined_call_operand.vmem [shape: f32[1,8], index: 6, kind: input, shape index: {}]
  %s7 = inlined_call_operand.vmem [shape: f32[1,8], index: 7, kind: input, shape index: {}]
  %s8 = inlined_call_operand.vmem [shape: f32[72,16], index: 8, kind: input, shape index: {}]
  %s9 = inlined_call_operand.vmem [shape: f32[1,16], index: 9, kind: input, shape index: {}]
  %s10 = inlined_call_operand.vmem [shape: f32[1,16], index: 10, kind: input, shape index: {}]
  %s11 = inlined_call_operand.vmem [shape: f32[144,32], index: 11, kind: input, shape index: {}]
  %s12 = inlined_call_operand.vmem [shape: f32[1,32], index: 12, kind: input, shape index: {}]
  %s13 = inlined_call_operand.vmem [shape: f32[1,32], index: 13, kind: input, shape index: {}]
  %s14 = inlined_call_operand.vmem [shape: f32[4,32], index: 14, kind: input, shape index: {}]
  %s15 = inlined_call_operand.vmem [shape: f32[2,1], index: 15, kind: output, shape index: {}]
  %s16 = sld [smem:[#allocation0]]
  $region70: #{tpu_custom_call.1} parent=0
    _
  %s18 = ssub.s32 1, %s16
  %s19 = scalar_select 0, %s18, %s16
  // Predicated region
  $region2: #{tpu_custom_call.1} parent=0 // pred_check
    _
  $region3: #{tpu_custom_call.1} parent=0 // pred_check_branch
    %21 = sbr.rel (0) target = $region5
  $region4: #{tpu_custom_call.1} parent=0 // pred_region
    _
  $region5: #{tpu_custom_call.1} parent=0 // pred_fallthru
    _
  // Predicated region
  $region6: #{tpu_custom_call.1} parent=0 // pred_check
    _
  $region7: #{tpu_custom_call.1} parent=0 // pred_check_branch
    %23 = sbr.rel (0) target = $region9
  $region8: #{tpu_custom_call.1} parent=0 // pred_region
    _
  $region9: #{tpu_custom_call.1} parent=0 // pred_fallthru
    _
  // Predicated region
  $region10: #{tpu_custom_call.1} parent=0 // pred_check
    _
  $region11: #{tpu_custom_call.1} parent=0 // pred_check_branch
    %25 = sbr.rel (0) target = $region13
  $region12: #{tpu_custom_call.1} parent=0 // pred_region
    _
  $region13: #{tpu_custom_call.1} parent=0 // pred_fallthru
    _
  // Predicated region
  $region14: #{tpu_custom_call.1} parent=0 // pred_check
    _
  $region15: #{tpu_custom_call.1} parent=0 // pred_check_branch
    %27 = sbr.rel (0) target = $region17
  $region16: #{tpu_custom_call.1} parent=0 // pred_region
    _
  $region17: #{tpu_custom_call.1} parent=0 // pred_fallthru
    _
  // Predicated region
  $region18: #{tpu_custom_call.1} parent=0 // pred_check
    _
  $region19: #{tpu_custom_call.1} parent=0 // pred_check_branch
    %29 = sbr.rel (0) target = $region21
  $region20: #{tpu_custom_call.1} parent=0 // pred_region
    _
  $region21: #{tpu_custom_call.1} parent=0 // pred_fallthru
    _
  // Predicated region
  $region22: #{tpu_custom_call.1} parent=0 // pred_check
    _
  $region23: #{tpu_custom_call.1} parent=0 // pred_check_branch
    %31 = sbr.rel (0) target = $region25
  $region24: #{tpu_custom_call.1} parent=0 // pred_region
    _
  $region25: #{tpu_custom_call.1} parent=0 // pred_fallthru
    _
  // Predicated region
  $region26: #{tpu_custom_call.1} parent=0 // pred_check
    _
  $region27: #{tpu_custom_call.1} parent=0 // pred_check_branch
    %33 = sbr.rel (0) target = $region29
  $region28: #{tpu_custom_call.1} parent=0 // pred_region
    _
  $region29: #{tpu_custom_call.1} parent=0 // pred_fallthru
    _
  // Predicated region
  $region30: #{tpu_custom_call.1} parent=0 // pred_check
    _
  $region31: #{tpu_custom_call.1} parent=0 // pred_check_branch
    %35 = sbr.rel (0) target = $region33
  $region32: #{tpu_custom_call.1} parent=0 // pred_region
    _
  $region33: #{tpu_custom_call.1} parent=0 // pred_fallthru
    _
  // Predicated region
  $region34: #{tpu_custom_call.1} parent=0 // pred_check
    _
  $region35: #{tpu_custom_call.1} parent=0 // pred_check_branch
    %37 = sbr.rel (0) target = $region37
  $region36: #{tpu_custom_call.1} parent=0 // pred_region
    _
  $region37: #{tpu_custom_call.1} parent=0 // pred_fallthru
    _
  // Predicated region
  $region38: #{tpu_custom_call.1} parent=0 // pred_check
    _
  $region39: #{tpu_custom_call.1} parent=0 // pred_check_branch
    %39 = sbr.rel (0) target = $region41
  $region40: #{tpu_custom_call.1} parent=0 // pred_region
    _
  $region41: #{tpu_custom_call.1} parent=0 // pred_fallthru
    _
  // Predicated region
  $region42: #{tpu_custom_call.1} parent=0 // pred_check
    _
  $region43: #{tpu_custom_call.1} parent=0 // pred_check_branch
    %41 = sbr.rel (0) target = $region45
  $region44: #{tpu_custom_call.1} parent=0 // pred_region
    _
  $region45: #{tpu_custom_call.1} parent=0 // pred_fallthru
    _
  // Predicated region
  $region46: #{tpu_custom_call.1} parent=0 // pred_check
    _
  $region47: #{tpu_custom_call.1} parent=0 // pred_check_branch
    %43 = sbr.rel (0) target = $region49
  $region48: #{tpu_custom_call.1} parent=0 // pred_region
    _
  $region49: #{tpu_custom_call.1} parent=0 // pred_fallthru
    _
  // Predicated region
  $region50: #{tpu_custom_call.1} parent=0 // pred_check
    _
  $region51: #{tpu_custom_call.1} parent=0 // pred_check_branch
    %45 = sbr.rel (0) target = $region53
  $region52: #{tpu_custom_call.1} parent=0 // pred_region
    _
  $region53: #{tpu_custom_call.1} parent=0 // pred_fallthru
    _
  // Predicated region
  $region54: #{tpu_custom_call.1} parent=0 // pred_check
    _
  $region55: #{tpu_custom_call.1} parent=0 // pred_check_branch
    %47 = sbr.rel (0) target = $region57
  $region56: #{tpu_custom_call.1} parent=0 // pred_region
    _
  $region57: #{tpu_custom_call.1} parent=0 // pred_fallthru
    _
  // Predicated region
  $region58: #{tpu_custom_call.1} parent=0 // pred_check
    _
  $region59: #{tpu_custom_call.1} parent=0 // pred_check_branch
    %49 = sbr.rel (0) target = $region61
  $region60: #{tpu_custom_call.1} parent=0 // pred_region
    _
  $region61: #{tpu_custom_call.1} parent=0 // pred_fallthru
    _
  %v50 = vld [vmem:[%s0] sm:$0xff]
  %v51 = vld [vmem:[%s0 + $0x8] sm:$0xff]
  %v52 = vld [vmem:[%s0 + $0x10] sm:$0xff]
  %v53 = vld [vmem:[%s0 + $0x18] sm:$0xff]
  %v54 = vld [vmem:[%s0 + $0x20] sm:$0xff]
  %v55 = vld [vmem:[%s0 + $0x28] sm:$0xff]
  %v56 = vld [vmem:[%s0 + $0x30] sm:$0xff]
  %v57 = vld [vmem:[%s0 + $0x38] sm:$0xff]
  %v58 = vld [vmem:[%s0 + $0x40] sm:$0xff]
  %v59 = vld [vmem:[%s0 + $0x48] sm:$0xff]
  %v60 = vld [vmem:[%s0 + $0x50] sm:$0xff]
  %v61 = vld [vmem:[%s0 + $0x58] sm:$0xff]
  %v62 = vld [vmem:[%s0 + $0x60] sm:$0xff]
  %v63 = vld [vmem:[%s0 + $0x68] sm:$0xff]
  %v64 = vld [vmem:[%s0 + $0x70] sm:$0xff]
  %v65 = vld [vmem:[%s0 + $0x78] sm:$0xff]
  %v66 = vld [vmem:[%s1] sm:$0xff]
  %v67 = vld [vmem:[%s1 + $0x8] sm:$0xff]
  %v68 = vld [vmem:[%s1 + $0x10] sm:$0xff]
  %v69 = vld [vmem:[%s1 + $0x18] sm:$0x7]
  %vm70 = vcmask 97280
  %71 = vst.msk [vmem:[#allocation2] sm:$0xff] %vm70, 0.0
  %vm72 = vcmask 91136
  %73 = vst.msk [vmem:[#allocation2 + $0x8] sm:$0x3] %vm72, 0.0
  %74 = vst.msk [vmem:[#allocation2 + $0xa0] sm:$0xff] %vm70, 0.0
  %75 = vst.msk [vmem:[#allocation2 + $0xa8] sm:$0x3] %vm72, 0.0
  %s76 = scalar_lea.vmem [#allocation2], 144
  %77 = vst.msk [vmem:[%s76] sm:$0xff] %vm70, 0.0
  %78 = vst.msk [vmem:[%s76 + $0x8] sm:$0x3] %vm72, 0.0
  %79 = vst.msk [vmem:[%s76 + $0xa0] sm:$0xff] %vm70, 0.0
  %80 = vst.msk [vmem:[%s76 + $0xa8] sm:$0x3] %vm72, 0.0
  %vm81 = vcmask 90112
  %82 = vst.msk [vmem:[#allocation2] sm:$0x1] %vm81, 0.0
  %83 = vst.msk [vmem:[#allocation2 + $0x10] sm:$0x1] %vm81, 0.0
  %84 = vst.msk [vmem:[#allocation2 + $0x20] sm:$0x1] %vm81, 0.0
  %85 = vst.msk [vmem:[#allocation2 + $0x30] sm:$0x1] %vm81, 0.0
  %86 = vst.msk [vmem:[#allocation2 + $0x40] sm:$0x1] %vm81, 0.0
  %87 = vst.msk [vmem:[#allocation2 + $0x50] sm:$0x1] %vm81, 0.0
  %88 = vst.msk [vmem:[#allocation2 + $0x60] sm:$0x1] %vm81, 0.0
  %89 = vst.msk [vmem:[#allocation2 + $0x70] sm:$0x1] %vm81, 0.0
  %90 = vst.msk [vmem:[#allocation2 + $0x80] sm:$0x1] %vm81, 0.0
  %91 = vst.msk [vmem:[#allocation2 + $0x90] sm:$0x1] %vm81, 0.0
  %92 = vst.msk [vmem:[#allocation2 + $0xa0] sm:$0x1] %vm81, 0.0
  %93 = vst.msk [vmem:[#allocation2 + $0xb0] sm:$0x1] %vm81, 0.0
  %94 = vst.msk [vmem:[#allocation2 + $0xc0] sm:$0x1] %vm81, 0.0
  %95 = vst.msk [vmem:[#allocation2 + $0xd0] sm:$0x1] %vm81, 0.0
  %96 = vst.msk [vmem:[#allocation2 + $0xe0] sm:$0x1] %vm81, 0.0
  %97 = vst.msk [vmem:[#allocation2 + $0xf0] sm:$0x1] %vm81, 0.0
  %98 = vst.msk [vmem:[#allocation2 + $0x100] sm:$0x1] %vm81, 0.0
  %99 = vst.msk [vmem:[#allocation2 + $0x110] sm:$0x1] %vm81, 0.0
  %100 = vst.msk [vmem:[#allocation2 + $0x120] sm:$0x1] %vm81, 0.0
  %101 = vst.msk [vmem:[#allocation2 + $0x130] sm:$0x1] %vm81, 0.0
  %102 = vst.msk [vmem:[#allocation2 + $0x9] sm:$0x1] %vm81, 0.0
  %103 = vst.msk [vmem:[#allocation2 + $0x19] sm:$0x1] %vm81, 0.0
  %104 = vst.msk [vmem:[#allocation2 + $0x29] sm:$0x1] %vm81, 0.0
  %105 = vst.msk [vmem:[#allocation2 + $0x39] sm:$0x1] %vm81, 0.0
  %106 = vst.msk [vmem:[#allocation2 + $0x49] sm:$0x1] %vm81, 0.0
  %107 = vst.msk [vmem:[#allocation2 + $0x59] sm:$0x1] %vm81, 0.0
  %108 = vst.msk [vmem:[#allocation2 + $0x69] sm:$0x1] %vm81, 0.0
  %109 = vst.msk [vmem:[#allocation2 + $0x79] sm:$0x1] %vm81, 0.0
  %110 = vst.msk [vmem:[#allocation2 + $0x89] sm:$0x1] %vm81, 0.0
  %111 = vst.msk [vmem:[#allocation2 + $0x99] sm:$0x1] %vm81, 0.0
  %112 = vst.msk [vmem:[#allocation2 + $0xa9] sm:$0x1] %vm81, 0.0
  %113 = vst.msk [vmem:[#allocation2 + $0xb9] sm:$0x1] %vm81, 0.0
  %114 = vst.msk [vmem:[#allocation2 + $0xc9] sm:$0x1] %vm81, 0.0
  %115 = vst.msk [vmem:[#allocation2 + $0xd9] sm:$0x1] %vm81, 0.0
  %116 = vst.msk [vmem:[#allocation2 + $0xe9] sm:$0x1] %vm81, 0.0
  %117 = vst.msk [vmem:[#allocation2 + $0xf9] sm:$0x1] %vm81, 0.0
  %118 = vst.msk [vmem:[#allocation2 + $0x109] sm:$0x1] %vm81, 0.0
  %119 = vst.msk [vmem:[#allocation2 + $0x119] sm:$0x1] %vm81, 0.0
  %120 = vst.msk [vmem:[#allocation2 + $0x129] sm:$0x1] %vm81, 0.0
  %121 = vst.msk [vmem:[#allocation2 + $0x139] sm:$0x1] %vm81, 0.0
  %s122 = scalar_lea.vmem [#allocation2], 16
  %123 = vst.msk [vmem:[%s122 + $0x1] sm:$0xff] %vm70, %v50
  %124 = vst.msk [vmem:[%s122 + $0x11] sm:$0xff] %vm70, %v51
  %125 = vst.msk [vmem:[%s122 + $0x21] sm:$0xff] %vm70, %v52
  %126 = vst.msk [vmem:[%s122 + $0x31] sm:$0xff] %vm70, %v53
  %127 = vst.msk [vmem:[%s122 + $0x41] sm:$0xff] %vm70, %v54
  %128 = vst.msk [vmem:[%s122 + $0x51] sm:$0xff] %vm70, %v55
  %129 = vst.msk [vmem:[%s122 + $0x61] sm:$0xff] %vm70, %v56
  %130 = vst.msk [vmem:[%s122 + $0x71] sm:$0xff] %vm70, %v57
  %131 = vst.msk [vmem:[%s122 + $0xa1] sm:$0xff] %vm70, %v58
  %132 = vst.msk [vmem:[%s122 + $0xb1] sm:$0xff] %vm70, %v59
  %133 = vst.msk [vmem:[%s122 + $0xc1] sm:$0xff] %vm70, %v60
  %134 = vst.msk [vmem:[%s122 + $0xd1] sm:$0xff] %vm70, %v61
  %135 = vst.msk [vmem:[%s122 + $0xe1] sm:$0xff] %vm70, %v62
  %136 = vst.msk [vmem:[%s122 + $0xf1] sm:$0xff] %vm70, %v63
  %137 = vst.msk [vmem:[%s122 + $0x101] sm:$0xff] %vm70, %v64
  %138 = vst.msk [vmem:[%s122 + $0x111] sm:$0xff] %vm70, %v65
  %v139 = vld [vmem:[#allocation2] sm:$0xff]
  %v140 = vld [vmem:[#allocation2 + $0x10] sm:$0xff]
  %v141 = vld [vmem:[#allocation2 + $0x20] sm:$0xff]
  %v142 = vld [vmem:[#allocation2 + $0x30] sm:$0xff]
  %v143 = vld [vmem:[#allocation2 + $0x40] sm:$0xff]
  %v144 = vld [vmem:[#allocation2 + $0x50] sm:$0xff]
  %v145 = vld [vmem:[#allocation2 + $0x60] sm:$0xff]
  %v146 = vld [vmem:[#allocation2 + $0x70] sm:$0xff]
  %v147 = vld [vmem:[#allocation2 + $0xa0] sm:$0xff]
  %v148 = vld [vmem:[#allocation2 + $0xb0] sm:$0xff]
  %v149 = vld [vmem:[#allocation2 + $0xc0] sm:$0xff]
  %v150 = vld [vmem:[#allocation2 + $0xd0] sm:$0xff]
  %v151 = vld [vmem:[#allocation2 + $0xe0] sm:$0xff]
  %v152 = vld [vmem:[#allocation2 + $0xf0] sm:$0xff]
  %v153 = vld [vmem:[#allocation2 + $0x100] sm:$0xff]
  %v154 = vld [vmem:[#allocation2 + $0x110] sm:$0xff]
  %v155 = vld [vmem:[#allocation2 + $0x1] sm:$0xff]
  %v156 = vld [vmem:[#allocation2 + $0x11] sm:$0xff]
  %v157 = vld [vmem:[#allocation2 + $0x21] sm:$0xff]
  %v158 = vld [vmem:[#allocation2 + $0x31] sm:$0xff]
  %v159 = vld [vmem:[#allocation2 + $0x41] sm:$0xff]
  %v160 = vld [vmem:[#allocation2 + $0x51] sm:$0xff]
  %v161 = vld [vmem:[#allocation2 + $0x61] sm:$0xff]
  %v162 = vld [vmem:[#allocation2 + $0x71] sm:$0xff]
  %v163 = vld [vmem:[#allocation2 + $0xa1] sm:$0xff]
  %v164 = vld [vmem:[#allocation2 + $0xb1] sm:$0xff]
  %v165 = vld [vmem:[#allocation2 + $0xc1] sm:$0xff]
  %v166 = vld [vmem:[#allocation2 + $0xd1] sm:$0xff]
  %v167 = vld [vmem:[#allocation2 + $0xe1] sm:$0xff]
  %v168 = vld [vmem:[#allocation2 + $0xf1] sm:$0xff]
  %v169 = vld [vmem:[#allocation2 + $0x101] sm:$0xff]
  %v170 = vld [vmem:[#allocation2 + $0x111] sm:$0xff]
  %v171 = vld [vmem:[%s122] sm:$0xff]
  %v172 = vld [vmem:[%s122 + $0x10] sm:$0xff]
  %v173 = vld [vmem:[%s122 + $0x20] sm:$0xff]
  %v174 = vld [vmem:[%s122 + $0x30] sm:$0xff]
  %v175 = vld [vmem:[%s122 + $0x40] sm:$0xff]
  %v176 = vld [vmem:[%s122 + $0x50] sm:$0xff]
  %v177 = vld [vmem:[%s122 + $0x60] sm:$0xff]
  %v178 = vld [vmem:[%s122 + $0x70] sm:$0xff]
  %v179 = vld [vmem:[%s122 + $0xa0] sm:$0xff]
  %v180 = vld [vmem:[%s122 + $0xb0] sm:$0xff]
  %v181 = vld [vmem:[%s122 + $0xc0] sm:$0xff]
  %v182 = vld [vmem:[%s122 + $0xd0] sm:$0xff]
  %v183 = vld [vmem:[%s122 + $0xe0] sm:$0xff]
  %v184 = vld [vmem:[%s122 + $0xf0] sm:$0xff]
  %v185 = vld [vmem:[%s122 + $0x100] sm:$0xff]
  %v186 = vld [vmem:[%s122 + $0x110] sm:$0xff]
  %v187 = vld [vmem:[%s122 + $0x1] sm:$0xff]
  %v188 = vld [vmem:[%s122 + $0x11] sm:$0xff]
  %v189 = vld [vmem:[%s122 + $0x21] sm:$0xff]
  %v190 = vld [vmem:[%s122 + $0x31] sm:$0xff]
  %v191 = vld [vmem:[%s122 + $0x41] sm:$0xff]
  %v192 = vld [vmem:[%s122 + $0x51] sm:$0xff]
  %v193 = vld [vmem:[%s122 + $0x61] sm:$0xff]
  %v194 = vld [vmem:[%s122 + $0x71] sm:$0xff]
  %v195 = vld [vmem:[%s122 + $0xa1] sm:$0xff]
  %v196 = vld [vmem:[%s122 + $0xb1] sm:$0xff]
  %v197 = vld [vmem:[%s122 + $0xc1] sm:$0xff]
  %v198 = vld [vmem:[%s122 + $0xd1] sm:$0xff]
  %v199 = vld [vmem:[%s122 + $0xe1] sm:$0xff]
  %v200 = vld [vmem:[%s122 + $0xf1] sm:$0xff]
  %v201 = vld [vmem:[%s122 + $0x101] sm:$0xff]
  %v202 = vld [vmem:[%s122 + $0x111] sm:$0xff]
  %219 = vrot.lane.b32.xlu0 %v139, 119
  %v220 = vpop.permute.xlu0 %219
  %221 = vrot.lane.b32.xlu0 %v140, 119
  %v222 = vpop.permute.xlu0 %221
  %223 = vrot.lane.b32.xlu0 %v141, 119
  %v224 = vpop.permute.xlu0 %223
  %225 = vrot.lane.b32.xlu0 %v142, 119
  %v226 = vpop.permute.xlu0 %225
  %227 = vrot.lane.b32.xlu0 %v143, 119
  %v228 = vpop.permute.xlu0 %227
  %229 = vrot.lane.b32.xlu0 %v144, 119
  %v230 = vpop.permute.xlu0 %229
  %231 = vrot.lane.b32.xlu0 %v145, 119
  %v232 = vpop.permute.xlu0 %231
  %233 = vrot.lane.b32.xlu0 %v146, 119
  %v234 = vpop.permute.xlu0 %233
  %235 = vrot.lane.b32.xlu0 %v147, 119
  %v236 = vpop.permute.xlu0 %235
  %237 = vrot.lane.b32.xlu0 %v148, 119
  %v238 = vpop.permute.xlu0 %237
  %239 = vrot.lane.b32.xlu0 %v149, 119
  %v240 = vpop.permute.xlu0 %239
  %241 = vrot.lane.b32.xlu0 %v150, 119
  %v242 = vpop.permute.xlu0 %241
  %243 = vrot.lane.b32.xlu0 %v151, 119
  %v244 = vpop.permute.xlu0 %243
  %245 = vrot.lane.b32.xlu0 %v152, 119
  %v246 = vpop.permute.xlu0 %245
  %247 = vrot.lane.b32.xlu0 %v153, 119
  %v248 = vpop.permute.xlu0 %247
  %249 = vrot.lane.b32.xlu0 %v154, 119
  %v250 = vpop.permute.xlu0 %249
  %283 = vrot.lane.b32.xlu0 %v155, 125
  %v284 = vpop.permute.xlu0 %283
  %285 = vrot.lane.b32.xlu0 %v156, 125
  %v286 = vpop.permute.xlu0 %285
  %287 = vrot.lane.b32.xlu0 %v157, 125
  %v288 = vpop.permute.xlu0 %287
  %289 = vrot.lane.b32.xlu0 %v158, 125
  %v290 = vpop.permute.xlu0 %289
  %291 = vrot.lane.b32.xlu0 %v159, 125
  %v292 = vpop.permute.xlu0 %291
  %293 = vrot.lane.b32.xlu0 %v160, 125
  %v294 = vpop.permute.xlu0 %293
  %295 = vrot.lane.b32.xlu0 %v161, 125
  %v296 = vpop.permute.xlu0 %295
  %297 = vrot.lane.b32.xlu0 %v162, 125
  %v298 = vpop.permute.xlu0 %297
  %299 = vrot.lane.b32.xlu0 %v163, 125
  %v300 = vpop.permute.xlu0 %299
  %301 = vrot.lane.b32.xlu0 %v164, 125
  %v302 = vpop.permute.xlu0 %301
  %303 = vrot.lane.b32.xlu0 %v165, 125
  %v304 = vpop.permute.xlu0 %303
  %305 = vrot.lane.b32.xlu0 %v166, 125
  %v306 = vpop.permute.xlu0 %305
  %307 = vrot.lane.b32.xlu0 %v167, 125
  %v308 = vpop.permute.xlu0 %307
  %309 = vrot.lane.b32.xlu0 %v168, 125
  %v310 = vpop.permute.xlu0 %309
  %311 = vrot.lane.b32.xlu0 %v169, 125
  %v312 = vpop.permute.xlu0 %311
  %313 = vrot.lane.b32.xlu0 %v170, 125
  %v314 = vpop.permute.xlu0 %313
  %347 = vrot.lane.b32.xlu0 %v171, 6
  %v348 = vpop.permute.xlu0 %347
  %349 = vrot.lane.b32.xlu0 %v172, 6
  %v350 = vpop.permute.xlu0 %349
  %351 = vrot.lane.b32.xlu0 %v173, 6
  %v352 = vpop.permute.xlu0 %351
  %353 = vrot.lane.b32.xlu0 %v174, 6
  %v354 = vpop.permute.xlu0 %353
  %355 = vrot.lane.b32.xlu0 %v175, 6
  %v356 = vpop.permute.xlu0 %355
  %357 = vrot.lane.b32.xlu0 %v176, 6
  %v358 = vpop.permute.xlu0 %357
  %359 = vrot.lane.b32.xlu0 %v177, 6
  %v360 = vpop.permute.xlu0 %359
  %361 = vrot.lane.b32.xlu0 %v178, 6
  %v362 = vpop.permute.xlu0 %361
  %363 = vrot.lane.b32.xlu0 %v179, 6
  %v364 = vpop.permute.xlu0 %363
  %365 = vrot.lane.b32.xlu0 %v180, 6
  %v366 = vpop.permute.xlu0 %365
  %367 = vrot.lane.b32.xlu0 %v181, 6
  %v368 = vpop.permute.xlu0 %367
  %369 = vrot.lane.b32.xlu0 %v182, 6
  %v370 = vpop.permute.xlu0 %369
  %371 = vrot.lane.b32.xlu0 %v183, 6
  %v372 = vpop.permute.xlu0 %371
  %373 = vrot.lane.b32.xlu0 %v184, 6
  %v374 = vpop.permute.xlu0 %373
  %375 = vrot.lane.b32.xlu0 %v185, 6
  %v376 = vpop.permute.xlu0 %375
  %377 = vrot.lane.b32.xlu0 %v186, 6
  %v378 = vpop.permute.xlu0 %377
  %411 = vrot.lane.b32.xlu0 %v187, 12
  %v412 = vpop.permute.xlu0 %411
  %413 = vrot.lane.b32.xlu0 %v188, 12
  %v414 = vpop.permute.xlu0 %413
  %415 = vrot.lane.b32.xlu0 %v189, 12
  %v416 = vpop.permute.xlu0 %415
  %417 = vrot.lane.b32.xlu0 %v190, 12
  %v418 = vpop.permute.xlu0 %417
  %419 = vrot.lane.b32.xlu0 %v191, 12
  %v420 = vpop.permute.xlu0 %419
  %421 = vrot.lane.b32.xlu0 %v192, 12
  %v422 = vpop.permute.xlu0 %421
  %423 = vrot.lane.b32.xlu0 %v193, 12
  %v424 = vpop.permute.xlu0 %423
  %425 = vrot.lane.b32.xlu0 %v194, 12
  %v426 = vpop.permute.xlu0 %425
  %427 = vrot.lane.b32.xlu0 %v195, 12
  %v428 = vpop.permute.xlu0 %427
  %429 = vrot.lane.b32.xlu0 %v196, 12
  %v430 = vpop.permute.xlu0 %429
  %431 = vrot.lane.b32.xlu0 %v197, 12
  %v432 = vpop.permute.xlu0 %431
  %433 = vrot.lane.b32.xlu0 %v198, 12
  %v434 = vpop.permute.xlu0 %433
  %435 = vrot.lane.b32.xlu0 %v199, 12
  %v436 = vpop.permute.xlu0 %435
  %437 = vrot.lane.b32.xlu0 %v200, 12
  %v438 = vpop.permute.xlu0 %437
  %439 = vrot.lane.b32.xlu0 %v201, 12
  %v440 = vpop.permute.xlu0 %439
  %441 = vrot.lane.b32.xlu0 %v202, 12
  %v442 = vpop.permute.xlu0 %441
  %459 = vrot.lane.b32.xlu0 %v171, 9
  %v460 = vpop.permute.xlu0 %459
  %461 = vrot.lane.b32.xlu0 %v172, 9
  %v462 = vpop.permute.xlu0 %461
  %463 = vrot.lane.b32.xlu0 %v173, 9
  %v464 = vpop.permute.xlu0 %463
  %465 = vrot.lane.b32.xlu0 %v174, 9
  %v466 = vpop.permute.xlu0 %465
  %467 = vrot.lane.b32.xlu0 %v175, 9
  %v468 = vpop.permute.xlu0 %467
  %469 = vrot.lane.b32.xlu0 %v176, 9
  %v470 = vpop.permute.xlu0 %469
  %471 = vrot.lane.b32.xlu0 %v177, 9
  %v472 = vpop.permute.xlu0 %471
  %473 = vrot.lane.b32.xlu0 %v178, 9
  %v474 = vpop.permute.xlu0 %473
  %475 = vrot.lane.b32.xlu0 %v179, 9
  %v476 = vpop.permute.xlu0 %475
  %477 = vrot.lane.b32.xlu0 %v180, 9
  %v478 = vpop.permute.xlu0 %477
  %479 = vrot.lane.b32.xlu0 %v181, 9
  %v480 = vpop.permute.xlu0 %479
  %481 = vrot.lane.b32.xlu0 %v182, 9
  %v482 = vpop.permute.xlu0 %481
  %483 = vrot.lane.b32.xlu0 %v183, 9
  %v484 = vpop.permute.xlu0 %483
  %485 = vrot.lane.b32.xlu0 %v184, 9
  %v486 = vpop.permute.xlu0 %485
  %487 = vrot.lane.b32.xlu0 %v185, 9
  %v488 = vpop.permute.xlu0 %487
  %489 = vrot.lane.b32.xlu0 %v186, 9
  %v490 = vpop.permute.xlu0 %489
  %507 = vrot.lane.b32.xlu0 %v187, 15
  %v508 = vpop.permute.xlu0 %507
  %509 = vrot.lane.b32.xlu0 %v188, 15
  %v510 = vpop.permute.xlu0 %509
  %511 = vrot.lane.b32.xlu0 %v189, 15
  %v512 = vpop.permute.xlu0 %511
  %513 = vrot.lane.b32.xlu0 %v190, 15
  %v514 = vpop.permute.xlu0 %513
  %515 = vrot.lane.b32.xlu0 %v191, 15
  %v516 = vpop.permute.xlu0 %515
  %517 = vrot.lane.b32.xlu0 %v192, 15
  %v518 = vpop.permute.xlu0 %517
  %519 = vrot.lane.b32.xlu0 %v193, 15
  %v520 = vpop.permute.xlu0 %519
  %521 = vrot.lane.b32.xlu0 %v194, 15
  %v522 = vpop.permute.xlu0 %521
  %523 = vrot.lane.b32.xlu0 %v195, 15
  %v524 = vpop.permute.xlu0 %523
  %525 = vrot.lane.b32.xlu0 %v196, 15
  %v526 = vpop.permute.xlu0 %525
  %527 = vrot.lane.b32.xlu0 %v197, 15
  %v528 = vpop.permute.xlu0 %527
  %529 = vrot.lane.b32.xlu0 %v198, 15
  %v530 = vpop.permute.xlu0 %529
  %531 = vrot.lane.b32.xlu0 %v199, 15
  %v532 = vpop.permute.xlu0 %531
  %533 = vrot.lane.b32.xlu0 %v200, 15
  %v534 = vpop.permute.xlu0 %533
  %535 = vrot.lane.b32.xlu0 %v201, 15
  %v536 = vpop.permute.xlu0 %535
  %537 = vrot.lane.b32.xlu0 %v202, 15
  %v538 = vpop.permute.xlu0 %537
  %vm555 = vcmask 23552
  %v556 = vsel %vm555, %v220, %v284
  %v557 = vsel %vm555, %v222, %v286
  %v558 = vsel %vm555, %v224, %v288
  %v559 = vsel %vm555, %v226, %v290
  %v560 = vsel %vm555, %v228, %v292
  %v561 = vsel %vm555, %v230, %v294
  %v562 = vsel %vm555, %v232, %v296
  %v563 = vsel %vm555, %v234, %v298
  %v564 = vsel %vm555, %v236, %v300
  %v565 = vsel %vm555, %v238, %v302
  %v566 = vsel %vm555, %v240, %v304
  %v567 = vsel %vm555, %v242, %v306
  %v568 = vsel %vm555, %v244, %v308
  %v569 = vsel %vm555, %v246, %v310
  %v570 = vsel %vm555, %v248, %v312
  %v571 = vsel %vm555, %v250, %v314
  %vm572 = vcmask 48128
  %v573 = vsel %vm572, %v556, %v284
  %v574 = vsel %vm572, %v557, %v286
  %v575 = vsel %vm572, %v558, %v288
  %v576 = vsel %vm572, %v559, %v290
  %v577 = vsel %vm572, %v560, %v292
  %v578 = vsel %vm572, %v561, %v294
  %v579 = vsel %vm572, %v562, %v296
  %v580 = vsel %vm572, %v563, %v298
  %v581 = vsel %vm572, %v564, %v300
  %v582 = vsel %vm572, %v565, %v302
  %v583 = vsel %vm572, %v566, %v304
  %v584 = vsel %vm572, %v567, %v306
  %v585 = vsel %vm572, %v568, %v308
  %v586 = vsel %vm572, %v569, %v310
  %v587 = vsel %vm572, %v570, %v312
  %v588 = vsel %vm572, %v571, %v314
  %vm589 = vcmask 72704
  %v590 = vsel %vm589, %v573, %v348
  %v591 = vsel %vm589, %v574, %v350
  %v592 = vsel %vm589, %v575, %v352
  %v593 = vsel %vm589, %v576, %v354
  %v594 = vsel %vm589, %v577, %v356
  %v595 = vsel %vm589, %v578, %v358
  %v596 = vsel %vm589, %v579, %v360
  %v597 = vsel %vm589, %v580, %v362
  %v598 = vsel %vm589, %v581, %v364
  %v599 = vsel %vm589, %v582, %v366
  %v600 = vsel %vm589, %v583, %v368
  %v601 = vsel %vm589, %v584, %v370
  %v602 = vsel %vm589, %v585, %v372
  %v603 = vsel %vm589, %v586, %v374
  %v604 = vsel %vm589, %v587, %v376
  %v605 = vsel %vm589, %v588, %v378
  %v606 = vsel %vm70, %v590, %v412
  %v607 = vsel %vm70, %v591, %v414
  %v608 = vsel %vm70, %v592, %v416
  %v609 = vsel %vm70, %v593, %v418
  %v610 = vsel %vm70, %v594, %v420
  %v611 = vsel %vm70, %v595, %v422
  %v612 = vsel %vm70, %v596, %v424
  %v613 = vsel %vm70, %v597, %v426
  %v614 = vsel %vm70, %v598, %v428
  %v615 = vsel %vm70, %v599, %v430
  %v616 = vsel %vm70, %v600, %v432
  %v617 = vsel %vm70, %v601, %v434
  %v618 = vsel %vm70, %v602, %v436
  %v619 = vsel %vm70, %v603, %v438
  %v620 = vsel %vm70, %v604, %v440
  %v621 = vsel %vm70, %v605, %v442
  %vm622 = vcmask 121856
  %v623 = vsel %vm622, %v606, %v412
  %v624 = vsel %vm622, %v607, %v414
  %v625 = vsel %vm622, %v608, %v416
  %v626 = vsel %vm622, %v609, %v418
  %v627 = vsel %vm622, %v610, %v420
  %v628 = vsel %vm622, %v611, %v422
  %v629 = vsel %vm622, %v612, %v424
  %v630 = vsel %vm622, %v613, %v426
  %v631 = vsel %vm622, %v614, %v428
  %v632 = vsel %vm622, %v615, %v430
  %v633 = vsel %vm622, %v616, %v432
  %v634 = vsel %vm622, %v617, %v434
  %v635 = vsel %vm622, %v618, %v436
  %v636 = vsel %vm622, %v619, %v438
  %v637 = vsel %vm622, %v620, %v440
  %v638 = vsel %vm622, %v621, %v442
  %vm639 = vcmask 146432
  %v640 = vsel %vm639, %v623, %v460
  %v641 = vsel %vm639, %v624, %v462
  %v642 = vsel %vm639, %v625, %v464
  %v643 = vsel %vm639, %v626, %v466
  %v644 = vsel %vm639, %v627, %v468
  %v645 = vsel %vm639, %v628, %v470
  %v646 = vsel %vm639, %v629, %v472
  %v647 = vsel %vm639, %v630, %v474
  %v648 = vsel %vm639, %v631, %v476
  %v649 = vsel %vm639, %v632, %v478
  %v650 = vsel %vm639, %v633, %v480
  %v651 = vsel %vm639, %v634, %v482
  %v652 = vsel %vm639, %v635, %v484
  %v653 = vsel %vm639, %v636, %v486
  %v654 = vsel %vm639, %v637, %v488
  %v655 = vsel %vm639, %v638, %v490
  %vm656 = vcmask 171008
  %v657 = vsel %vm656, %v640, %v508
  %v658 = vsel %vm656, %v641, %v510
  %v659 = vsel %vm656, %v642, %v512
  %v660 = vsel %vm656, %v643, %v514
  %v661 = vsel %vm656, %v644, %v516
  %v662 = vsel %vm656, %v645, %v518
  %v663 = vsel %vm656, %v646, %v520
  %v664 = vsel %vm656, %v647, %v522
  %v665 = vsel %vm656, %v648, %v524
  %v666 = vsel %vm656, %v649, %v526
  %v667 = vsel %vm656, %v650, %v528
  %v668 = vsel %vm656, %v651, %v530
  %v669 = vsel %vm656, %v652, %v532
  %v670 = vsel %vm656, %v653, %v534
  %v671 = vsel %vm656, %v654, %v536
  %v672 = vsel %vm656, %v655, %v538
  %vm673 = vcmask 195584
  %v674 = vsel %vm673, %v657, %v508
  %v675 = vsel %vm673, %v658, %v510
  %v676 = vsel %vm673, %v659, %v512
  %v677 = vsel %vm673, %v660, %v514
  %v678 = vsel %vm673, %v661, %v516
  %v679 = vsel %vm673, %v662, %v518
  %v680 = vsel %vm673, %v663, %v520
  %v681 = vsel %vm673, %v664, %v522
  %v682 = vsel %vm673, %v665, %v524
  %v683 = vsel %vm673, %v666, %v526
  %v684 = vsel %vm673, %v667, %v528
  %v685 = vsel %vm673, %v668, %v530
  %v686 = vsel %vm673, %v669, %v532
  %v687 = vsel %vm673, %v670, %v534
  %v688 = vsel %vm673, %v671, %v536
  %v689 = vsel %vm673, %v672, %v538
  %vm690 = vcmask 220160
  %v692 = vsel %vm690, %v674, 0
  %v695 = vsel %vm690, %v675, 0
  %v698 = vsel %vm690, %v676, 0
  %v701 = vsel %vm690, %v677, 0
  %v704 = vsel %vm690, %v678, 0
  %v707 = vsel %vm690, %v679, 0
  %v710 = vsel %vm690, %v680, 0
  %v713 = vsel %vm690, %v681, 0
  %v716 = vsel %vm690, %v682, 0
  %v719 = vsel %vm690, %v683, 0
  %v722 = vsel %vm690, %v684, 0
  %v725 = vsel %vm690, %v685, 0
  %v728 = vsel %vm690, %v686, 0
  %v731 = vsel %vm690, %v687, 0
  %v734 = vsel %vm690, %v688, 0
  %v737 = vsel %vm690, %v689, 0
  %vm739 = vcmask 1042432
  %v741 = vsel %vm739, %v69, 0
  %743 = vmatpush.msra.mxu0 0.0
  %744 = vmatpush.msra.mxu0 0.0
  %745 = vmatpush.msra.mxu0 0.0
  %746 = vmatpush.msra.mxu0 0.0
  %747 = vmatpush.msra.mxu0 0.0
  %748 = vmatpush.msra.mxu0 0.0
  %749 = vmatpush.msra.mxu0 0.0
  %750 = vmatpush.msra.mxu0 0.0
  %751 = vmatpush.msra.mxu0 0.0
  %752 = vmatpush.msra.mxu0 0.0
  %753 = vmatpush.msra.mxu0 0.0
  %754 = vmatpush.msra.mxu0 0.0
  %755 = vmatpush.msra.mxu0 %v741
  %756 = vmatpush.msra.mxu0 %v68
  %757 = vmatpush.msra.mxu0 %v67
  %758 = vmatpush.msra.mxu0 %v66
  %759 = vmatmul.f32.gmra.mxu0 %v692
  %v760 = vpop.f32.mrf.mxu0
  %v761 = vadd.f32 0.0, %v760
  %762 = vmatmul.f32.gmra.mxu0 %v695
  %v763 = vpop.f32.mrf.mxu0
  %v764 = vadd.f32 0.0, %v763
  %765 = vmatmul.f32.gmra.mxu0 %v698
  %v766 = vpop.f32.mrf.mxu0
  %v767 = vadd.f32 0.0, %v766
  %768 = vmatmul.f32.gmra.mxu0 %v701
  %v769 = vpop.f32.mrf.mxu0
  %v770 = vadd.f32 0.0, %v769
  %771 = vmatmul.f32.gmra.mxu0 %v704
  %v772 = vpop.f32.mrf.mxu0
  %v773 = vadd.f32 0.0, %v772
  %774 = vmatmul.f32.gmra.mxu0 %v707
  %v775 = vpop.f32.mrf.mxu0
  %v776 = vadd.f32 0.0, %v775
  %777 = vmatmul.f32.gmra.mxu0 %v710
  %v778 = vpop.f32.mrf.mxu0
  %v779 = vadd.f32 0.0, %v778
  %780 = vmatmul.f32.gmra.mxu0 %v713
  %v781 = vpop.f32.mrf.mxu0
  %v782 = vadd.f32 0.0, %v781
  %783 = vmatmul.f32.gmra.mxu0 %v716
  %v784 = vpop.f32.mrf.mxu0
  %v785 = vadd.f32 0.0, %v784
  %786 = vmatmul.f32.gmra.mxu0 %v719
  %v787 = vpop.f32.mrf.mxu0
  %v788 = vadd.f32 0.0, %v787
  %789 = vmatmul.f32.gmra.mxu0 %v722
  %v790 = vpop.f32.mrf.mxu0
  %v791 = vadd.f32 0.0, %v790
  %792 = vmatmul.f32.gmra.mxu0 %v725
  %v793 = vpop.f32.mrf.mxu0
  %v794 = vadd.f32 0.0, %v793
  %795 = vmatmul.f32.gmra.mxu0 %v728
  %v796 = vpop.f32.mrf.mxu0
  %v797 = vadd.f32 0.0, %v796
  %798 = vmatmul.f32.gmra.mxu0 %v731
  %v799 = vpop.f32.mrf.mxu0
  %v800 = vadd.f32 0.0, %v799
  %801 = vmatmul.f32.gmra.mxu0 %v734
  %v802 = vpop.f32.mrf.mxu0
  %v803 = vadd.f32 0.0, %v802
  %804 = vmatmul.f32.gmra.mxu0 %v737
  %v805 = vpop.f32.mrf.mxu0
  %v806 = vadd.f32 0.0, %v805
  %807 = vdwg.mxu0
  %v808 = vmul.f32 %v761, 0.2
  %v809 = vmul.f32 %v764, 0.2
  %v810 = vmul.f32 %v767, 0.2
  %v811 = vmul.f32 %v770, 0.2
  %v812 = vmul.f32 %v773, 0.2
  %v813 = vmul.f32 %v776, 0.2
  %v814 = vmul.f32 %v779, 0.2
  %v815 = vmul.f32 %v782, 0.2
  %v816 = vmul.f32 %v785, 0.2
  %v817 = vmul.f32 %v788, 0.2
  %v818 = vmul.f32 %v791, 0.2
  %v819 = vmul.f32 %v794, 0.2
  %v820 = vmul.f32 %v797, 0.2
  %v821 = vmul.f32 %v800, 0.2
  %v822 = vmul.f32 %v803, 0.2
  %v823 = vmul.f32 %v806, 0.2
  %v824 = vmax.f32 %v761, %v808
  %v825 = vmax.f32 %v764, %v809
  %v826 = vmax.f32 %v767, %v810
  %v827 = vmax.f32 %v770, %v811
  %v828 = vmax.f32 %v773, %v812
  %v829 = vmax.f32 %v776, %v813
  %v830 = vmax.f32 %v779, %v814
  %v831 = vmax.f32 %v782, %v815
  %v832 = vmax.f32 %v785, %v816
  %v833 = vmax.f32 %v788, %v817
  %v834 = vmax.f32 %v791, %v818
  %v835 = vmax.f32 %v794, %v819
  %v836 = vmax.f32 %v797, %v820
  %v837 = vmax.f32 %v800, %v821
  %v838 = vmax.f32 %v803, %v822
  %v839 = vmax.f32 %v806, %v823
  %v840 = vld [vmem:[%s2] sm:$0xff]
  %v841 = vld [vmem:[%s2 + $0x8] sm:$0xff]
  %v842 = vld [vmem:[%s2 + $0x10] sm:$0xff]
  %v843 = vld [vmem:[%s2 + $0x18] sm:$0xff]
  %v844 = vld [vmem:[%s2 + $0x20] sm:$0xff]
  %v845 = vld [vmem:[%s2 + $0x28] sm:$0xff]
  %v846 = vld [vmem:[%s2 + $0x30] sm:$0xff]
  %v847 = vld [vmem:[%s2 + $0x38] sm:$0xff]
  %v848 = vld [vmem:[%s2 + $0x40] sm:$0xff]
  %v849 = vld [vmem:[%s3] sm:$0x1]
  %v850 = vld [vmem:[%s4] sm:$0x1]
  %vm851 = vcmask 64512
  %852 = vst.msk [vmem:[#allocation2] sm:$0xff] %vm851, 0.0
  %vm853 = vcmask 58368
  %854 = vst.msk [vmem:[#allocation2 + $0x8] sm:$0x3] %vm853, 0.0
  %855 = vst.msk [vmem:[#allocation2 + $0xa0] sm:$0xff] %vm851, 0.0
  %856 = vst.msk [vmem:[#allocation2 + $0xa8] sm:$0x3] %vm853, 0.0
  %857 = vst.msk [vmem:[%s76] sm:$0xff] %vm851, 0.0
  %858 = vst.msk [vmem:[%s76 + $0x8] sm:$0x3] %vm853, 0.0
  %859 = vst.msk [vmem:[%s76 + $0xa0] sm:$0xff] %vm851, 0.0
  %860 = vst.msk [vmem:[%s76 + $0xa8] sm:$0x3] %vm853, 0.0
  %vm861 = vcmask 57344
  %862 = vst.msk [vmem:[#allocation2] sm:$0x1] %vm861, 0.0
  %863 = vst.msk [vmem:[#allocation2 + $0x10] sm:$0x1] %vm861, 0.0
  %864 = vst.msk [vmem:[#allocation2 + $0x20] sm:$0x1] %vm861, 0.0
  %865 = vst.msk [vmem:[#allocation2 + $0x30] sm:$0x1] %vm861, 0.0
  %866 = vst.msk [vmem:[#allocation2 + $0x40] sm:$0x1] %vm861, 0.0
  %867 = vst.msk [vmem:[#allocation2 + $0x50] sm:$0x1] %vm861, 0.0
  %868 = vst.msk [vmem:[#allocation2 + $0x60] sm:$0x1] %vm861, 0.0
  %869 = vst.msk [vmem:[#allocation2 + $0x70] sm:$0x1] %vm861, 0.0
  %870 = vst.msk [vmem:[#allocation2 + $0x80] sm:$0x1] %vm861, 0.0
  %871 = vst.msk [vmem:[#allocation2 + $0x90] sm:$0x1] %vm861, 0.0
  %872 = vst.msk [vmem:[#allocation2 + $0xa0] sm:$0x1] %vm861, 0.0
  %873 = vst.msk [vmem:[#allocation2 + $0xb0] sm:$0x1] %vm861, 0.0
  %874 = vst.msk [vmem:[#allocation2 + $0xc0] sm:$0x1] %vm861, 0.0
  %875 = vst.msk [vmem:[#allocation2 + $0xd0] sm:$0x1] %vm861, 0.0
  %876 = vst.msk [vmem:[#allocation2 + $0xe0] sm:$0x1] %vm861, 0.0
  %877 = vst.msk [vmem:[#allocation2 + $0xf0] sm:$0x1] %vm861, 0.0
  %878 = vst.msk [vmem:[#allocation2 + $0x100] sm:$0x1] %vm861, 0.0
  %879 = vst.msk [vmem:[#allocation2 + $0x110] sm:$0x1] %vm861, 0.0
  %880 = vst.msk [vmem:[#allocation2 + $0x120] sm:$0x1] %vm861, 0.0
  %881 = vst.msk [vmem:[#allocation2 + $0x130] sm:$0x1] %vm861, 0.0
  %882 = vst.msk [vmem:[#allocation2 + $0x9] sm:$0x1] %vm861, 0.0
  %883 = vst.msk [vmem:[#allocation2 + $0x19] sm:$0x1] %vm861, 0.0
  %884 = vst.msk [vmem:[#allocation2 + $0x29] sm:$0x1] %vm861, 0.0
  %885 = vst.msk [vmem:[#allocation2 + $0x39] sm:$0x1] %vm861, 0.0
  %886 = vst.msk [vmem:[#allocation2 + $0x49] sm:$0x1] %vm861, 0.0
  %887 = vst.msk [vmem:[#allocation2 + $0x59] sm:$0x1] %vm861, 0.0
  %888 = vst.msk [vmem:[#allocation2 + $0x69] sm:$0x1] %vm861, 0.0
  %889 = vst.msk [vmem:[#allocation2 + $0x79] sm:$0x1] %vm861, 0.0
  %890 = vst.msk [vmem:[#allocation2 + $0x89] sm:$0x1] %vm861, 0.0
  %891 = vst.msk [vmem:[#allocation2 + $0x99] sm:$0x1] %vm861, 0.0
  %892 = vst.msk [vmem:[#allocation2 + $0xa9] sm:$0x1] %vm861, 0.0
  %893 = vst.msk [vmem:[#allocation2 + $0xb9] sm:$0x1] %vm861, 0.0
  %894 = vst.msk [vmem:[#allocation2 + $0xc9] sm:$0x1] %vm861, 0.0
  %895 = vst.msk [vmem:[#allocation2 + $0xd9] sm:$0x1] %vm861, 0.0
  %896 = vst.msk [vmem:[#allocation2 + $0xe9] sm:$0x1] %vm861, 0.0
  %897 = vst.msk [vmem:[#allocation2 + $0xf9] sm:$0x1] %vm861, 0.0
  %898 = vst.msk [vmem:[#allocation2 + $0x109] sm:$0x1] %vm861, 0.0
  %899 = vst.msk [vmem:[#allocation2 + $0x119] sm:$0x1] %vm861, 0.0
  %900 = vst.msk [vmem:[#allocation2 + $0x129] sm:$0x1] %vm861, 0.0
  %901 = vst.msk [vmem:[#allocation2 + $0x139] sm:$0x1] %vm861, 0.0
  %902 = vst.msk [vmem:[%s122 + $0x1] sm:$0xff] %vm851, %v824
  %903 = vst.msk [vmem:[%s122 + $0x11] sm:$0xff] %vm851, %v825
  %904 = vst.msk [vmem:[%s122 + $0x21] sm:$0xff] %vm851, %v826
  %905 = vst.msk [vmem:[%s122 + $0x31] sm:$0xff] %vm851, %v827
  %906 = vst.msk [vmem:[%s122 + $0x41] sm:$0xff] %vm851, %v828
  %907 = vst.msk [vmem:[%s122 + $0x51] sm:$0xff] %vm851, %v829
  %908 = vst.msk [vmem:[%s122 + $0x61] sm:$0xff] %vm851, %v830
  %909 = vst.msk [vmem:[%s122 + $0x71] sm:$0xff] %vm851, %v831
  %910 = vst.msk [vmem:[%s122 + $0xa1] sm:$0xff] %vm851, %v832
  %911 = vst.msk [vmem:[%s122 + $0xb1] sm:$0xff] %vm851, %v833
  %912 = vst.msk [vmem:[%s122 + $0xc1] sm:$0xff] %vm851, %v834
  %913 = vst.msk [vmem:[%s122 + $0xd1] sm:$0xff] %vm851, %v835
  %914 = vst.msk [vmem:[%s122 + $0xe1] sm:$0xff] %vm851, %v836
  %915 = vst.msk [vmem:[%s122 + $0xf1] sm:$0xff] %vm851, %v837
  %916 = vst.msk [vmem:[%s122 + $0x101] sm:$0xff] %vm851, %v838
  %917 = vst.msk [vmem:[%s122 + $0x111] sm:$0xff] %vm851, %v839
  %v918 = vld [vmem:[#allocation2] sm:$0xff]
  %v919 = vld [vmem:[#allocation2 + $0x10] sm:$0xff]
  %v920 = vld [vmem:[#allocation2 + $0x20] sm:$0xff]
  %v921 = vld [vmem:[#allocation2 + $0x30] sm:$0xff]
  %v922 = vld [vmem:[#allocation2 + $0x40] sm:$0xff]
  %v923 = vld [vmem:[#allocation2 + $0x50] sm:$0xff]
  %v924 = vld [vmem:[#allocation2 + $0x60] sm:$0xff]
  %v925 = vld [vmem:[#allocation2 + $0x70] sm:$0xff]
  %v926 = vld [vmem:[#allocation2 + $0xa0] sm:$0xff]
  %v927 = vld [vmem:[#allocation2 + $0xb0] sm:$0xff]
  %v928 = vld [vmem:[#allocation2 + $0xc0] sm:$0xff]
  %v929 = vld [vmem:[#allocation2 + $0xd0] sm:$0xff]
  %v930 = vld [vmem:[#allocation2 + $0xe0] sm:$0xff]
  %v931 = vld [vmem:[#allocation2 + $0xf0] sm:$0xff]
  %v932 = vld [vmem:[#allocation2 + $0x100] sm:$0xff]
  %v933 = vld [vmem:[#allocation2 + $0x110] sm:$0xff]
  %v934 = vld [vmem:[#allocation2 + $0x1] sm:$0xff]
  %v935 = vld [vmem:[#allocation2 + $0x11] sm:$0xff]
  %v936 = vld [vmem:[#allocation2 + $0x21] sm:$0xff]
  %v937 = vld [vmem:[#allocation2 + $0x31] sm:$0xff]
  %v938 = vld [vmem:[#allocation2 + $0x41] sm:$0xff]
  %v939 = vld [vmem:[#allocation2 + $0x51] sm:$0xff]
  %v940 = vld [vmem:[#allocation2 + $0x61] sm:$0xff]
  %v941 = vld [vmem:[#allocation2 + $0x71] sm:$0xff]
  %v942 = vld [vmem:[#allocation2 + $0xa1] sm:$0xff]
  %v943 = vld [vmem:[#allocation2 + $0xb1] sm:$0xff]
  %v944 = vld [vmem:[#allocation2 + $0xc1] sm:$0xff]
  %v945 = vld [vmem:[#allocation2 + $0xd1] sm:$0xff]
  %v946 = vld [vmem:[#allocation2 + $0xe1] sm:$0xff]
  %v947 = vld [vmem:[#allocation2 + $0xf1] sm:$0xff]
  %v948 = vld [vmem:[#allocation2 + $0x101] sm:$0xff]
  %v949 = vld [vmem:[#allocation2 + $0x111] sm:$0xff]
  %v950 = vld [vmem:[#allocation2 + $0x2] sm:$0xff]
  %v951 = vld [vmem:[#allocation2 + $0x12] sm:$0xff]
  %v952 = vld [vmem:[#allocation2 + $0x22] sm:$0xff]
  %v953 = vld [vmem:[#allocation2 + $0x32] sm:$0xff]
  %v954 = vld [vmem:[#allocation2 + $0x42] sm:$0xff]
  %v955 = vld [vmem:[#allocation2 + $0x52] sm:$0xff]
  %v956 = vld [vmem:[#allocation2 + $0x62] sm:$0xff]
  %v957 = vld [vmem:[#allocation2 + $0x72] sm:$0xff]
  %v958 = vld [vmem:[#allocation2 + $0xa2] sm:$0xff]
  %v959 = vld [vmem:[#allocation2 + $0xb2] sm:$0xff]
  %v960 = vld [vmem:[#allocation2 + $0xc2] sm:$0xff]
  %v961 = vld [vmem:[#allocation2 + $0xd2] sm:$0xff]
  %v962 = vld [vmem:[#allocation2 + $0xe2] sm:$0xff]
  %v963 = vld [vmem:[#allocation2 + $0xf2] sm:$0xff]
  %v964 = vld [vmem:[#allocation2 + $0x102] sm:$0xff]
  %v965 = vld [vmem:[#allocation2 + $0x112] sm:$0xff]
  %v966 = vld [vmem:[%s122] sm:$0xff]
  %v967 = vld [vmem:[%s122 + $0x10] sm:$0xff]
  %v968 = vld [vmem:[%s122 + $0x20] sm:$0xff]
  %v969 = vld [vmem:[%s122 + $0x30] sm:$0xff]
  %v970 = vld [vmem:[%s122 + $0x40] sm:$0xff]
  %v971 = vld [vmem:[%s122 + $0x50] sm:$0xff]
  %v972 = vld [vmem:[%s122 + $0x60] sm:$0xff]
  %v973 = vld [vmem:[%s122 + $0x70] sm:$0xff]
  %v974 = vld [vmem:[%s122 + $0xa0] sm:$0xff]
  %v975 = vld [vmem:[%s122 + $0xb0] sm:$0xff]
  %v976 = vld [vmem:[%s122 + $0xc0] sm:$0xff]
  %v977 = vld [vmem:[%s122 + $0xd0] sm:$0xff]
  %v978 = vld [vmem:[%s122 + $0xe0] sm:$0xff]
  %v979 = vld [vmem:[%s122 + $0xf0] sm:$0xff]
  %v980 = vld [vmem:[%s122 + $0x100] sm:$0xff]
  %v981 = vld [vmem:[%s122 + $0x110] sm:$0xff]
  %v982 = vld [vmem:[%s122 + $0x1] sm:$0xff]
  %v983 = vld [vmem:[%s122 + $0x11] sm:$0xff]
  %v984 = vld [vmem:[%s122 + $0x21] sm:$0xff]
  %v985 = vld [vmem:[%s122 + $0x31] sm:$0xff]
  %v986 = vld [vmem:[%s122 + $0x41] sm:$0xff]
  %v987 = vld [vmem:[%s122 + $0x51] sm:$0xff]
  %v988 = vld [vmem:[%s122 + $0x61] sm:$0xff]
  %v989 = vld [vmem:[%s122 + $0x71] sm:$0xff]
  %v990 = vld [vmem:[%s122 + $0xa1] sm:$0xff]
  %v991 = vld [vmem:[%s122 + $0xb1] sm:$0xff]
  %v992 = vld [vmem:[%s122 + $0xc1] sm:$0xff]
  %v993 = vld [vmem:[%s122 + $0xd1] sm:$0xff]
  %v994 = vld [vmem:[%s122 + $0xe1] sm:$0xff]
  %v995 = vld [vmem:[%s122 + $0xf1] sm:$0xff]
  %v996 = vld [vmem:[%s122 + $0x101] sm:$0xff]
  %v997 = vld [vmem:[%s122 + $0x111] sm:$0xff]
  %v998 = vld [vmem:[%s122 + $0x2] sm:$0xff]
  %v999 = vld [vmem:[%s122 + $0x12] sm:$0xff]
  %v1000 = vld [vmem:[%s122 + $0x22] sm:$0xff]
  %v1001 = vld [vmem:[%s122 + $0x32] sm:$0xff]
  %v1002 = vld [vmem:[%s122 + $0x42] sm:$0xff]
  %v1003 = vld [vmem:[%s122 + $0x52] sm:$0xff]
  %v1004 = vld [vmem:[%s122 + $0x62] sm:$0xff]
  %v1005 = vld [vmem:[%s122 + $0x72] sm:$0xff]
  %v1006 = vld [vmem:[%s122 + $0xa2] sm:$0xff]
  %v1007 = vld [vmem:[%s122 + $0xb2] sm:$0xff]
  %v1008 = vld [vmem:[%s122 + $0xc2] sm:$0xff]
  %v1009 = vld [vmem:[%s122 + $0xd2] sm:$0xff]
  %v1010 = vld [vmem:[%s122 + $0xe2] sm:$0xff]
  %v1011 = vld [vmem:[%s122 + $0xf2] sm:$0xff]
  %v1012 = vld [vmem:[%s122 + $0x102] sm:$0xff]
  %v1013 = vld [vmem:[%s122 + $0x112] sm:$0xff]
  %s1014 = scalar_lea.vmem [#allocation2], 32
  %v1015 = vld [vmem:[%s1014] sm:$0xff]
  %v1016 = vld [vmem:[%s1014 + $0x10] sm:$0xff]
  %v1017 = vld [vmem:[%s1014 + $0x20] sm:$0xff]
  %v1018 = vld [vmem:[%s1014 + $0x30] sm:$0xff]
  %v1019 = vld [vmem:[%s1014 + $0x40] sm:$0xff]
  %v1020 = vld [vmem:[%s1014 + $0x50] sm:$0xff]
  %v1021 = vld [vmem:[%s1014 + $0x60] sm:$0xff]
  %v1022 = vld [vmem:[%s1014 + $0x70] sm:$0xff]
  %v1023 = vld [vmem:[%s1014 + $0xa0] sm:$0xff]
  %v1024 = vld [vmem:[%s1014 + $0xb0] sm:$0xff]
  %v1025 = vld [vmem:[%s1014 + $0xc0] sm:$0xff]
  %v1026 = vld [vmem:[%s1014 + $0xd0] sm:$0xff]
  %v1027 = vld [vmem:[%s1014 + $0xe0] sm:$0xff]
  %v1028 = vld [vmem:[%s1014 + $0xf0] sm:$0xff]
  %v1029 = vld [vmem:[%s1014 + $0x100] sm:$0xff]
  %v1030 = vld [vmem:[%s1014 + $0x110] sm:$0xff]
  %v1031 = vld [vmem:[%s1014 + $0x1] sm:$0xff]
  %v1032 = vld [vmem:[%s1014 + $0x11] sm:$0xff]
  %v1033 = vld [vmem:[%s1014 + $0x21] sm:$0xff]
  %v1034 = vld [vmem:[%s1014 + $0x31] sm:$0xff]
  %v1035 = vld [vmem:[%s1014 + $0x41] sm:$0xff]
  %v1036 = vld [vmem:[%s1014 + $0x51] sm:$0xff]
  %v1037 = vld [vmem:[%s1014 + $0x61] sm:$0xff]
  %v1038 = vld [vmem:[%s1014 + $0x71] sm:$0xff]
  %v1039 = vld [vmem:[%s1014 + $0xa1] sm:$0xff]
  %v1040 = vld [vmem:[%s1014 + $0xb1] sm:$0xff]
  %v1041 = vld [vmem:[%s1014 + $0xc1] sm:$0xff]
  %v1042 = vld [vmem:[%s1014 + $0xd1] sm:$0xff]
  %v1043 = vld [vmem:[%s1014 + $0xe1] sm:$0xff]
  %v1044 = vld [vmem:[%s1014 + $0xf1] sm:$0xff]
  %v1045 = vld [vmem:[%s1014 + $0x101] sm:$0xff]
  %v1046 = vld [vmem:[%s1014 + $0x111] sm:$0xff]
  %v1047 = vld [vmem:[%s1014 + $0x2] sm:$0xff]
  %v1048 = vld [vmem:[%s1014 + $0x12] sm:$0xff]
  %v1049 = vld [vmem:[%s1014 + $0x22] sm:$0xff]
  %v1050 = vld [vmem:[%s1014 + $0x32] sm:$0xff]
  %v1051 = vld [vmem:[%s1014 + $0x42] sm:$0xff]
  %v1052 = vld [vmem:[%s1014 + $0x52] sm:$0xff]
  %v1053 = vld [vmem:[%s1014 + $0x62] sm:$0xff]
  %v1054 = vld [vmem:[%s1014 + $0x72] sm:$0xff]
  %v1055 = vld [vmem:[%s1014 + $0xa2] sm:$0xff]
  %v1056 = vld [vmem:[%s1014 + $0xb2] sm:$0xff]
  %v1057 = vld [vmem:[%s1014 + $0xc2] sm:$0xff]
  %v1058 = vld [vmem:[%s1014 + $0xd2] sm:$0xff]
  %v1059 = vld [vmem:[%s1014 + $0xe2] sm:$0xff]
  %v1060 = vld [vmem:[%s1014 + $0xf2] sm:$0xff]
  %v1061 = vld [vmem:[%s1014 + $0x102] sm:$0xff]
  %v1062 = vld [vmem:[%s1014 + $0x112] sm:$0xff]
  %1079 = vrot.lane.b32.xlu0 %v934, 8
  %v1080 = vpop.permute.xlu0 %1079
  %1081 = vrot.lane.b32.xlu0 %v935, 8
  %v1082 = vpop.permute.xlu0 %1081
  %1083 = vrot.lane.b32.xlu0 %v936, 8
  %v1084 = vpop.permute.xlu0 %1083
  %1085 = vrot.lane.b32.xlu0 %v937, 8
  %v1086 = vpop.permute.xlu0 %1085
  %1087 = vrot.lane.b32.xlu0 %v938, 8
  %v1088 = vpop.permute.xlu0 %1087
  %1089 = vrot.lane.b32.xlu0 %v939, 8
  %v1090 = vpop.permute.xlu0 %1089
  %1091 = vrot.lane.b32.xlu0 %v940, 8
  %v1092 = vpop.permute.xlu0 %1091
  %1093 = vrot.lane.b32.xlu0 %v941, 8
  %v1094 = vpop.permute.xlu0 %1093
  %1095 = vrot.lane.b32.xlu0 %v942, 8
  %v1096 = vpop.permute.xlu0 %1095
  %1097 = vrot.lane.b32.xlu0 %v943, 8
  %v1098 = vpop.permute.xlu0 %1097
  %1099 = vrot.lane.b32.xlu0 %v944, 8
  %v1100 = vpop.permute.xlu0 %1099
  %1101 = vrot.lane.b32.xlu0 %v945, 8
  %v1102 = vpop.permute.xlu0 %1101
  %1103 = vrot.lane.b32.xlu0 %v946, 8
  %v1104 = vpop.permute.xlu0 %1103
  %1105 = vrot.lane.b32.xlu0 %v947, 8
  %v1106 = vpop.permute.xlu0 %1105
  %1107 = vrot.lane.b32.xlu0 %v948, 8
  %v1108 = vpop.permute.xlu0 %1107
  %1109 = vrot.lane.b32.xlu0 %v949, 8
  %v1110 = vpop.permute.xlu0 %1109
  %1143 = vrot.lane.b32.xlu0 %v950, 16
  %v1144 = vpop.permute.xlu0 %1143
  %1145 = vrot.lane.b32.xlu0 %v951, 16
  %v1146 = vpop.permute.xlu0 %1145
  %1147 = vrot.lane.b32.xlu0 %v952, 16
  %v1148 = vpop.permute.xlu0 %1147
  %1149 = vrot.lane.b32.xlu0 %v953, 16
  %v1150 = vpop.permute.xlu0 %1149
  %1151 = vrot.lane.b32.xlu0 %v954, 16
  %v1152 = vpop.permute.xlu0 %1151
  %1153 = vrot.lane.b32.xlu0 %v955, 16
  %v1154 = vpop.permute.xlu0 %1153
  %1155 = vrot.lane.b32.xlu0 %v956, 16
  %v1156 = vpop.permute.xlu0 %1155
  %1157 = vrot.lane.b32.xlu0 %v957, 16
  %v1158 = vpop.permute.xlu0 %1157
  %1159 = vrot.lane.b32.xlu0 %v958, 16
  %v1160 = vpop.permute.xlu0 %1159
  %1161 = vrot.lane.b32.xlu0 %v959, 16
  %v1162 = vpop.permute.xlu0 %1161
  %1163 = vrot.lane.b32.xlu0 %v960, 16
  %v1164 = vpop.permute.xlu0 %1163
  %1165 = vrot.lane.b32.xlu0 %v961, 16
  %v1166 = vpop.permute.xlu0 %1165
  %1167 = vrot.lane.b32.xlu0 %v962, 16
  %v1168 = vpop.permute.xlu0 %1167
  %1169 = vrot.lane.b32.xlu0 %v963, 16
  %v1170 = vpop.permute.xlu0 %1169
  %1171 = vrot.lane.b32.xlu0 %v964, 16
  %v1172 = vpop.permute.xlu0 %1171
  %1173 = vrot.lane.b32.xlu0 %v965, 16
  %v1174 = vpop.permute.xlu0 %1173
  %1207 = vrot.lane.b32.xlu0 %v966, 24
  %v1208 = vpop.permute.xlu0 %1207
  %1209 = vrot.lane.b32.xlu0 %v967, 24
  %v1210 = vpop.permute.xlu0 %1209
  %1211 = vrot.lane.b32.xlu0 %v968, 24
  %v1212 = vpop.permute.xlu0 %1211
  %1213 = vrot.lane.b32.xlu0 %v969, 24
  %v1214 = vpop.permute.xlu0 %1213
  %1215 = vrot.lane.b32.xlu0 %v970, 24
  %v1216 = vpop.permute.xlu0 %1215
  %1217 = vrot.lane.b32.xlu0 %v971, 24
  %v1218 = vpop.permute.xlu0 %1217
  %1219 = vrot.lane.b32.xlu0 %v972, 24
  %v1220 = vpop.permute.xlu0 %1219
  %1221 = vrot.lane.b32.xlu0 %v973, 24
  %v1222 = vpop.permute.xlu0 %1221
  %1223 = vrot.lane.b32.xlu0 %v974, 24
  %v1224 = vpop.permute.xlu0 %1223
  %1225 = vrot.lane.b32.xlu0 %v975, 24
  %v1226 = vpop.permute.xlu0 %1225
  %1227 = vrot.lane.b32.xlu0 %v976, 24
  %v1228 = vpop.permute.xlu0 %1227
  %1229 = vrot.lane.b32.xlu0 %v977, 24
  %v1230 = vpop.permute.xlu0 %1229
  %1231 = vrot.lane.b32.xlu0 %v978, 24
  %v1232 = vpop.permute.xlu0 %1231
  %1233 = vrot.lane.b32.xlu0 %v979, 24
  %v1234 = vpop.permute.xlu0 %1233
  %1235 = vrot.lane.b32.xlu0 %v980, 24
  %v1236 = vpop.permute.xlu0 %1235
  %1237 = vrot.lane.b32.xlu0 %v981, 24
  %v1238 = vpop.permute.xlu0 %1237
  %1271 = vrot.lane.b32.xlu0 %v982, 32
  %v1272 = vpop.permute.xlu0 %1271
  %1273 = vrot.lane.b32.xlu0 %v983, 32
  %v1274 = vpop.permute.xlu0 %1273
  %1275 = vrot.lane.b32.xlu0 %v984, 32
  %v1276 = vpop.permute.xlu0 %1275
  %1277 = vrot.lane.b32.xlu0 %v985, 32
  %v1278 = vpop.permute.xlu0 %1277
  %1279 = vrot.lane.b32.xlu0 %v986, 32
  %v1280 = vpop.permute.xlu0 %1279
  %1281 = vrot.lane.b32.xlu0 %v987, 32
  %v1282 = vpop.permute.xlu0 %1281
  %1283 = vrot.lane.b32.xlu0 %v988, 32
  %v1284 = vpop.permute.xlu0 %1283
  %1285 = vrot.lane.b32.xlu0 %v989, 32
  %v1286 = vpop.permute.xlu0 %1285
  %1287 = vrot.lane.b32.xlu0 %v990, 32
  %v1288 = vpop.permute.xlu0 %1287
  %1289 = vrot.lane.b32.xlu0 %v991, 32
  %v1290 = vpop.permute.xlu0 %1289
  %1291 = vrot.lane.b32.xlu0 %v992, 32
  %v1292 = vpop.permute.xlu0 %1291
  %1293 = vrot.lane.b32.xlu0 %v993, 32
  %v1294 = vpop.permute.xlu0 %1293
  %1295 = vrot.lane.b32.xlu0 %v994, 32
  %v1296 = vpop.permute.xlu0 %1295
  %1297 = vrot.lane.b32.xlu0 %v995, 32
  %v1298 = vpop.permute.xlu0 %1297
  %1299 = vrot.lane.b32.xlu0 %v996, 32
  %v1300 = vpop.permute.xlu0 %1299
  %1301 = vrot.lane.b32.xlu0 %v997, 32
  %v1302 = vpop.permute.xlu0 %1301
  %1335 = vrot.lane.b32.xlu0 %v998, 40
  %v1336 = vpop.permute.xlu0 %1335
  %1337 = vrot.lane.b32.xlu0 %v999, 40
  %v1338 = vpop.permute.xlu0 %1337
  %1339 = vrot.lane.b32.xlu0 %v1000, 40
  %v1340 = vpop.permute.xlu0 %1339
  %1341 = vrot.lane.b32.xlu0 %v1001, 40
  %v1342 = vpop.permute.xlu0 %1341
  %1343 = vrot.lane.b32.xlu0 %v1002, 40
  %v1344 = vpop.permute.xlu0 %1343
  %1345 = vrot.lane.b32.xlu0 %v1003, 40
  %v1346 = vpop.permute.xlu0 %1345
  %1347 = vrot.lane.b32.xlu0 %v1004, 40
  %v1348 = vpop.permute.xlu0 %1347
  %1349 = vrot.lane.b32.xlu0 %v1005, 40
  %v1350 = vpop.permute.xlu0 %1349
  %1351 = vrot.lane.b32.xlu0 %v1006, 40
  %v1352 = vpop.permute.xlu0 %1351
  %1353 = vrot.lane.b32.xlu0 %v1007, 40
  %v1354 = vpop.permute.xlu0 %1353
  %1355 = vrot.lane.b32.xlu0 %v1008, 40
  %v1356 = vpop.permute.xlu0 %1355
  %1357 = vrot.lane.b32.xlu0 %v1009, 40
  %v1358 = vpop.permute.xlu0 %1357
  %1359 = vrot.lane.b32.xlu0 %v1010, 40
  %v1360 = vpop.permute.xlu0 %1359
  %1361 = vrot.lane.b32.xlu0 %v1011, 40
  %v1362 = vpop.permute.xlu0 %1361
  %1363 = vrot.lane.b32.xlu0 %v1012, 40
  %v1364 = vpop.permute.xlu0 %1363
  %1365 = vrot.lane.b32.xlu0 %v1013, 40
  %v1366 = vpop.permute.xlu0 %1365
  %1399 = vrot.lane.b32.xlu0 %v1015, 48
  %v1400 = vpop.permute.xlu0 %1399
  %1401 = vrot.lane.b32.xlu0 %v1016, 48
  %v1402 = vpop.permute.xlu0 %1401
  %1403 = vrot.lane.b32.xlu0 %v1017, 48
  %v1404 = vpop.permute.xlu0 %1403
  %1405 = vrot.lane.b32.xlu0 %v1018, 48
  %v1406 = vpop.permute.xlu0 %1405
  %1407 = vrot.lane.b32.xlu0 %v1019, 48
  %v1408 = vpop.permute.xlu0 %1407
  %1409 = vrot.lane.b32.xlu0 %v1020, 48
  %v1410 = vpop.permute.xlu0 %1409
  %1411 = vrot.lane.b32.xlu0 %v1021, 48
  %v1412 = vpop.permute.xlu0 %1411
  %1413 = vrot.lane.b32.xlu0 %v1022, 48
  %v1414 = vpop.permute.xlu0 %1413
  %1415 = vrot.lane.b32.xlu0 %v1023, 48
  %v1416 = vpop.permute.xlu0 %1415
  %1417 = vrot.lane.b32.xlu0 %v1024, 48
  %v1418 = vpop.permute.xlu0 %1417
  %1419 = vrot.lane.b32.xlu0 %v1025, 48
  %v1420 = vpop.permute.xlu0 %1419
  %1421 = vrot.lane.b32.xlu0 %v1026, 48
  %v1422 = vpop.permute.xlu0 %1421
  %1423 = vrot.lane.b32.xlu0 %v1027, 48
  %v1424 = vpop.permute.xlu0 %1423
  %1425 = vrot.lane.b32.xlu0 %v1028, 48
  %v1426 = vpop.permute.xlu0 %1425
  %1427 = vrot.lane.b32.xlu0 %v1029, 48
  %v1428 = vpop.permute.xlu0 %1427
  %1429 = vrot.lane.b32.xlu0 %v1030, 48
  %v1430 = vpop.permute.xlu0 %1429
  %1463 = vrot.lane.b32.xlu0 %v1031, 56
  %v1464 = vpop.permute.xlu0 %1463
  %1465 = vrot.lane.b32.xlu0 %v1032, 56
  %v1466 = vpop.permute.xlu0 %1465
  %1467 = vrot.lane.b32.xlu0 %v1033, 56
  %v1468 = vpop.permute.xlu0 %1467
  %1469 = vrot.lane.b32.xlu0 %v1034, 56
  %v1470 = vpop.permute.xlu0 %1469
  %1471 = vrot.lane.b32.xlu0 %v1035, 56
  %v1472 = vpop.permute.xlu0 %1471
  %1473 = vrot.lane.b32.xlu0 %v1036, 56
  %v1474 = vpop.permute.xlu0 %1473
  %1475 = vrot.lane.b32.xlu0 %v1037, 56
  %v1476 = vpop.permute.xlu0 %1475
  %1477 = vrot.lane.b32.xlu0 %v1038, 56
  %v1478 = vpop.permute.xlu0 %1477
  %1479 = vrot.lane.b32.xlu0 %v1039, 56
  %v1480 = vpop.permute.xlu0 %1479
  %1481 = vrot.lane.b32.xlu0 %v1040, 56
  %v1482 = vpop.permute.xlu0 %1481
  %1483 = vrot.lane.b32.xlu0 %v1041, 56
  %v1484 = vpop.permute.xlu0 %1483
  %1485 = vrot.lane.b32.xlu0 %v1042, 56
  %v1486 = vpop.permute.xlu0 %1485
  %1487 = vrot.lane.b32.xlu0 %v1043, 56
  %v1488 = vpop.permute.xlu0 %1487
  %1489 = vrot.lane.b32.xlu0 %v1044, 56
  %v1490 = vpop.permute.xlu0 %1489
  %1491 = vrot.lane.b32.xlu0 %v1045, 56
  %v1492 = vpop.permute.xlu0 %1491
  %1493 = vrot.lane.b32.xlu0 %v1046, 56
  %v1494 = vpop.permute.xlu0 %1493
  %1527 = vrot.lane.b32.xlu0 %v1047, 64
  %v1528 = vpop.permute.xlu0 %1527
  %1529 = vrot.lane.b32.xlu0 %v1048, 64
  %v1530 = vpop.permute.xlu0 %1529
  %1531 = vrot.lane.b32.xlu0 %v1049, 64
  %v1532 = vpop.permute.xlu0 %1531
  %1533 = vrot.lane.b32.xlu0 %v1050, 64
  %v1534 = vpop.permute.xlu0 %1533
  %1535 = vrot.lane.b32.xlu0 %v1051, 64
  %v1536 = vpop.permute.xlu0 %1535
  %1537 = vrot.lane.b32.xlu0 %v1052, 64
  %v1538 = vpop.permute.xlu0 %1537
  %1539 = vrot.lane.b32.xlu0 %v1053, 64
  %v1540 = vpop.permute.xlu0 %1539
  %1541 = vrot.lane.b32.xlu0 %v1054, 64
  %v1542 = vpop.permute.xlu0 %1541
  %1543 = vrot.lane.b32.xlu0 %v1055, 64
  %v1544 = vpop.permute.xlu0 %1543
  %1545 = vrot.lane.b32.xlu0 %v1056, 64
  %v1546 = vpop.permute.xlu0 %1545
  %1547 = vrot.lane.b32.xlu0 %v1057, 64
  %v1548 = vpop.permute.xlu0 %1547
  %1549 = vrot.lane.b32.xlu0 %v1058, 64
  %v1550 = vpop.permute.xlu0 %1549
  %1551 = vrot.lane.b32.xlu0 %v1059, 64
  %v1552 = vpop.permute.xlu0 %1551
  %1553 = vrot.lane.b32.xlu0 %v1060, 64
  %v1554 = vpop.permute.xlu0 %1553
  %1555 = vrot.lane.b32.xlu0 %v1061, 64
  %v1556 = vpop.permute.xlu0 %1555
  %1557 = vrot.lane.b32.xlu0 %v1062, 64
  %v1558 = vpop.permute.xlu0 %1557
  %v1575 = vsel %vm851, %v918, %v1080
  %v1576 = vsel %vm851, %v919, %v1082
  %v1577 = vsel %vm851, %v920, %v1084
  %v1578 = vsel %vm851, %v921, %v1086
  %v1579 = vsel %vm851, %v922, %v1088
  %v1580 = vsel %vm851, %v923, %v1090
  %v1581 = vsel %vm851, %v924, %v1092
  %v1582 = vsel %vm851, %v925, %v1094
  %v1583 = vsel %vm851, %v926, %v1096
  %v1584 = vsel %vm851, %v927, %v1098
  %v1585 = vsel %vm851, %v928, %v1100
  %v1586 = vsel %vm851, %v929, %v1102
  %v1587 = vsel %vm851, %v930, %v1104
  %v1588 = vsel %vm851, %v931, %v1106
  %v1589 = vsel %vm851, %v932, %v1108
  %v1590 = vsel %vm851, %v933, %v1110
  %vm1591 = vcmask 130048
  %v1592 = vsel %vm1591, %v1575, %v1144
  %v1593 = vsel %vm1591, %v1576, %v1146
  %v1594 = vsel %vm1591, %v1577, %v1148
  %v1595 = vsel %vm1591, %v1578, %v1150
  %v1596 = vsel %vm1591, %v1579, %v1152
  %v1597 = vsel %vm1591, %v1580, %v1154
  %v1598 = vsel %vm1591, %v1581, %v1156
  %v1599 = vsel %vm1591, %v1582, %v1158
  %v1600 = vsel %vm1591, %v1583, %v1160
  %v1601 = vsel %vm1591, %v1584, %v1162
  %v1602 = vsel %vm1591, %v1585, %v1164
  %v1603 = vsel %vm1591, %v1586, %v1166
  %v1604 = vsel %vm1591, %v1587, %v1168
  %v1605 = vsel %vm1591, %v1588, %v1170
  %v1606 = vsel %vm1591, %v1589, %v1172
  %v1607 = vsel %vm1591, %v1590, %v1174
  %v1608 = vsel %vm673, %v1592, %v1208
  %v1609 = vsel %vm673, %v1593, %v1210
  %v1610 = vsel %vm673, %v1594, %v1212
  %v1611 = vsel %vm673, %v1595, %v1214
  %v1612 = vsel %vm673, %v1596, %v1216
  %v1613 = vsel %vm673, %v1597, %v1218
  %v1614 = vsel %vm673, %v1598, %v1220
  %v1615 = vsel %vm673, %v1599, %v1222
  %v1616 = vsel %vm673, %v1600, %v1224
  %v1617 = vsel %vm673, %v1601, %v1226
  %v1618 = vsel %vm673, %v1602, %v1228
  %v1619 = vsel %vm673, %v1603, %v1230
  %v1620 = vsel %vm673, %v1604, %v1232
  %v1621 = vsel %vm673, %v1605, %v1234
  %v1622 = vsel %vm673, %v1606, %v1236
  %v1623 = vsel %vm673, %v1607, %v1238
  %vm1624 = vcmask 261120
  %v1625 = vsel %vm1624, %v1608, %v1272
  %v1626 = vsel %vm1624, %v1609, %v1274
  %v1627 = vsel %vm1624, %v1610, %v1276
  %v1628 = vsel %vm1624, %v1611, %v1278
  %v1629 = vsel %vm1624, %v1612, %v1280
  %v1630 = vsel %vm1624, %v1613, %v1282
  %v1631 = vsel %vm1624, %v1614, %v1284
  %v1632 = vsel %vm1624, %v1615, %v1286
  %v1633 = vsel %vm1624, %v1616, %v1288
  %v1634 = vsel %vm1624, %v1617, %v1290
  %v1635 = vsel %vm1624, %v1618, %v1292
  %v1636 = vsel %vm1624, %v1619, %v1294
  %v1637 = vsel %vm1624, %v1620, %v1296
  %v1638 = vsel %vm1624, %v1621, %v1298
  %v1639 = vsel %vm1624, %v1622, %v1300
  %v1640 = vsel %vm1624, %v1623, %v1302
  %vm1641 = vcmask 326656
  %v1642 = vsel %vm1641, %v1625, %v1336
  %v1643 = vsel %vm1641, %v1626, %v1338
  %v1644 = vsel %vm1641, %v1627, %v1340
  %v1645 = vsel %vm1641, %v1628, %v1342
  %v1646 = vsel %vm1641, %v1629, %v1344
  %v1647 = vsel %vm1641, %v1630, %v1346
  %v1648 = vsel %vm1641, %v1631, %v1348
  %v1649 = vsel %vm1641, %v1632, %v1350
  %v1650 = vsel %vm1641, %v1633, %v1352
  %v1651 = vsel %vm1641, %v1634, %v1354
  %v1652 = vsel %vm1641, %v1635, %v1356
  %v1653 = vsel %vm1641, %v1636, %v1358
  %v1654 = vsel %vm1641, %v1637, %v1360
  %v1655 = vsel %vm1641, %v1638, %v1362
  %v1656 = vsel %vm1641, %v1639, %v1364
  %v1657 = vsel %vm1641, %v1640, %v1366
  %vm1658 = vcmask 392192
  %v1659 = vsel %vm1658, %v1642, %v1400
  %v1660 = vsel %vm1658, %v1643, %v1402
  %v1661 = vsel %vm1658, %v1644, %v1404
  %v1662 = vsel %vm1658, %v1645, %v1406
  %v1663 = vsel %vm1658, %v1646, %v1408
  %v1664 = vsel %vm1658, %v1647, %v1410
  %v1665 = vsel %vm1658, %v1648, %v1412
  %v1666 = vsel %vm1658, %v1649, %v1414
  %v1667 = vsel %vm1658, %v1650, %v1416
  %v1668 = vsel %vm1658, %v1651, %v1418
  %v1669 = vsel %vm1658, %v1652, %v1420
  %v1670 = vsel %vm1658, %v1653, %v1422
  %v1671 = vsel %vm1658, %v1654, %v1424
  %v1672 = vsel %vm1658, %v1655, %v1426
  %v1673 = vsel %vm1658, %v1656, %v1428
  %v1674 = vsel %vm1658, %v1657, %v1430
  %vm1675 = vcmask 457728
  %v1676 = vsel %vm1675, %v1659, %v1464
  %v1677 = vsel %vm1675, %v1660, %v1466
  %v1678 = vsel %vm1675, %v1661, %v1468
  %v1679 = vsel %vm1675, %v1662, %v1470
  %v1680 = vsel %vm1675, %v1663, %v1472
  %v1681 = vsel %vm1675, %v1664, %v1474
  %v1682 = vsel %vm1675, %v1665, %v1476
  %v1683 = vsel %vm1675, %v1666, %v1478
  %v1684 = vsel %vm1675, %v1667, %v1480
  %v1685 = vsel %vm1675, %v1668, %v1482
  %v1686 = vsel %vm1675, %v1669, %v1484
  %v1687 = vsel %vm1675, %v1670, %v1486
  %v1688 = vsel %vm1675, %v1671, %v1488
  %v1689 = vsel %vm1675, %v1672, %v1490
  %v1690 = vsel %vm1675, %v1673, %v1492
  %v1691 = vsel %vm1675, %v1674, %v1494
  %vm1692 = vcmask 523264
  %v1693 = vsel %vm1692, %v1676, %v1528
  %v1694 = vsel %vm1692, %v1677, %v1530
  %v1695 = vsel %vm1692, %v1678, %v1532
  %v1696 = vsel %vm1692, %v1679, %v1534
  %v1697 = vsel %vm1692, %v1680, %v1536
  %v1698 = vsel %vm1692, %v1681, %v1538
  %v1699 = vsel %vm1692, %v1682, %v1540
  %v1700 = vsel %vm1692, %v1683, %v1542
  %v1701 = vsel %vm1692, %v1684, %v1544
  %v1702 = vsel %vm1692, %v1685, %v1546
  %v1703 = vsel %vm1692, %v1686, %v1548
  %v1704 = vsel %vm1692, %v1687, %v1550
  %v1705 = vsel %vm1692, %v1688, %v1552
  %v1706 = vsel %vm1692, %v1689, %v1554
  %v1707 = vsel %vm1692, %v1690, %v1556
  %v1708 = vsel %vm1692, %v1691, %v1558
  %vm1709 = vcmask 588800
  %v1711 = vsel %vm1709, %v1693, 0
  %v1714 = vsel %vm1709, %v1694, 0
  %v1717 = vsel %vm1709, %v1695, 0
  %v1720 = vsel %vm1709, %v1696, 0
  %v1723 = vsel %vm1709, %v1697, 0
  %v1726 = vsel %vm1709, %v1698, 0
  %v1729 = vsel %vm1709, %v1699, 0
  %v1732 = vsel %vm1709, %v1700, 0
  %v1735 = vsel %vm1709, %v1701, 0
  %v1738 = vsel %vm1709, %v1702, 0
  %v1741 = vsel %vm1709, %v1703, 0
  %v1744 = vsel %vm1709, %v1704, 0
  %v1747 = vsel %vm1709, %v1705, 0
  %v1750 = vsel %vm1709, %v1706, 0
  %v1753 = vsel %vm1709, %v1707, 0
  %v1756 = vsel %vm1709, %v1708, 0
  %1758 = vmatpush.msra.mxu0 0.0
  %1759 = vmatpush.msra.mxu0 0.0
  %1760 = vmatpush.msra.mxu0 0.0
  %1761 = vmatpush.msra.mxu0 0.0
  %1762 = vmatpush.msra.mxu0 0.0
  %1763 = vmatpush.msra.mxu0 0.0
  %1764 = vmatpush.msra.mxu0 0.0
  %1765 = vmatpush.msra.mxu0 %v848
  %1766 = vmatpush.msra.mxu0 %v847
  %1767 = vmatpush.msra.mxu0 %v846
  %1768 = vmatpush.msra.mxu0 %v845
  %1769 = vmatpush.msra.mxu0 %v844
  %1770 = vmatpush.msra.mxu0 %v843
  %1771 = vmatpush.msra.mxu0 %v842
  %1772 = vmatpush.msra.mxu0 %v841
  %1773 = vmatpush.msra.mxu0 %v840
  %1774 = vmatmul.f32.gmra.mxu0 %v1711
  %v1775 = vpop.f32.mrf.mxu0
  %v1776 = vadd.f32 0.0, %v1775
  %1777 = vmatmul.f32.gmra.mxu0 %v1714
  %v1778 = vpop.f32.mrf.mxu0
  %v1779 = vadd.f32 0.0, %v1778
  %1780 = vmatmul.f32.gmra.mxu0 %v1717
  %v1781 = vpop.f32.mrf.mxu0
  %v1782 = vadd.f32 0.0, %v1781
  %1783 = vmatmul.f32.gmra.mxu0 %v1720
  %v1784 = vpop.f32.mrf.mxu0
  %v1785 = vadd.f32 0.0, %v1784
  %1786 = vmatmul.f32.gmra.mxu0 %v1723
  %v1787 = vpop.f32.mrf.mxu0
  %v1788 = vadd.f32 0.0, %v1787
  %1789 = vmatmul.f32.gmra.mxu0 %v1726
  %v1790 = vpop.f32.mrf.mxu0
  %v1791 = vadd.f32 0.0, %v1790
  %1792 = vmatmul.f32.gmra.mxu0 %v1729
  %v1793 = vpop.f32.mrf.mxu0
  %v1794 = vadd.f32 0.0, %v1793
  %1795 = vmatmul.f32.gmra.mxu0 %v1732
  %v1796 = vpop.f32.mrf.mxu0
  %v1797 = vadd.f32 0.0, %v1796
  %1798 = vmatmul.f32.gmra.mxu0 %v1735
  %v1799 = vpop.f32.mrf.mxu0
  %v1800 = vadd.f32 0.0, %v1799
  %1801 = vmatmul.f32.gmra.mxu0 %v1738
  %v1802 = vpop.f32.mrf.mxu0
  %v1803 = vadd.f32 0.0, %v1802
  %1804 = vmatmul.f32.gmra.mxu0 %v1741
  %v1805 = vpop.f32.mrf.mxu0
  %v1806 = vadd.f32 0.0, %v1805
  %1807 = vmatmul.f32.gmra.mxu0 %v1744
  %v1808 = vpop.f32.mrf.mxu0
  %v1809 = vadd.f32 0.0, %v1808
  %1810 = vmatmul.f32.gmra.mxu0 %v1747
  %v1811 = vpop.f32.mrf.mxu0
  %v1812 = vadd.f32 0.0, %v1811
  %1813 = vmatmul.f32.gmra.mxu0 %v1750
  %v1814 = vpop.f32.mrf.mxu0
  %v1815 = vadd.f32 0.0, %v1814
  %1816 = vmatmul.f32.gmra.mxu0 %v1753
  %v1817 = vpop.f32.mrf.mxu0
  %v1818 = vadd.f32 0.0, %v1817
  %1819 = vmatmul.f32.gmra.mxu0 %v1756
  %v1820 = vpop.f32.mrf.mxu0
  %v1821 = vadd.f32 0.0, %v1820
  %1822 = vdwg.mxu0
  %v1823 = vsel %vm851, %v1776, 0.0
  %v1824 = vsel %vm851, %v1779, 0.0
  %v1825 = vadd.f32 %v1823, %v1824
  %v1826 = vsel %vm851, %v1782, 0.0
  %v1827 = vadd.f32 %v1825, %v1826
  %v1828 = vsel %vm851, %v1785, 0.0
  %v1829 = vadd.f32 %v1827, %v1828
  %v1830 = vsel %vm851, %v1788, 0.0
  %v1831 = vadd.f32 %v1829, %v1830
  %v1832 = vsel %vm851, %v1791, 0.0
  %v1833 = vadd.f32 %v1831, %v1832
  %v1834 = vsel %vm851, %v1794, 0.0
  %v1835 = vadd.f32 %v1833, %v1834
  %v1836 = vsel %vm851, %v1797, 0.0
  %v1837 = vadd.f32 %v1835, %v1836
  %v1838 = vsel %vm851, %v1800, 0.0
  %v1839 = vadd.f32 %v1837, %v1838
  %v1840 = vsel %vm851, %v1803, 0.0
  %v1841 = vadd.f32 %v1839, %v1840
  %v1842 = vsel %vm851, %v1806, 0.0
  %v1843 = vadd.f32 %v1841, %v1842
  %v1844 = vsel %vm851, %v1809, 0.0
  %v1845 = vadd.f32 %v1843, %v1844
  %v1846 = vsel %vm851, %v1812, 0.0
  %v1847 = vadd.f32 %v1845, %v1846
  %v1848 = vsel %vm851, %v1815, 0.0
  %v1849 = vadd.f32 %v1847, %v1848
  %v1850 = vsel %vm851, %v1818, 0.0
  %v1851 = vadd.f32 %v1849, %v1850
  %v1852 = vsel %vm851, %v1821, 0.0
  %v1853 = vadd.f32 %v1851, %v1852
  %v1854 = vrot.slane %v1853, 4
  %v1855 = vadd.f32 %v1853, %v1854
  %v1856 = vrot.slane %v1855, 2
  %v1857 = vadd.f32 %v1855, %v1856
  %v1858 = vrot.slane %v1857, 1
  %v1859 = vadd.f32 %v1857, %v1858
  %v1860 = vrcp.pop 128.0
  %v1861 = vmul.f32 128.0, %v1860
  %v1862 = vsub.f32 1.0, %v1861
  %v1863 = vmul.f32 %v1860, %v1862
  %v1864 = vadd.f32 %v1860, %v1863
  %vm1865 = vweird.f32 %v1860
  %v1866 = vsel %vm1865, %v1860, %v1864
  %v1867 = vmul.f32 %v1859, %v1866
  %v1868 = vsub.f32 %v1776, %v1867
  %v1869 = vsub.f32 %v1779, %v1867
  %v1870 = vsub.f32 %v1782, %v1867
  %v1871 = vsub.f32 %v1785, %v1867
  %v1872 = vsub.f32 %v1788, %v1867
  %v1873 = vsub.f32 %v1791, %v1867
  %v1874 = vsub.f32 %v1794, %v1867
  %v1875 = vsub.f32 %v1797, %v1867
  %v1876 = vsub.f32 %v1800, %v1867
  %v1877 = vsub.f32 %v1803, %v1867
  %v1878 = vsub.f32 %v1806, %v1867
  %v1879 = vsub.f32 %v1809, %v1867
  %v1880 = vsub.f32 %v1812, %v1867
  %v1881 = vsub.f32 %v1815, %v1867
  %v1882 = vsub.f32 %v1818, %v1867
  %v1883 = vsub.f32 %v1821, %v1867
  %v1884 = vmul.f32 %v1868, %v1868
  %v1885 = vmul.f32 %v1869, %v1869
  %v1886 = vmul.f32 %v1870, %v1870
  %v1887 = vmul.f32 %v1871, %v1871
  %v1888 = vmul.f32 %v1872, %v1872
  %v1889 = vmul.f32 %v1873, %v1873
  %v1890 = vmul.f32 %v1874, %v1874
  %v1891 = vmul.f32 %v1875, %v1875
  %v1892 = vmul.f32 %v1876, %v1876
  %v1893 = vmul.f32 %v1877, %v1877
  %v1894 = vmul.f32 %v1878, %v1878
  %v1895 = vmul.f32 %v1879, %v1879
  %v1896 = vmul.f32 %v1880, %v1880
  %v1897 = vmul.f32 %v1881, %v1881
  %v1898 = vmul.f32 %v1882, %v1882
  %v1899 = vmul.f32 %v1883, %v1883
  %v1900 = vsel %vm851, %v1884, 0.0
  %v1901 = vsel %vm851, %v1885, 0.0
  %v1902 = vadd.f32 %v1900, %v1901
  %v1903 = vsel %vm851, %v1886, 0.0
  %v1904 = vadd.f32 %v1902, %v1903
  %v1905 = vsel %vm851, %v1887, 0.0
  %v1906 = vadd.f32 %v1904, %v1905
  %v1907 = vsel %vm851, %v1888, 0.0
  %v1908 = vadd.f32 %v1906, %v1907
  %v1909 = vsel %vm851, %v1889, 0.0
  %v1910 = vadd.f32 %v1908, %v1909
  %v1911 = vsel %vm851, %v1890, 0.0
  %v1912 = vadd.f32 %v1910, %v1911
  %v1913 = vsel %vm851, %v1891, 0.0
  %v1914 = vadd.f32 %v1912, %v1913
  %v1915 = vsel %vm851, %v1892, 0.0
  %v1916 = vadd.f32 %v1914, %v1915
  %v1917 = vsel %vm851, %v1893, 0.0
  %v1918 = vadd.f32 %v1916, %v1917
  %v1919 = vsel %vm851, %v1894, 0.0
  %v1920 = vadd.f32 %v1918, %v1919
  %v1921 = vsel %vm851, %v1895, 0.0
  %v1922 = vadd.f32 %v1920, %v1921
  %v1923 = vsel %vm851, %v1896, 0.0
  %v1924 = vadd.f32 %v1922, %v1923
  %v1925 = vsel %vm851, %v1897, 0.0
  %v1926 = vadd.f32 %v1924, %v1925
  %v1927 = vsel %vm851, %v1898, 0.0
  %v1928 = vadd.f32 %v1926, %v1927
  %v1929 = vsel %vm851, %v1899, 0.0
  %v1930 = vadd.f32 %v1928, %v1929
  %v1931 = vrot.slane %v1930, 4
  %v1932 = vadd.f32 %v1930, %v1931
  %v1933 = vrot.slane %v1932, 2
  %v1934 = vadd.f32 %v1932, %v1933
  %v1935 = vrot.slane %v1934, 1
  %v1936 = vadd.f32 %v1934, %v1935
  %v1937 = vmul.f32 %v1936, %v1866
  %v1938 = vadd.f32 %v1937, 1e-05
  %v1939 = vrsqrt.pop %v1938
  %v1940 = vmul.f32 %v1939, %v1938
  %v1941 = vmul.f32 %v1940, %v1939
  %v1942 = vmul.f32 0.5, %v1941
  %v1943 = vsub.f32 1.5, %v1942
  %v1944 = vmul.f32 %v1939, %v1943
  %vm1945 = vweird.f32 %v1938
  %vm1946 = vweird.f32 %v1939
  %vm1947 = vmor %vm1945, %vm1946
  %v1948 = vsel %vm1947, %v1939, %v1944
  %v1949 = vmul.f32 %v1868, %v1948
  %v1950 = vmul.f32 %v1869, %v1948
  %v1951 = vmul.f32 %v1870, %v1948
  %v1952 = vmul.f32 %v1871, %v1948
  %v1953 = vmul.f32 %v1872, %v1948
  %v1954 = vmul.f32 %v1873, %v1948
  %v1955 = vmul.f32 %v1874, %v1948
  %v1956 = vmul.f32 %v1875, %v1948
  %v1957 = vmul.f32 %v1876, %v1948
  %v1958 = vmul.f32 %v1877, %v1948
  %v1959 = vmul.f32 %v1878, %v1948
  %v1960 = vmul.f32 %v1879, %v1948
  %v1961 = vmul.f32 %v1880, %v1948
  %v1962 = vmul.f32 %v1881, %v1948
  %v1963 = vmul.f32 %v1882, %v1948
  %v1964 = vmul.f32 %v1883, %v1948
  %v1966 = vperm.slane %v849, 0
  %v1968 = vmul.f32 %v1949, %v1966
  %v1969 = vmul.f32 %v1950, %v1966
  %v1970 = vmul.f32 %v1951, %v1966
  %v1971 = vmul.f32 %v1952, %v1966
  %v1972 = vmul.f32 %v1953, %v1966
  %v1973 = vmul.f32 %v1954, %v1966
  %v1974 = vmul.f32 %v1955, %v1966
  %v1975 = vmul.f32 %v1956, %v1966
  %v1976 = vmul.f32 %v1957, %v1966
  %v1977 = vmul.f32 %v1958, %v1966
  %v1978 = vmul.f32 %v1959, %v1966
  %v1979 = vmul.f32 %v1960, %v1966
  %v1980 = vmul.f32 %v1961, %v1966
  %v1981 = vmul.f32 %v1962, %v1966
  %v1982 = vmul.f32 %v1963, %v1966
  %v1983 = vmul.f32 %v1964, %v1966
  %v1985 = vperm.slane %v850, 0
  %v1987 = vadd.f32 %v1968, %v1985
  %v1988 = vadd.f32 %v1969, %v1985
  %v1989 = vadd.f32 %v1970, %v1985
  %v1990 = vadd.f32 %v1971, %v1985
  %v1991 = vadd.f32 %v1972, %v1985
  %v1992 = vadd.f32 %v1973, %v1985
  %v1993 = vadd.f32 %v1974, %v1985
  %v1994 = vadd.f32 %v1975, %v1985
  %v1995 = vadd.f32 %v1976, %v1985
  %v1996 = vadd.f32 %v1977, %v1985
  %v1997 = vadd.f32 %v1978, %v1985
  %v1998 = vadd.f32 %v1979, %v1985
  %v1999 = vadd.f32 %v1980, %v1985
  %v2000 = vadd.f32 %v1981, %v1985
  %v2001 = vadd.f32 %v1982, %v1985
  %v2002 = vadd.f32 %v1983, %v1985
  %v2003 = vmul.f32 %v1987, 0.2
  %v2004 = vmul.f32 %v1988, 0.2
  %v2005 = vmul.f32 %v1989, 0.2
  %v2006 = vmul.f32 %v1990, 0.2
  %v2007 = vmul.f32 %v1991, 0.2
  %v2008 = vmul.f32 %v1992, 0.2
  %v2009 = vmul.f32 %v1993, 0.2
  %v2010 = vmul.f32 %v1994, 0.2
  %v2011 = vmul.f32 %v1995, 0.2
  %v2012 = vmul.f32 %v1996, 0.2
  %v2013 = vmul.f32 %v1997, 0.2
  %v2014 = vmul.f32 %v1998, 0.2
  %v2015 = vmul.f32 %v1999, 0.2
  %v2016 = vmul.f32 %v2000, 0.2
  %v2017 = vmul.f32 %v2001, 0.2
  %v2018 = vmul.f32 %v2002, 0.2
  %v2019 = vmax.f32 %v1987, %v2003
  %v2020 = vmax.f32 %v1988, %v2004
  %v2021 = vmax.f32 %v1989, %v2005
  %v2022 = vmax.f32 %v1990, %v2006
  %v2023 = vmax.f32 %v1991, %v2007
  %v2024 = vmax.f32 %v1992, %v2008
  %v2025 = vmax.f32 %v1993, %v2009
  %v2026 = vmax.f32 %v1994, %v2010
  %v2027 = vmax.f32 %v1995, %v2011
  %v2028 = vmax.f32 %v1996, %v2012
  %v2029 = vmax.f32 %v1997, %v2013
  %v2030 = vmax.f32 %v1998, %v2014
  %v2031 = vmax.f32 %v1999, %v2015
  %v2032 = vmax.f32 %v2000, %v2016
  %v2033 = vmax.f32 %v2001, %v2017
  %v2034 = vmax.f32 %v2002, %v2018
  %v2035 = vld [vmem:[%s5] sm:$0xff]
  %v2036 = vld [vmem:[%s5 + $0x8] sm:$0xff]
  %v2037 = vld [vmem:[%s5 + $0x10] sm:$0xff]
  %v2038 = vld [vmem:[%s5 + $0x18] sm:$0xff]
  %v2039 = vld [vmem:[%s5 + $0x20] sm:$0xff]
  %v2040 = vld [vmem:[%s5 + $0x28] sm:$0xff]
  %v2041 = vld [vmem:[%s5 + $0x30] sm:$0xff]
  %v2042 = vld [vmem:[%s5 + $0x38] sm:$0xff]
  %v2043 = vld [vmem:[%s5 + $0x40] sm:$0xff]
  %v2044 = vld [vmem:[%s6] sm:$0x1]
  %v2045 = vld [vmem:[%s7] sm:$0x1]
  %2046 = vst.msk [vmem:[#allocation2] sm:$0xff] %vm851, 0.0
  %2047 = vst.msk [vmem:[#allocation2 + $0x8] sm:$0x3] %vm853, 0.0
  %2048 = vst.msk [vmem:[#allocation2 + $0xa0] sm:$0xff] %vm851, 0.0
  %2049 = vst.msk [vmem:[#allocation2 + $0xa8] sm:$0x3] %vm853, 0.0
  %2050 = vst.msk [vmem:[%s76] sm:$0xff] %vm851, 0.0
  %2051 = vst.msk [vmem:[%s76 + $0x8] sm:$0x3] %vm853, 0.0
  %2052 = vst.msk [vmem:[%s76 + $0xa0] sm:$0xff] %vm851, 0.0
  %2053 = vst.msk [vmem:[%s76 + $0xa8] sm:$0x3] %vm853, 0.0
  %2054 = vst.msk [vmem:[#allocation2] sm:$0x1] %vm861, 0.0
  %2055 = vst.msk [vmem:[#allocation2 + $0x10] sm:$0x1] %vm861, 0.0
  %2056 = vst.msk [vmem:[#allocation2 + $0x20] sm:$0x1] %vm861, 0.0
  %2057 = vst.msk [vmem:[#allocation2 + $0x30] sm:$0x1] %vm861, 0.0
  %2058 = vst.msk [vmem:[#allocation2 + $0x40] sm:$0x1] %vm861, 0.0
  %2059 = vst.msk [vmem:[#allocation2 + $0x50] sm:$0x1] %vm861, 0.0
  %2060 = vst.msk [vmem:[#allocation2 + $0x60] sm:$0x1] %vm861, 0.0
  %2061 = vst.msk [vmem:[#allocation2 + $0x70] sm:$0x1] %vm861, 0.0
  %2062 = vst.msk [vmem:[#allocation2 + $0x80] sm:$0x1] %vm861, 0.0
  %2063 = vst.msk [vmem:[#allocation2 + $0x90] sm:$0x1] %vm861, 0.0
  %2064 = vst.msk [vmem:[#allocation2 + $0xa0] sm:$0x1] %vm861, 0.0
  %2065 = vst.msk [vmem:[#allocation2 + $0xb0] sm:$0x1] %vm861, 0.0
  %2066 = vst.msk [vmem:[#allocation2 + $0xc0] sm:$0x1] %vm861, 0.0
  %2067 = vst.msk [vmem:[#allocation2 + $0xd0] sm:$0x1] %vm861, 0.0
  %2068 = vst.msk [vmem:[#allocation2 + $0xe0] sm:$0x1] %vm861, 0.0
  %2069 = vst.msk [vmem:[#allocation2 + $0xf0] sm:$0x1] %vm861, 0.0
  %2070 = vst.msk [vmem:[#allocation2 + $0x100] sm:$0x1] %vm861, 0.0
  %2071 = vst.msk [vmem:[#allocation2 + $0x110] sm:$0x1] %vm861, 0.0
  %2072 = vst.msk [vmem:[#allocation2 + $0x120] sm:$0x1] %vm861, 0.0
  %2073 = vst.msk [vmem:[#allocation2 + $0x130] sm:$0x1] %vm861, 0.0
  %2074 = vst.msk [vmem:[#allocation2 + $0x9] sm:$0x1] %vm861, 0.0
  %2075 = vst.msk [vmem:[#allocation2 + $0x19] sm:$0x1] %vm861, 0.0
  %2076 = vst.msk [vmem:[#allocation2 + $0x29] sm:$0x1] %vm861, 0.0
  %2077 = vst.msk [vmem:[#allocation2 + $0x39] sm:$0x1] %vm861, 0.0
  %2078 = vst.msk [vmem:[#allocation2 + $0x49] sm:$0x1] %vm861, 0.0
  %2079 = vst.msk [vmem:[#allocation2 + $0x59] sm:$0x1] %vm861, 0.0
  %2080 = vst.msk [vmem:[#allocation2 + $0x69] sm:$0x1] %vm861, 0.0
  %2081 = vst.msk [vmem:[#allocation2 + $0x79] sm:$0x1] %vm861, 0.0
  %2082 = vst.msk [vmem:[#allocation2 + $0x89] sm:$0x1] %vm861, 0.0
  %2083 = vst.msk [vmem:[#allocation2 + $0x99] sm:$0x1] %vm861, 0.0
  %2084 = vst.msk [vmem:[#allocation2 + $0xa9] sm:$0x1] %vm861, 0.0
  %2085 = vst.msk [vmem:[#allocation2 + $0xb9] sm:$0x1] %vm861, 0.0
  %2086 = vst.msk [vmem:[#allocation2 + $0xc9] sm:$0x1] %vm861, 0.0
  %2087 = vst.msk [vmem:[#allocation2 + $0xd9] sm:$0x1] %vm861, 0.0
  %2088 = vst.msk [vmem:[#allocation2 + $0xe9] sm:$0x1] %vm861, 0.0
  %2089 = vst.msk [vmem:[#allocation2 + $0xf9] sm:$0x1] %vm861, 0.0
  %2090 = vst.msk [vmem:[#allocation2 + $0x109] sm:$0x1] %vm861, 0.0
  %2091 = vst.msk [vmem:[#allocation2 + $0x119] sm:$0x1] %vm861, 0.0
  %2092 = vst.msk [vmem:[#allocation2 + $0x129] sm:$0x1] %vm861, 0.0
  %2093 = vst.msk [vmem:[#allocation2 + $0x139] sm:$0x1] %vm861, 0.0
  %2094 = vst.msk [vmem:[%s122 + $0x1] sm:$0xff] %vm851, %v2019
  %2095 = vst.msk [vmem:[%s122 + $0x11] sm:$0xff] %vm851, %v2020
  %2096 = vst.msk [vmem:[%s122 + $0x21] sm:$0xff] %vm851, %v2021
  %2097 = vst.msk [vmem:[%s122 + $0x31] sm:$0xff] %vm851, %v2022
  %2098 = vst.msk [vmem:[%s122 + $0x41] sm:$0xff] %vm851, %v2023
  %2099 = vst.msk [vmem:[%s122 + $0x51] sm:$0xff] %vm851, %v2024
  %2100 = vst.msk [vmem:[%s122 + $0x61] sm:$0xff] %vm851, %v2025
  %2101 = vst.msk [vmem:[%s122 + $0x71] sm:$0xff] %vm851, %v2026
  %2102 = vst.msk [vmem:[%s122 + $0xa1] sm:$0xff] %vm851, %v2027
  %2103 = vst.msk [vmem:[%s122 + $0xb1] sm:$0xff] %vm851, %v2028
  %2104 = vst.msk [vmem:[%s122 + $0xc1] sm:$0xff] %vm851, %v2029
  %2105 = vst.msk [vmem:[%s122 + $0xd1] sm:$0xff] %vm851, %v2030
  %2106 = vst.msk [vmem:[%s122 + $0xe1] sm:$0xff] %vm851, %v2031
  %2107 = vst.msk [vmem:[%s122 + $0xf1] sm:$0xff] %vm851, %v2032
  %2108 = vst.msk [vmem:[%s122 + $0x101] sm:$0xff] %vm851, %v2033
  %2109 = vst.msk [vmem:[%s122 + $0x111] sm:$0xff] %vm851, %v2034
  %v2110 = vld [vmem:[#allocation2] sm:$0xff]
  %v2111 = vld [vmem:[#allocation2 + $0x10] sm:$0xff]
  %v2112 = vld [vmem:[#allocation2 + $0x20] sm:$0xff]
  %v2113 = vld [vmem:[#allocation2 + $0x30] sm:$0xff]
  %v2114 = vld [vmem:[#allocation2 + $0x40] sm:$0xff]
  %v2115 = vld [vmem:[#allocation2 + $0x50] sm:$0xff]
  %v2116 = vld [vmem:[#allocation2 + $0x60] sm:$0xff]
  %v2117 = vld [vmem:[#allocation2 + $0x70] sm:$0xff]
  %v2118 = vld [vmem:[#allocation2 + $0xa0] sm:$0xff]
  %v2119 = vld [vmem:[#allocation2 + $0xb0] sm:$0xff]
  %v2120 = vld [vmem:[#allocation2 + $0xc0] sm:$0xff]
  %v2121 = vld [vmem:[#allocation2 + $0xd0] sm:$0xff]
  %v2122 = vld [vmem:[#allocation2 + $0xe0] sm:$0xff]
  %v2123 = vld [vmem:[#allocation2 + $0xf0] sm:$0xff]
  %v2124 = vld [vmem:[#allocation2 + $0x100] sm:$0xff]
  %v2125 = vld [vmem:[#allocation2 + $0x110] sm:$0xff]
  %v2126 = vld [vmem:[#allocation2 + $0x1] sm:$0xff]
  %v2127 = vld [vmem:[#allocation2 + $0x11] sm:$0xff]
  %v2128 = vld [vmem:[#allocation2 + $0x21] sm:$0xff]
  %v2129 = vld [vmem:[#allocation2 + $0x31] sm:$0xff]
  %v2130 = vld [vmem:[#allocation2 + $0x41] sm:$0xff]
  %v2131 = vld [vmem:[#allocation2 + $0x51] sm:$0xff]
  %v2132 = vld [vmem:[#allocation2 + $0x61] sm:$0xff]
  %v2133 = vld [vmem:[#allocation2 + $0x71] sm:$0xff]
  %v2134 = vld [vmem:[#allocation2 + $0xa1] sm:$0xff]
  %v2135 = vld [vmem:[#allocation2 + $0xb1] sm:$0xff]
  %v2136 = vld [vmem:[#allocation2 + $0xc1] sm:$0xff]
  %v2137 = vld [vmem:[#allocation2 + $0xd1] sm:$0xff]
  %v2138 = vld [vmem:[#allocation2 + $0xe1] sm:$0xff]
  %v2139 = vld [vmem:[#allocation2 + $0xf1] sm:$0xff]
  %v2140 = vld [vmem:[#allocation2 + $0x101] sm:$0xff]
  %v2141 = vld [vmem:[#allocation2 + $0x111] sm:$0xff]
  %v2142 = vld [vmem:[#allocation2 + $0x2] sm:$0xff]
  %v2143 = vld [vmem:[#allocation2 + $0x12] sm:$0xff]
  %v2144 = vld [vmem:[#allocation2 + $0x22] sm:$0xff]
  %v2145 = vld [vmem:[#allocation2 + $0x32] sm:$0xff]
  %v2146 = vld [vmem:[#allocation2 + $0x42] sm:$0xff]
  %v2147 = vld [vmem:[#allocation2 + $0x52] sm:$0xff]
  %v2148 = vld [vmem:[#allocation2 + $0x62] sm:$0xff]
  %v2149 = vld [vmem:[#allocation2 + $0x72] sm:$0xff]
  %v2150 = vld [vmem:[#allocation2 + $0xa2] sm:$0xff]
  %v2151 = vld [vmem:[#allocation2 + $0xb2] sm:$0xff]
  %v2152 = vld [vmem:[#allocation2 + $0xc2] sm:$0xff]
  %v2153 = vld [vmem:[#allocation2 + $0xd2] sm:$0xff]
  %v2154 = vld [vmem:[#allocation2 + $0xe2] sm:$0xff]
  %v2155 = vld [vmem:[#allocation2 + $0xf2] sm:$0xff]
  %v2156 = vld [vmem:[#allocation2 + $0x102] sm:$0xff]
  %v2157 = vld [vmem:[#allocation2 + $0x112] sm:$0xff]
  %v2158 = vld [vmem:[%s122] sm:$0xff]
  %v2159 = vld [vmem:[%s122 + $0x10] sm:$0xff]
  %v2160 = vld [vmem:[%s122 + $0x20] sm:$0xff]
  %v2161 = vld [vmem:[%s122 + $0x30] sm:$0xff]
  %v2162 = vld [vmem:[%s122 + $0x40] sm:$0xff]
  %v2163 = vld [vmem:[%s122 + $0x50] sm:$0xff]
  %v2164 = vld [vmem:[%s122 + $0x60] sm:$0xff]
  %v2165 = vld [vmem:[%s122 + $0x70] sm:$0xff]
  %v2166 = vld [vmem:[%s122 + $0xa0] sm:$0xff]
  %v2167 = vld [vmem:[%s122 + $0xb0] sm:$0xff]
  %v2168 = vld [vmem:[%s122 + $0xc0] sm:$0xff]
  %v2169 = vld [vmem:[%s122 + $0xd0] sm:$0xff]
  %v2170 = vld [vmem:[%s122 + $0xe0] sm:$0xff]
  %v2171 = vld [vmem:[%s122 + $0xf0] sm:$0xff]
  %v2172 = vld [vmem:[%s122 + $0x100] sm:$0xff]
  %v2173 = vld [vmem:[%s122 + $0x110] sm:$0xff]
  %v2174 = vld [vmem:[%s122 + $0x1] sm:$0xff]
  %v2175 = vld [vmem:[%s122 + $0x11] sm:$0xff]
  %v2176 = vld [vmem:[%s122 + $0x21] sm:$0xff]
  %v2177 = vld [vmem:[%s122 + $0x31] sm:$0xff]
  %v2178 = vld [vmem:[%s122 + $0x41] sm:$0xff]
  %v2179 = vld [vmem:[%s122 + $0x51] sm:$0xff]
  %v2180 = vld [vmem:[%s122 + $0x61] sm:$0xff]
  %v2181 = vld [vmem:[%s122 + $0x71] sm:$0xff]
  %v2182 = vld [vmem:[%s122 + $0xa1] sm:$0xff]
  %v2183 = vld [vmem:[%s122 + $0xb1] sm:$0xff]
  %v2184 = vld [vmem:[%s122 + $0xc1] sm:$0xff]
  %v2185 = vld [vmem:[%s122 + $0xd1] sm:$0xff]
  %v2186 = vld [vmem:[%s122 + $0xe1] sm:$0xff]
  %v2187 = vld [vmem:[%s122 + $0xf1] sm:$0xff]
  %v2188 = vld [vmem:[%s122 + $0x101] sm:$0xff]
  %v2189 = vld [vmem:[%s122 + $0x111] sm:$0xff]
  %v2190 = vld [vmem:[%s122 + $0x2] sm:$0xff]
  %v2191 = vld [vmem:[%s122 + $0x12] sm:$0xff]
  %v2192 = vld [vmem:[%s122 + $0x22] sm:$0xff]
  %v2193 = vld [vmem:[%s122 + $0x32] sm:$0xff]
  %v2194 = vld [vmem:[%s122 + $0x42] sm:$0xff]
  %v2195 = vld [vmem:[%s122 + $0x52] sm:$0xff]
  %v2196 = vld [vmem:[%s122 + $0x62] sm:$0xff]
  %v2197 = vld [vmem:[%s122 + $0x72] sm:$0xff]
  %v2198 = vld [vmem:[%s122 + $0xa2] sm:$0xff]
  %v2199 = vld [vmem:[%s122 + $0xb2] sm:$0xff]
  %v2200 = vld [vmem:[%s122 + $0xc2] sm:$0xff]
  %v2201 = vld [vmem:[%s122 + $0xd2] sm:$0xff]
  %v2202 = vld [vmem:[%s122 + $0xe2] sm:$0xff]
  %v2203 = vld [vmem:[%s122 + $0xf2] sm:$0xff]
  %v2204 = vld [vmem:[%s122 + $0x102] sm:$0xff]
  %v2205 = vld [vmem:[%s122 + $0x112] sm:$0xff]
  %v2206 = vld [vmem:[%s1014] sm:$0xff]
  %v2207 = vld [vmem:[%s1014 + $0x10] sm:$0xff]
  %v2208 = vld [vmem:[%s1014 + $0x20] sm:$0xff]
  %v2209 = vld [vmem:[%s1014 + $0x30] sm:$0xff]
  %v2210 = vld [vmem:[%s1014 + $0x40] sm:$0xff]
  %v2211 = vld [vmem:[%s1014 + $0x50] sm:$0xff]
  %v2212 = vld [vmem:[%s1014 + $0x60] sm:$0xff]
  %v2213 = vld [vmem:[%s1014 + $0x70] sm:$0xff]
  %v2214 = vld [vmem:[%s1014 + $0xa0] sm:$0xff]
  %v2215 = vld [vmem:[%s1014 + $0xb0] sm:$0xff]
  %v2216 = vld [vmem:[%s1014 + $0xc0] sm:$0xff]
  %v2217 = vld [vmem:[%s1014 + $0xd0] sm:$0xff]
  %v2218 = vld [vmem:[%s1014 + $0xe0] sm:$0xff]
  %v2219 = vld [vmem:[%s1014 + $0xf0] sm:$0xff]
  %v2220 = vld [vmem:[%s1014 + $0x100] sm:$0xff]
  %v2221 = vld [vmem:[%s1014 + $0x110] sm:$0xff]
  %v2222 = vld [vmem:[%s1014 + $0x1] sm:$0xff]
  %v2223 = vld [vmem:[%s1014 + $0x11] sm:$0xff]
  %v2224 = vld [vmem:[%s1014 + $0x21] sm:$0xff]
  %v2225 = vld [vmem:[%s1014 + $0x31] sm:$0xff]
  %v2226 = vld [vmem:[%s1014 + $0x41] sm:$0xff]
  %v2227 = vld [vmem:[%s1014 + $0x51] sm:$0xff]
  %v2228 = vld [vmem:[%s1014 + $0x61] sm:$0xff]
  %v2229 = vld [vmem:[%s1014 + $0x71] sm:$0xff]
  %v2230 = vld [vmem:[%s1014 + $0xa1] sm:$0xff]
  %v2231 = vld [vmem:[%s1014 + $0xb1] sm:$0xff]
  %v2232 = vld [vmem:[%s1014 + $0xc1] sm:$0xff]
  %v2233 = vld [vmem:[%s1014 + $0xd1] sm:$0xff]
  %v2234 = vld [vmem:[%s1014 + $0xe1] sm:$0xff]
  %v2235 = vld [vmem:[%s1014 + $0xf1] sm:$0xff]
  %v2236 = vld [vmem:[%s1014 + $0x101] sm:$0xff]
  %v2237 = vld [vmem:[%s1014 + $0x111] sm:$0xff]
  %v2238 = vld [vmem:[%s1014 + $0x2] sm:$0xff]
  %v2239 = vld [vmem:[%s1014 + $0x12] sm:$0xff]
  %v2240 = vld [vmem:[%s1014 + $0x22] sm:$0xff]
  %v2241 = vld [vmem:[%s1014 + $0x32] sm:$0xff]
  %v2242 = vld [vmem:[%s1014 + $0x42] sm:$0xff]
  %v2243 = vld [vmem:[%s1014 + $0x52] sm:$0xff]
  %v2244 = vld [vmem:[%s1014 + $0x62] sm:$0xff]
  %v2245 = vld [vmem:[%s1014 + $0x72] sm:$0xff]
  %v2246 = vld [vmem:[%s1014 + $0xa2] sm:$0xff]
  %v2247 = vld [vmem:[%s1014 + $0xb2] sm:$0xff]
  %v2248 = vld [vmem:[%s1014 + $0xc2] sm:$0xff]
  %v2249 = vld [vmem:[%s1014 + $0xd2] sm:$0xff]
  %v2250 = vld [vmem:[%s1014 + $0xe2] sm:$0xff]
  %v2251 = vld [vmem:[%s1014 + $0xf2] sm:$0xff]
  %v2252 = vld [vmem:[%s1014 + $0x102] sm:$0xff]
  %v2253 = vld [vmem:[%s1014 + $0x112] sm:$0xff]
  %2270 = vrot.lane.b32.xlu0 %v2126, 8
  %v2271 = vpop.permute.xlu0 %2270
  %2272 = vrot.lane.b32.xlu0 %v2127, 8
  %v2273 = vpop.permute.xlu0 %2272
  %2274 = vrot.lane.b32.xlu0 %v2128, 8
  %v2275 = vpop.permute.xlu0 %2274
  %2276 = vrot.lane.b32.xlu0 %v2129, 8
  %v2277 = vpop.permute.xlu0 %2276
  %2278 = vrot.lane.b32.xlu0 %v2130, 8
  %v2279 = vpop.permute.xlu0 %2278
  %2280 = vrot.lane.b32.xlu0 %v2131, 8
  %v2281 = vpop.permute.xlu0 %2280
  %2282 = vrot.lane.b32.xlu0 %v2132, 8
  %v2283 = vpop.permute.xlu0 %2282
  %2284 = vrot.lane.b32.xlu0 %v2133, 8
  %v2285 = vpop.permute.xlu0 %2284
  %2286 = vrot.lane.b32.xlu0 %v2134, 8
  %v2287 = vpop.permute.xlu0 %2286
  %2288 = vrot.lane.b32.xlu0 %v2135, 8
  %v2289 = vpop.permute.xlu0 %2288
  %2290 = vrot.lane.b32.xlu0 %v2136, 8
  %v2291 = vpop.permute.xlu0 %2290
  %2292 = vrot.lane.b32.xlu0 %v2137, 8
  %v2293 = vpop.permute.xlu0 %2292
  %2294 = vrot.lane.b32.xlu0 %v2138, 8
  %v2295 = vpop.permute.xlu0 %2294
  %2296 = vrot.lane.b32.xlu0 %v2139, 8
  %v2297 = vpop.permute.xlu0 %2296
  %2298 = vrot.lane.b32.xlu0 %v2140, 8
  %v2299 = vpop.permute.xlu0 %2298
  %2300 = vrot.lane.b32.xlu0 %v2141, 8
  %v2301 = vpop.permute.xlu0 %2300
  %2334 = vrot.lane.b32.xlu0 %v2142, 16
  %v2335 = vpop.permute.xlu0 %2334
  %2336 = vrot.lane.b32.xlu0 %v2143, 16
  %v2337 = vpop.permute.xlu0 %2336
  %2338 = vrot.lane.b32.xlu0 %v2144, 16
  %v2339 = vpop.permute.xlu0 %2338
  %2340 = vrot.lane.b32.xlu0 %v2145, 16
  %v2341 = vpop.permute.xlu0 %2340
  %2342 = vrot.lane.b32.xlu0 %v2146, 16
  %v2343 = vpop.permute.xlu0 %2342
  %2344 = vrot.lane.b32.xlu0 %v2147, 16
  %v2345 = vpop.permute.xlu0 %2344
  %2346 = vrot.lane.b32.xlu0 %v2148, 16
  %v2347 = vpop.permute.xlu0 %2346
  %2348 = vrot.lane.b32.xlu0 %v2149, 16
  %v2349 = vpop.permute.xlu0 %2348
  %2350 = vrot.lane.b32.xlu0 %v2150, 16
  %v2351 = vpop.permute.xlu0 %2350
  %2352 = vrot.lane.b32.xlu0 %v2151, 16
  %v2353 = vpop.permute.xlu0 %2352
  %2354 = vrot.lane.b32.xlu0 %v2152, 16
  %v2355 = vpop.permute.xlu0 %2354
  %2356 = vrot.lane.b32.xlu0 %v2153, 16
  %v2357 = vpop.permute.xlu0 %2356
  %2358 = vrot.lane.b32.xlu0 %v2154, 16
  %v2359 = vpop.permute.xlu0 %2358
  %2360 = vrot.lane.b32.xlu0 %v2155, 16
  %v2361 = vpop.permute.xlu0 %2360
  %2362 = vrot.lane.b32.xlu0 %v2156, 16
  %v2363 = vpop.permute.xlu0 %2362
  %2364 = vrot.lane.b32.xlu0 %v2157, 16
  %v2365 = vpop.permute.xlu0 %2364
  %2398 = vrot.lane.b32.xlu0 %v2158, 24
  %v2399 = vpop.permute.xlu0 %2398
  %2400 = vrot.lane.b32.xlu0 %v2159, 24
  %v2401 = vpop.permute.xlu0 %2400
  %2402 = vrot.lane.b32.xlu0 %v2160, 24
  %v2403 = vpop.permute.xlu0 %2402
  %2404 = vrot.lane.b32.xlu0 %v2161, 24
  %v2405 = vpop.permute.xlu0 %2404
  %2406 = vrot.lane.b32.xlu0 %v2162, 24
  %v2407 = vpop.permute.xlu0 %2406
  %2408 = vrot.lane.b32.xlu0 %v2163, 24
  %v2409 = vpop.permute.xlu0 %2408
  %2410 = vrot.lane.b32.xlu0 %v2164, 24
  %v2411 = vpop.permute.xlu0 %2410
  %2412 = vrot.lane.b32.xlu0 %v2165, 24
  %v2413 = vpop.permute.xlu0 %2412
  %2414 = vrot.lane.b32.xlu0 %v2166, 24
  %v2415 = vpop.permute.xlu0 %2414
  %2416 = vrot.lane.b32.xlu0 %v2167, 24
  %v2417 = vpop.permute.xlu0 %2416
  %2418 = vrot.lane.b32.xlu0 %v2168, 24
  %v2419 = vpop.permute.xlu0 %2418
  %2420 = vrot.lane.b32.xlu0 %v2169, 24
  %v2421 = vpop.permute.xlu0 %2420
  %2422 = vrot.lane.b32.xlu0 %v2170, 24
  %v2423 = vpop.permute.xlu0 %2422
  %2424 = vrot.lane.b32.xlu0 %v2171, 24
  %v2425 = vpop.permute.xlu0 %2424
  %2426 = vrot.lane.b32.xlu0 %v2172, 24
  %v2427 = vpop.permute.xlu0 %2426
  %2428 = vrot.lane.b32.xlu0 %v2173, 24
  %v2429 = vpop.permute.xlu0 %2428
  %2462 = vrot.lane.b32.xlu0 %v2174, 32
  %v2463 = vpop.permute.xlu0 %2462
  %2464 = vrot.lane.b32.xlu0 %v2175, 32
  %v2465 = vpop.permute.xlu0 %2464
  %2466 = vrot.lane.b32.xlu0 %v2176, 32
  %v2467 = vpop.permute.xlu0 %2466
  %2468 = vrot.lane.b32.xlu0 %v2177, 32
  %v2469 = vpop.permute.xlu0 %2468
  %2470 = vrot.lane.b32.xlu0 %v2178, 32
  %v2471 = vpop.permute.xlu0 %2470
  %2472 = vrot.lane.b32.xlu0 %v2179, 32
  %v2473 = vpop.permute.xlu0 %2472
  %2474 = vrot.lane.b32.xlu0 %v2180, 32
  %v2475 = vpop.permute.xlu0 %2474
  %2476 = vrot.lane.b32.xlu0 %v2181, 32
  %v2477 = vpop.permute.xlu0 %2476
  %2478 = vrot.lane.b32.xlu0 %v2182, 32
  %v2479 = vpop.permute.xlu0 %2478
  %2480 = vrot.lane.b32.xlu0 %v2183, 32
  %v2481 = vpop.permute.xlu0 %2480
  %2482 = vrot.lane.b32.xlu0 %v2184, 32
  %v2483 = vpop.permute.xlu0 %2482
  %2484 = vrot.lane.b32.xlu0 %v2185, 32
  %v2485 = vpop.permute.xlu0 %2484
  %2486 = vrot.lane.b32.xlu0 %v2186, 32
  %v2487 = vpop.permute.xlu0 %2486
  %2488 = vrot.lane.b32.xlu0 %v2187, 32
  %v2489 = vpop.permute.xlu0 %2488
  %2490 = vrot.lane.b32.xlu0 %v2188, 32
  %v2491 = vpop.permute.xlu0 %2490
  %2492 = vrot.lane.b32.xlu0 %v2189, 32
  %v2493 = vpop.permute.xlu0 %2492
  %2526 = vrot.lane.b32.xlu0 %v2190, 40
  %v2527 = vpop.permute.xlu0 %2526
  %2528 = vrot.lane.b32.xlu0 %v2191, 40
  %v2529 = vpop.permute.xlu0 %2528
  %2530 = vrot.lane.b32.xlu0 %v2192, 40
  %v2531 = vpop.permute.xlu0 %2530
  %2532 = vrot.lane.b32.xlu0 %v2193, 40
  %v2533 = vpop.permute.xlu0 %2532
  %2534 = vrot.lane.b32.xlu0 %v2194, 40
  %v2535 = vpop.permute.xlu0 %2534
  %2536 = vrot.lane.b32.xlu0 %v2195, 40
  %v2537 = vpop.permute.xlu0 %2536
  %2538 = vrot.lane.b32.xlu0 %v2196, 40
  %v2539 = vpop.permute.xlu0 %2538
  %2540 = vrot.lane.b32.xlu0 %v2197, 40
  %v2541 = vpop.permute.xlu0 %2540
  %2542 = vrot.lane.b32.xlu0 %v2198, 40
  %v2543 = vpop.permute.xlu0 %2542
  %2544 = vrot.lane.b32.xlu0 %v2199, 40
  %v2545 = vpop.permute.xlu0 %2544
  %2546 = vrot.lane.b32.xlu0 %v2200, 40
  %v2547 = vpop.permute.xlu0 %2546
  %2548 = vrot.lane.b32.xlu0 %v2201, 40
  %v2549 = vpop.permute.xlu0 %2548
  %2550 = vrot.lane.b32.xlu0 %v2202, 40
  %v2551 = vpop.permute.xlu0 %2550
  %2552 = vrot.lane.b32.xlu0 %v2203, 40
  %v2553 = vpop.permute.xlu0 %2552
  %2554 = vrot.lane.b32.xlu0 %v2204, 40
  %v2555 = vpop.permute.xlu0 %2554
  %2556 = vrot.lane.b32.xlu0 %v2205, 40
  %v2557 = vpop.permute.xlu0 %2556
  %2590 = vrot.lane.b32.xlu0 %v2206, 48
  %v2591 = vpop.permute.xlu0 %2590
  %2592 = vrot.lane.b32.xlu0 %v2207, 48
  %v2593 = vpop.permute.xlu0 %2592
  %2594 = vrot.lane.b32.xlu0 %v2208, 48
  %v2595 = vpop.permute.xlu0 %2594
  %2596 = vrot.lane.b32.xlu0 %v2209, 48
  %v2597 = vpop.permute.xlu0 %2596
  %2598 = vrot.lane.b32.xlu0 %v2210, 48
  %v2599 = vpop.permute.xlu0 %2598
  %2600 = vrot.lane.b32.xlu0 %v2211, 48
  %v2601 = vpop.permute.xlu0 %2600
  %2602 = vrot.lane.b32.xlu0 %v2212, 48
  %v2603 = vpop.permute.xlu0 %2602
  %2604 = vrot.lane.b32.xlu0 %v2213, 48
  %v2605 = vpop.permute.xlu0 %2604
  %2606 = vrot.lane.b32.xlu0 %v2214, 48
  %v2607 = vpop.permute.xlu0 %2606
  %2608 = vrot.lane.b32.xlu0 %v2215, 48
  %v2609 = vpop.permute.xlu0 %2608
  %2610 = vrot.lane.b32.xlu0 %v2216, 48
  %v2611 = vpop.permute.xlu0 %2610
  %2612 = vrot.lane.b32.xlu0 %v2217, 48
  %v2613 = vpop.permute.xlu0 %2612
  %2614 = vrot.lane.b32.xlu0 %v2218, 48
  %v2615 = vpop.permute.xlu0 %2614
  %2616 = vrot.lane.b32.xlu0 %v2219, 48
  %v2617 = vpop.permute.xlu0 %2616
  %2618 = vrot.lane.b32.xlu0 %v2220, 48
  %v2619 = vpop.permute.xlu0 %2618
  %2620 = vrot.lane.b32.xlu0 %v2221, 48
  %v2621 = vpop.permute.xlu0 %2620
  %2654 = vrot.lane.b32.xlu0 %v2222, 56
  %v2655 = vpop.permute.xlu0 %2654
  %2656 = vrot.lane.b32.xlu0 %v2223, 56
  %v2657 = vpop.permute.xlu0 %2656
  %2658 = vrot.lane.b32.xlu0 %v2224, 56
  %v2659 = vpop.permute.xlu0 %2658
  %2660 = vrot.lane.b32.xlu0 %v2225, 56
  %v2661 = vpop.permute.xlu0 %2660
  %2662 = vrot.lane.b32.xlu0 %v2226, 56
  %v2663 = vpop.permute.xlu0 %2662
  %2664 = vrot.lane.b32.xlu0 %v2227, 56
  %v2665 = vpop.permute.xlu0 %2664
  %2666 = vrot.lane.b32.xlu0 %v2228, 56
  %v2667 = vpop.permute.xlu0 %2666
  %2668 = vrot.lane.b32.xlu0 %v2229, 56
  %v2669 = vpop.permute.xlu0 %2668
  %2670 = vrot.lane.b32.xlu0 %v2230, 56
  %v2671 = vpop.permute.xlu0 %2670
  %2672 = vrot.lane.b32.xlu0 %v2231, 56
  %v2673 = vpop.permute.xlu0 %2672
  %2674 = vrot.lane.b32.xlu0 %v2232, 56
  %v2675 = vpop.permute.xlu0 %2674
  %2676 = vrot.lane.b32.xlu0 %v2233, 56
  %v2677 = vpop.permute.xlu0 %2676
  %2678 = vrot.lane.b32.xlu0 %v2234, 56
  %v2679 = vpop.permute.xlu0 %2678
  %2680 = vrot.lane.b32.xlu0 %v2235, 56
  %v2681 = vpop.permute.xlu0 %2680
  %2682 = vrot.lane.b32.xlu0 %v2236, 56
  %v2683 = vpop.permute.xlu0 %2682
  %2684 = vrot.lane.b32.xlu0 %v2237, 56
  %v2685 = vpop.permute.xlu0 %2684
  %2718 = vrot.lane.b32.xlu0 %v2238, 64
  %v2719 = vpop.permute.xlu0 %2718
  %2720 = vrot.lane.b32.xlu0 %v2239, 64
  %v2721 = vpop.permute.xlu0 %2720
  %2722 = vrot.lane.b32.xlu0 %v2240, 64
  %v2723 = vpop.permute.xlu0 %2722
  %2724 = vrot.lane.b32.xlu0 %v2241, 64
  %v2725 = vpop.permute.xlu0 %2724
  %2726 = vrot.lane.b32.xlu0 %v2242, 64
  %v2727 = vpop.permute.xlu0 %2726
  %2728 = vrot.lane.b32.xlu0 %v2243, 64
  %v2729 = vpop.permute.xlu0 %2728
  %2730 = vrot.lane.b32.xlu0 %v2244, 64
  %v2731 = vpop.permute.xlu0 %2730
  %2732 = vrot.lane.b32.xlu0 %v2245, 64
  %v2733 = vpop.permute.xlu0 %2732
  %2734 = vrot.lane.b32.xlu0 %v2246, 64
  %v2735 = vpop.permute.xlu0 %2734
  %2736 = vrot.lane.b32.xlu0 %v2247, 64
  %v2737 = vpop.permute.xlu0 %2736
  %2738 = vrot.lane.b32.xlu0 %v2248, 64
  %v2739 = vpop.permute.xlu0 %2738
  %2740 = vrot.lane.b32.xlu0 %v2249, 64
  %v2741 = vpop.permute.xlu0 %2740
  %2742 = vrot.lane.b32.xlu0 %v2250, 64
  %v2743 = vpop.permute.xlu0 %2742
  %2744 = vrot.lane.b32.xlu0 %v2251, 64
  %v2745 = vpop.permute.xlu0 %2744
  %2746 = vrot.lane.b32.xlu0 %v2252, 64
  %v2747 = vpop.permute.xlu0 %2746
  %2748 = vrot.lane.b32.xlu0 %v2253, 64
  %v2749 = vpop.permute.xlu0 %2748
  %v2766 = vsel %vm851, %v2110, %v2271
  %v2767 = vsel %vm851, %v2111, %v2273
  %v2768 = vsel %vm851, %v2112, %v2275
  %v2769 = vsel %vm851, %v2113, %v2277
  %v2770 = vsel %vm851, %v2114, %v2279
  %v2771 = vsel %vm851, %v2115, %v2281
  %v2772 = vsel %vm851, %v2116, %v2283
  %v2773 = vsel %vm851, %v2117, %v2285
  %v2774 = vsel %vm851, %v2118, %v2287
  %v2775 = vsel %vm851, %v2119, %v2289
  %v2776 = vsel %vm851, %v2120, %v2291
  %v2777 = vsel %vm851, %v2121, %v2293
  %v2778 = vsel %vm851, %v2122, %v2295
  %v2779 = vsel %vm851, %v2123, %v2297
  %v2780 = vsel %vm851, %v2124, %v2299
  %v2781 = vsel %vm851, %v2125, %v2301
  %v2782 = vsel %vm1591, %v2766, %v2335
  %v2783 = vsel %vm1591, %v2767, %v2337
  %v2784 = vsel %vm1591, %v2768, %v2339
  %v2785 = vsel %vm1591, %v2769, %v2341
  %v2786 = vsel %vm1591, %v2770, %v2343
  %v2787 = vsel %vm1591, %v2771, %v2345
  %v2788 = vsel %vm1591, %v2772, %v2347
  %v2789 = vsel %vm1591, %v2773, %v2349
  %v2790 = vsel %vm1591, %v2774, %v2351
  %v2791 = vsel %vm1591, %v2775, %v2353
  %v2792 = vsel %vm1591, %v2776, %v2355
  %v2793 = vsel %vm1591, %v2777, %v2357
  %v2794 = vsel %vm1591, %v2778, %v2359
  %v2795 = vsel %vm1591, %v2779, %v2361
  %v2796 = vsel %vm1591, %v2780, %v2363
  %v2797 = vsel %vm1591, %v2781, %v2365
  %v2798 = vsel %vm673, %v2782, %v2399
  %v2799 = vsel %vm673, %v2783, %v2401
  %v2800 = vsel %vm673, %v2784, %v2403
  %v2801 = vsel %vm673, %v2785, %v2405
  %v2802 = vsel %vm673, %v2786, %v2407
  %v2803 = vsel %vm673, %v2787, %v2409
  %v2804 = vsel %vm673, %v2788, %v2411
  %v2805 = vsel %vm673, %v2789, %v2413
  %v2806 = vsel %vm673, %v2790, %v2415
  %v2807 = vsel %vm673, %v2791, %v2417
  %v2808 = vsel %vm673, %v2792, %v2419
  %v2809 = vsel %vm673, %v2793, %v2421
  %v2810 = vsel %vm673, %v2794, %v2423
  %v2811 = vsel %vm673, %v2795, %v2425
  %v2812 = vsel %vm673, %v2796, %v2427
  %v2813 = vsel %vm673, %v2797, %v2429
  %v2814 = vsel %vm1624, %v2798, %v2463
  %v2815 = vsel %vm1624, %v2799, %v2465
  %v2816 = vsel %vm1624, %v2800, %v2467
  %v2817 = vsel %vm1624, %v2801, %v2469
  %v2818 = vsel %vm1624, %v2802, %v2471
  %v2819 = vsel %vm1624, %v2803, %v2473
  %v2820 = vsel %vm1624, %v2804, %v2475
  %v2821 = vsel %vm1624, %v2805, %v2477
  %v2822 = vsel %vm1624, %v2806, %v2479
  %v2823 = vsel %vm1624, %v2807, %v2481
  %v2824 = vsel %vm1624, %v2808, %v2483
  %v2825 = vsel %vm1624, %v2809, %v2485
  %v2826 = vsel %vm1624, %v2810, %v2487
  %v2827 = vsel %vm1624, %v2811, %v2489
  %v2828 = vsel %vm1624, %v2812, %v2491
  %v2829 = vsel %vm1624, %v2813, %v2493
  %v2830 = vsel %vm1641, %v2814, %v2527
  %v2831 = vsel %vm1641, %v2815, %v2529
  %v2832 = vsel %vm1641, %v2816, %v2531
  %v2833 = vsel %vm1641, %v2817, %v2533
  %v2834 = vsel %vm1641, %v2818, %v2535
  %v2835 = vsel %vm1641, %v2819, %v2537
  %v2836 = vsel %vm1641, %v2820, %v2539
  %v2837 = vsel %vm1641, %v2821, %v2541
  %v2838 = vsel %vm1641, %v2822, %v2543
  %v2839 = vsel %vm1641, %v2823, %v2545
  %v2840 = vsel %vm1641, %v2824, %v2547
  %v2841 = vsel %vm1641, %v2825, %v2549
  %v2842 = vsel %vm1641, %v2826, %v2551
  %v2843 = vsel %vm1641, %v2827, %v2553
  %v2844 = vsel %vm1641, %v2828, %v2555
  %v2845 = vsel %vm1641, %v2829, %v2557
  %v2846 = vsel %vm1658, %v2830, %v2591
  %v2847 = vsel %vm1658, %v2831, %v2593
  %v2848 = vsel %vm1658, %v2832, %v2595
  %v2849 = vsel %vm1658, %v2833, %v2597
  %v2850 = vsel %vm1658, %v2834, %v2599
  %v2851 = vsel %vm1658, %v2835, %v2601
  %v2852 = vsel %vm1658, %v2836, %v2603
  %v2853 = vsel %vm1658, %v2837, %v2605
  %v2854 = vsel %vm1658, %v2838, %v2607
  %v2855 = vsel %vm1658, %v2839, %v2609
  %v2856 = vsel %vm1658, %v2840, %v2611
  %v2857 = vsel %vm1658, %v2841, %v2613
  %v2858 = vsel %vm1658, %v2842, %v2615
  %v2859 = vsel %vm1658, %v2843, %v2617
  %v2860 = vsel %vm1658, %v2844, %v2619
  %v2861 = vsel %vm1658, %v2845, %v2621
  %v2862 = vsel %vm1675, %v2846, %v2655
  %v2863 = vsel %vm1675, %v2847, %v2657
  %v2864 = vsel %vm1675, %v2848, %v2659
  %v2865 = vsel %vm1675, %v2849, %v2661
  %v2866 = vsel %vm1675, %v2850, %v2663
  %v2867 = vsel %vm1675, %v2851, %v2665
  %v2868 = vsel %vm1675, %v2852, %v2667
  %v2869 = vsel %vm1675, %v2853, %v2669
  %v2870 = vsel %vm1675, %v2854, %v2671
  %v2871 = vsel %vm1675, %v2855, %v2673
  %v2872 = vsel %vm1675, %v2856, %v2675
  %v2873 = vsel %vm1675, %v2857, %v2677
  %v2874 = vsel %vm1675, %v2858, %v2679
  %v2875 = vsel %vm1675, %v2859, %v2681
  %v2876 = vsel %vm1675, %v2860, %v2683
  %v2877 = vsel %vm1675, %v2861, %v2685
  %v2878 = vsel %vm1692, %v2862, %v2719
  %v2879 = vsel %vm1692, %v2863, %v2721
  %v2880 = vsel %vm1692, %v2864, %v2723
  %v2881 = vsel %vm1692, %v2865, %v2725
  %v2882 = vsel %vm1692, %v2866, %v2727
  %v2883 = vsel %vm1692, %v2867, %v2729
  %v2884 = vsel %vm1692, %v2868, %v2731
  %v2885 = vsel %vm1692, %v2869, %v2733
  %v2886 = vsel %vm1692, %v2870, %v2735
  %v2887 = vsel %vm1692, %v2871, %v2737
  %v2888 = vsel %vm1692, %v2872, %v2739
  %v2889 = vsel %vm1692, %v2873, %v2741
  %v2890 = vsel %vm1692, %v2874, %v2743
  %v2891 = vsel %vm1692, %v2875, %v2745
  %v2892 = vsel %vm1692, %v2876, %v2747
  %v2893 = vsel %vm1692, %v2877, %v2749
  %v2895 = vsel %vm1709, %v2878, 0
  %v2898 = vsel %vm1709, %v2879, 0
  %v2901 = vsel %vm1709, %v2880, 0
  %v2904 = vsel %vm1709, %v2881, 0
  %v2907 = vsel %vm1709, %v2882, 0
  %v2910 = vsel %vm1709, %v2883, 0
  %v2913 = vsel %vm1709, %v2884, 0
  %v2916 = vsel %vm1709, %v2885, 0
  %v2919 = vsel %vm1709, %v2886, 0
  %v2922 = vsel %vm1709, %v2887, 0
  %v2925 = vsel %vm1709, %v2888, 0
  %v2928 = vsel %vm1709, %v2889, 0
  %v2931 = vsel %vm1709, %v2890, 0
  %v2934 = vsel %vm1709, %v2891, 0
  %v2937 = vsel %vm1709, %v2892, 0
  %v2940 = vsel %vm1709, %v2893, 0
  %2942 = vmatpush.msra.mxu0 0.0
  %2943 = vmatpush.msra.mxu0 0.0
  %2944 = vmatpush.msra.mxu0 0.0
  %2945 = vmatpush.msra.mxu0 0.0
  %2946 = vmatpush.msra.mxu0 0.0
  %2947 = vmatpush.msra.mxu0 0.0
  %2948 = vmatpush.msra.mxu0 0.0
  %2949 = vmatpush.msra.mxu0 %v2043
  %2950 = vmatpush.msra.mxu0 %v2042
  %2951 = vmatpush.msra.mxu0 %v2041
  %2952 = vmatpush.msra.mxu0 %v2040
  %2953 = vmatpush.msra.mxu0 %v2039
  %2954 = vmatpush.msra.mxu0 %v2038
  %2955 = vmatpush.msra.mxu0 %v2037
  %2956 = vmatpush.msra.mxu0 %v2036
  %2957 = vmatpush.msra.mxu0 %v2035
  %2958 = vmatmul.f32.gmra.mxu0 %v2895
  %v2959 = vpop.f32.mrf.mxu0
  %v2960 = vadd.f32 0.0, %v2959
  %2961 = vmatmul.f32.gmra.mxu0 %v2898
  %v2962 = vpop.f32.mrf.mxu0
  %v2963 = vadd.f32 0.0, %v2962
  %2964 = vmatmul.f32.gmra.mxu0 %v2901
  %v2965 = vpop.f32.mrf.mxu0
  %v2966 = vadd.f32 0.0, %v2965
  %2967 = vmatmul.f32.gmra.mxu0 %v2904
  %v2968 = vpop.f32.mrf.mxu0
  %v2969 = vadd.f32 0.0, %v2968
  %2970 = vmatmul.f32.gmra.mxu0 %v2907
  %v2971 = vpop.f32.mrf.mxu0
  %v2972 = vadd.f32 0.0, %v2971
  %2973 = vmatmul.f32.gmra.mxu0 %v2910
  %v2974 = vpop.f32.mrf.mxu0
  %v2975 = vadd.f32 0.0, %v2974
  %2976 = vmatmul.f32.gmra.mxu0 %v2913
  %v2977 = vpop.f32.mrf.mxu0
  %v2978 = vadd.f32 0.0, %v2977
  %2979 = vmatmul.f32.gmra.mxu0 %v2916
  %v2980 = vpop.f32.mrf.mxu0
  %v2981 = vadd.f32 0.0, %v2980
  %2982 = vmatmul.f32.gmra.mxu0 %v2919
  %v2983 = vpop.f32.mrf.mxu0
  %v2984 = vadd.f32 0.0, %v2983
  %2985 = vmatmul.f32.gmra.mxu0 %v2922
  %v2986 = vpop.f32.mrf.mxu0
  %v2987 = vadd.f32 0.0, %v2986
  %2988 = vmatmul.f32.gmra.mxu0 %v2925
  %v2989 = vpop.f32.mrf.mxu0
  %v2990 = vadd.f32 0.0, %v2989
  %2991 = vmatmul.f32.gmra.mxu0 %v2928
  %v2992 = vpop.f32.mrf.mxu0
  %v2993 = vadd.f32 0.0, %v2992
  %2994 = vmatmul.f32.gmra.mxu0 %v2931
  %v2995 = vpop.f32.mrf.mxu0
  %v2996 = vadd.f32 0.0, %v2995
  %2997 = vmatmul.f32.gmra.mxu0 %v2934
  %v2998 = vpop.f32.mrf.mxu0
  %v2999 = vadd.f32 0.0, %v2998
  %3000 = vmatmul.f32.gmra.mxu0 %v2937
  %v3001 = vpop.f32.mrf.mxu0
  %v3002 = vadd.f32 0.0, %v3001
  %3003 = vmatmul.f32.gmra.mxu0 %v2940
  %v3004 = vpop.f32.mrf.mxu0
  %v3005 = vadd.f32 0.0, %v3004
  %3006 = vdwg.mxu0
  %v3007 = vsel %vm851, %v2960, 0.0
  %v3008 = vsel %vm851, %v2963, 0.0
  %v3009 = vadd.f32 %v3007, %v3008
  %v3010 = vsel %vm851, %v2966, 0.0
  %v3011 = vadd.f32 %v3009, %v3010
  %v3012 = vsel %vm851, %v2969, 0.0
  %v3013 = vadd.f32 %v3011, %v3012
  %v3014 = vsel %vm851, %v2972, 0.0
  %v3015 = vadd.f32 %v3013, %v3014
  %v3016 = vsel %vm851, %v2975, 0.0
  %v3017 = vadd.f32 %v3015, %v3016
  %v3018 = vsel %vm851, %v2978, 0.0
  %v3019 = vadd.f32 %v3017, %v3018
  %v3020 = vsel %vm851, %v2981, 0.0
  %v3021 = vadd.f32 %v3019, %v3020
  %v3022 = vsel %vm851, %v2984, 0.0
  %v3023 = vadd.f32 %v3021, %v3022
  %v3024 = vsel %vm851, %v2987, 0.0
  %v3025 = vadd.f32 %v3023, %v3024
  %v3026 = vsel %vm851, %v2990, 0.0
  %v3027 = vadd.f32 %v3025, %v3026
  %v3028 = vsel %vm851, %v2993, 0.0
  %v3029 = vadd.f32 %v3027, %v3028
  %v3030 = vsel %vm851, %v2996, 0.0
  %v3031 = vadd.f32 %v3029, %v3030
  %v3032 = vsel %vm851, %v2999, 0.0
  %v3033 = vadd.f32 %v3031, %v3032
  %v3034 = vsel %vm851, %v3002, 0.0
  %v3035 = vadd.f32 %v3033, %v3034
  %v3036 = vsel %vm851, %v3005, 0.0
  %v3037 = vadd.f32 %v3035, %v3036
  %v3038 = vrot.slane %v3037, 4
  %v3039 = vadd.f32 %v3037, %v3038
  %v3040 = vrot.slane %v3039, 2
  %v3041 = vadd.f32 %v3039, %v3040
  %v3042 = vrot.slane %v3041, 1
  %v3043 = vadd.f32 %v3041, %v3042
  %v3044 = vmul.f32 %v3043, %v1866
  %v3045 = vsub.f32 %v2960, %v3044
  %v3046 = vsub.f32 %v2963, %v3044
  %v3047 = vsub.f32 %v2966, %v3044
  %v3048 = vsub.f32 %v2969, %v3044
  %v3049 = vsub.f32 %v2972, %v3044
  %v3050 = vsub.f32 %v2975, %v3044
  %v3051 = vsub.f32 %v2978, %v3044
  %v3052 = vsub.f32 %v2981, %v3044
  %v3053 = vsub.f32 %v2984, %v3044
  %v3054 = vsub.f32 %v2987, %v3044
  %v3055 = vsub.f32 %v2990, %v3044
  %v3056 = vsub.f32 %v2993, %v3044
  %v3057 = vsub.f32 %v2996, %v3044
  %v3058 = vsub.f32 %v2999, %v3044
  %v3059 = vsub.f32 %v3002, %v3044
  %v3060 = vsub.f32 %v3005, %v3044
  %v3061 = vmul.f32 %v3045, %v3045
  %v3062 = vmul.f32 %v3046, %v3046
  %v3063 = vmul.f32 %v3047, %v3047
  %v3064 = vmul.f32 %v3048, %v3048
  %v3065 = vmul.f32 %v3049, %v3049
  %v3066 = vmul.f32 %v3050, %v3050
  %v3067 = vmul.f32 %v3051, %v3051
  %v3068 = vmul.f32 %v3052, %v3052
  %v3069 = vmul.f32 %v3053, %v3053
  %v3070 = vmul.f32 %v3054, %v3054
  %v3071 = vmul.f32 %v3055, %v3055
  %v3072 = vmul.f32 %v3056, %v3056
  %v3073 = vmul.f32 %v3057, %v3057
  %v3074 = vmul.f32 %v3058, %v3058
  %v3075 = vmul.f32 %v3059, %v3059
  %v3076 = vmul.f32 %v3060, %v3060
  %v3077 = vsel %vm851, %v3061, 0.0
  %v3078 = vsel %vm851, %v3062, 0.0
  %v3079 = vadd.f32 %v3077, %v3078
  %v3080 = vsel %vm851, %v3063, 0.0
  %v3081 = vadd.f32 %v3079, %v3080
  %v3082 = vsel %vm851, %v3064, 0.0
  %v3083 = vadd.f32 %v3081, %v3082
  %v3084 = vsel %vm851, %v3065, 0.0
  %v3085 = vadd.f32 %v3083, %v3084
  %v3086 = vsel %vm851, %v3066, 0.0
  %v3087 = vadd.f32 %v3085, %v3086
  %v3088 = vsel %vm851, %v3067, 0.0
  %v3089 = vadd.f32 %v3087, %v3088
  %v3090 = vsel %vm851, %v3068, 0.0
  %v3091 = vadd.f32 %v3089, %v3090
  %v3092 = vsel %vm851, %v3069, 0.0
  %v3093 = vadd.f32 %v3091, %v3092
  %v3094 = vsel %vm851, %v3070, 0.0
  %v3095 = vadd.f32 %v3093, %v3094
  %v3096 = vsel %vm851, %v3071, 0.0
  %v3097 = vadd.f32 %v3095, %v3096
  %v3098 = vsel %vm851, %v3072, 0.0
  %v3099 = vadd.f32 %v3097, %v3098
  %v3100 = vsel %vm851, %v3073, 0.0
  %v3101 = vadd.f32 %v3099, %v3100
  %v3102 = vsel %vm851, %v3074, 0.0
  %v3103 = vadd.f32 %v3101, %v3102
  %v3104 = vsel %vm851, %v3075, 0.0
  %v3105 = vadd.f32 %v3103, %v3104
  %v3106 = vsel %vm851, %v3076, 0.0
  %v3107 = vadd.f32 %v3105, %v3106
  %v3108 = vrot.slane %v3107, 4
  %v3109 = vadd.f32 %v3107, %v3108
  %v3110 = vrot.slane %v3109, 2
  %v3111 = vadd.f32 %v3109, %v3110
  %v3112 = vrot.slane %v3111, 1
  %v3113 = vadd.f32 %v3111, %v3112
  %v3114 = vmul.f32 %v3113, %v1866
  %v3115 = vadd.f32 %v3114, 1e-05
  %v3116 = vrsqrt.pop %v3115
  %v3117 = vmul.f32 %v3116, %v3115
  %v3118 = vmul.f32 %v3117, %v3116
  %v3119 = vmul.f32 0.5, %v3118
  %v3120 = vsub.f32 1.5, %v3119
  %v3121 = vmul.f32 %v3116, %v3120
  %vm3122 = vweird.f32 %v3115
  %vm3123 = vweird.f32 %v3116
  %vm3124 = vmor %vm3122, %vm3123
  %v3125 = vsel %vm3124, %v3116, %v3121
  %v3126 = vmul.f32 %v3045, %v3125
  %v3127 = vmul.f32 %v3046, %v3125
  %v3128 = vmul.f32 %v3047, %v3125
  %v3129 = vmul.f32 %v3048, %v3125
  %v3130 = vmul.f32 %v3049, %v3125
  %v3131 = vmul.f32 %v3050, %v3125
  %v3132 = vmul.f32 %v3051, %v3125
  %v3133 = vmul.f32 %v3052, %v3125
  %v3134 = vmul.f32 %v3053, %v3125
  %v3135 = vmul.f32 %v3054, %v3125
  %v3136 = vmul.f32 %v3055, %v3125
  %v3137 = vmul.f32 %v3056, %v3125
  %v3138 = vmul.f32 %v3057, %v3125
  %v3139 = vmul.f32 %v3058, %v3125
  %v3140 = vmul.f32 %v3059, %v3125
  %v3141 = vmul.f32 %v3060, %v3125
  %v3143 = vperm.slane %v2044, 0
  %v3145 = vmul.f32 %v3126, %v3143
  %v3146 = vmul.f32 %v3127, %v3143
  %v3147 = vmul.f32 %v3128, %v3143
  %v3148 = vmul.f32 %v3129, %v3143
  %v3149 = vmul.f32 %v3130, %v3143
  %v3150 = vmul.f32 %v3131, %v3143
  %v3151 = vmul.f32 %v3132, %v3143
  %v3152 = vmul.f32 %v3133, %v3143
  %v3153 = vmul.f32 %v3134, %v3143
  %v3154 = vmul.f32 %v3135, %v3143
  %v3155 = vmul.f32 %v3136, %v3143
  %v3156 = vmul.f32 %v3137, %v3143
  %v3157 = vmul.f32 %v3138, %v3143
  %v3158 = vmul.f32 %v3139, %v3143
  %v3159 = vmul.f32 %v3140, %v3143
  %v3160 = vmul.f32 %v3141, %v3143
  %v3162 = vperm.slane %v2045, 0
  %v3164 = vadd.f32 %v3145, %v3162
  %v3165 = vadd.f32 %v3146, %v3162
  %v3166 = vadd.f32 %v3147, %v3162
  %v3167 = vadd.f32 %v3148, %v3162
  %v3168 = vadd.f32 %v3149, %v3162
  %v3169 = vadd.f32 %v3150, %v3162
  %v3170 = vadd.f32 %v3151, %v3162
  %v3171 = vadd.f32 %v3152, %v3162
  %v3172 = vadd.f32 %v3153, %v3162
  %v3173 = vadd.f32 %v3154, %v3162
  %v3174 = vadd.f32 %v3155, %v3162
  %v3175 = vadd.f32 %v3156, %v3162
  %v3176 = vadd.f32 %v3157, %v3162
  %v3177 = vadd.f32 %v3158, %v3162
  %v3178 = vadd.f32 %v3159, %v3162
  %v3179 = vadd.f32 %v3160, %v3162
  %v3180 = vmul.f32 %v3164, 0.2
  %v3181 = vmul.f32 %v3165, 0.2
  %v3182 = vmul.f32 %v3166, 0.2
  %v3183 = vmul.f32 %v3167, 0.2
  %v3184 = vmul.f32 %v3168, 0.2
  %v3185 = vmul.f32 %v3169, 0.2
  %v3186 = vmul.f32 %v3170, 0.2
  %v3187 = vmul.f32 %v3171, 0.2
  %v3188 = vmul.f32 %v3172, 0.2
  %v3189 = vmul.f32 %v3173, 0.2
  %v3190 = vmul.f32 %v3174, 0.2
  %v3191 = vmul.f32 %v3175, 0.2
  %v3192 = vmul.f32 %v3176, 0.2
  %v3193 = vmul.f32 %v3177, 0.2
  %v3194 = vmul.f32 %v3178, 0.2
  %v3195 = vmul.f32 %v3179, 0.2
  %v3196 = vmax.f32 %v3164, %v3180
  %v3197 = vmax.f32 %v3165, %v3181
  %v3198 = vmax.f32 %v3166, %v3182
  %v3199 = vmax.f32 %v3167, %v3183
  %v3200 = vmax.f32 %v3168, %v3184
  %v3201 = vmax.f32 %v3169, %v3185
  %v3202 = vmax.f32 %v3170, %v3186
  %v3203 = vmax.f32 %v3171, %v3187
  %v3204 = vmax.f32 %v3172, %v3188
  %v3205 = vmax.f32 %v3173, %v3189
  %v3206 = vmax.f32 %v3174, %v3190
  %v3207 = vmax.f32 %v3175, %v3191
  %v3208 = vmax.f32 %v3176, %v3192
  %v3209 = vmax.f32 %v3177, %v3193
  %v3210 = vmax.f32 %v3178, %v3194
  %v3211 = vmax.f32 %v3179, %v3195
  %v3212 = vld [vmem:[%s8] sm:$0xff]
  %v3213 = vld [vmem:[%s8 + $0x8] sm:$0xff]
  %v3214 = vld [vmem:[%s8 + $0x10] sm:$0xff]
  %v3215 = vld [vmem:[%s8 + $0x18] sm:$0xff]
  %v3216 = vld [vmem:[%s8 + $0x20] sm:$0xff]
  %v3217 = vld [vmem:[%s8 + $0x28] sm:$0xff]
  %v3218 = vld [vmem:[%s8 + $0x30] sm:$0xff]
  %v3219 = vld [vmem:[%s8 + $0x38] sm:$0xff]
  %v3220 = vld [vmem:[%s8 + $0x40] sm:$0xff]
  %v3221 = vld [vmem:[%s9] sm:$0x1]
  %v3222 = vld [vmem:[%s10] sm:$0x1]
  %vm3223 = vcmask 259072
  %3224 = vst.msk [vmem:[#allocation2] sm:$0x3f] %vm3223, 0.0
  %3225 = vst.msk [vmem:[#allocation2 + $0xa0] sm:$0x3f] %vm3223, 0.0
  %s3226 = scalar_lea.vmem [#allocation2], 80
  %3227 = vst.msk [vmem:[%s3226] sm:$0x3f] %vm3223, 0.0
  %3228 = vst.msk [vmem:[%s3226 + $0xa0] sm:$0x3f] %vm3223, 0.0
  %vm3229 = vcmask 253952
  %3230 = vst.msk [vmem:[#allocation2] sm:$0x1] %vm3229, 0.0
  %3231 = vst.msk [vmem:[#allocation2 + $0x10] sm:$0x1] %vm3229, 0.0
  %3232 = vst.msk [vmem:[#allocation2 + $0x20] sm:$0x1] %vm3229, 0.0
  %3233 = vst.msk [vmem:[#allocation2 + $0x30] sm:$0x1] %vm3229, 0.0
  %3234 = vst.msk [vmem:[#allocation2 + $0x40] sm:$0x1] %vm3229, 0.0
  %3235 = vst.msk [vmem:[#allocation2 + $0x50] sm:$0x1] %vm3229, 0.0
  %3236 = vst.msk [vmem:[#allocation2 + $0xa0] sm:$0x1] %vm3229, 0.0
  %3237 = vst.msk [vmem:[#allocation2 + $0xb0] sm:$0x1] %vm3229, 0.0
  %3238 = vst.msk [vmem:[#allocation2 + $0xc0] sm:$0x1] %vm3229, 0.0
  %3239 = vst.msk [vmem:[#allocation2 + $0xd0] sm:$0x1] %vm3229, 0.0
  %3240 = vst.msk [vmem:[#allocation2 + $0xe0] sm:$0x1] %vm3229, 0.0
  %3241 = vst.msk [vmem:[#allocation2 + $0xf0] sm:$0x1] %vm3229, 0.0
  %3242 = vst.msk [vmem:[#allocation2 + $0x5] sm:$0x1] %vm3229, 0.0
  %3243 = vst.msk [vmem:[#allocation2 + $0x15] sm:$0x1] %vm3229, 0.0
  %3244 = vst.msk [vmem:[#allocation2 + $0x25] sm:$0x1] %vm3229, 0.0
  %3245 = vst.msk [vmem:[#allocation2 + $0x35] sm:$0x1] %vm3229, 0.0
  %3246 = vst.msk [vmem:[#allocation2 + $0x45] sm:$0x1] %vm3229, 0.0
  %3247 = vst.msk [vmem:[#allocation2 + $0x55] sm:$0x1] %vm3229, 0.0
  %3248 = vst.msk [vmem:[#allocation2 + $0xa5] sm:$0x1] %vm3229, 0.0
  %3249 = vst.msk [vmem:[#allocation2 + $0xb5] sm:$0x1] %vm3229, 0.0
  %3250 = vst.msk [vmem:[#allocation2 + $0xc5] sm:$0x1] %vm3229, 0.0
  %3251 = vst.msk [vmem:[#allocation2 + $0xd5] sm:$0x1] %vm3229, 0.0
  %3252 = vst.msk [vmem:[#allocation2 + $0xe5] sm:$0x1] %vm3229, 0.0
  %3253 = vst.msk [vmem:[#allocation2 + $0xf5] sm:$0x1] %vm3229, 0.0
  %3254 = vst.msk [vmem:[#allocation3] sm:$0xff] %vm851, %v3196
  %3255 = vst.msk [vmem:[#allocation3 + $0x8] sm:$0xff] %vm851, %v3197
  %3256 = vst.msk [vmem:[#allocation3 + $0x10] sm:$0xff] %vm851, %v3198
  %3257 = vst.msk [vmem:[#allocation3 + $0x18] sm:$0xff] %vm851, %v3199
  %3258 = vst.msk [vmem:[#allocation3 + $0x20] sm:$0xff] %vm851, %v3200
  %3259 = vst.msk [vmem:[#allocation3 + $0x28] sm:$0xff] %vm851, %v3201
  %3260 = vst.msk [vmem:[#allocation3 + $0x30] sm:$0xff] %vm851, %v3202
  %3261 = vst.msk [vmem:[#allocation3 + $0x38] sm:$0xff] %vm851, %v3203
  %3262 = vst.msk [vmem:[#allocation3 + $0x40] sm:$0xff] %vm851, %v3204
  %3263 = vst.msk [vmem:[#allocation3 + $0x48] sm:$0xff] %vm851, %v3205
  %3264 = vst.msk [vmem:[#allocation3 + $0x50] sm:$0xff] %vm851, %v3206
  %3265 = vst.msk [vmem:[#allocation3 + $0x58] sm:$0xff] %vm851, %v3207
  %3266 = vst.msk [vmem:[#allocation3 + $0x60] sm:$0xff] %vm851, %v3208
  %3267 = vst.msk [vmem:[#allocation3 + $0x68] sm:$0xff] %vm851, %v3209
  %3268 = vst.msk [vmem:[#allocation3 + $0x70] sm:$0xff] %vm851, %v3210
  %3269 = vst.msk [vmem:[#allocation3 + $0x78] sm:$0xff] %vm851, %v3211
  %v3270 = vld [vmem:[#allocation3] ss:$2 sm:$0xff]
  %s3271 = scalar_lea.vmem [#allocation3], 16
  %v3272 = vld [vmem:[%s3271] ss:$2 sm:$0xff]
  %s3273 = scalar_lea.vmem [#allocation3], 32
  %v3274 = vld [vmem:[%s3273] ss:$2 sm:$0xff]
  %s3275 = scalar_lea.vmem [#allocation3], 48
  %v3276 = vld [vmem:[%s3275] ss:$2 sm:$0xff]
  %s3277 = scalar_lea.vmem [#allocation3], 64
  %v3278 = vld [vmem:[%s3277] ss:$2 sm:$0xff]
  %s3279 = scalar_lea.vmem [#allocation3], 80
  %v3280 = vld [vmem:[%s3279] ss:$2 sm:$0xff]
  %s3281 = scalar_lea.vmem [#allocation3], 96
  %v3282 = vld [vmem:[%s3281] ss:$2 sm:$0xff]
  %s3283 = scalar_lea.vmem [#allocation3], 112
  %v3284 = vld [vmem:[%s3283] ss:$2 sm:$0xff]
  %s3285 = scalar_lea.vmem [#allocation3], 1
  %v3286 = vld [vmem:[%s3285] ss:$2 sm:$0xff]
  %s3287 = scalar_lea.vmem [#allocation3], 17
  %v3288 = vld [vmem:[%s3287] ss:$2 sm:$0xff]
  %s3289 = scalar_lea.vmem [#allocation3], 33
  %v3290 = vld [vmem:[%s3289] ss:$2 sm:$0xff]
  %s3291 = scalar_lea.vmem [#allocation3], 49
  %v3292 = vld [vmem:[%s3291] ss:$2 sm:$0xff]
  %s3293 = scalar_lea.vmem [#allocation3], 65
  %v3294 = vld [vmem:[%s3293] ss:$2 sm:$0xff]
  %s3295 = scalar_lea.vmem [#allocation3], 81
  %v3296 = vld [vmem:[%s3295] ss:$2 sm:$0xff]
  %s3297 = scalar_lea.vmem [#allocation3], 97
  %v3298 = vld [vmem:[%s3297] ss:$2 sm:$0xff]
  %s3299 = scalar_lea.vmem [#allocation3], 113
  %v3300 = vld [vmem:[%s3299] ss:$2 sm:$0xff]
  %3309 = vrot.lane.b32.xlu0 %v3286, 8
  %v3310 = vpop.permute.xlu0 %3309
  %3311 = vrot.lane.b32.xlu0 %v3288, 8
  %v3312 = vpop.permute.xlu0 %3311
  %3313 = vrot.lane.b32.xlu0 %v3290, 8
  %v3314 = vpop.permute.xlu0 %3313
  %3315 = vrot.lane.b32.xlu0 %v3292, 8
  %v3316 = vpop.permute.xlu0 %3315
  %3317 = vrot.lane.b32.xlu0 %v3294, 8
  %v3318 = vpop.permute.xlu0 %3317
  %3319 = vrot.lane.b32.xlu0 %v3296, 8
  %v3320 = vpop.permute.xlu0 %3319
  %3321 = vrot.lane.b32.xlu0 %v3298, 8
  %v3322 = vpop.permute.xlu0 %3321
  %3323 = vrot.lane.b32.xlu0 %v3300, 8
  %v3324 = vpop.permute.xlu0 %3323
  %v3333 = vsel %vm851, %v3270, %v3310
  %v3334 = vsel %vm851, %v3272, %v3312
  %v3335 = vsel %vm851, %v3274, %v3314
  %v3336 = vsel %vm851, %v3276, %v3316
  %v3337 = vsel %vm851, %v3278, %v3318
  %v3338 = vsel %vm851, %v3280, %v3320
  %v3339 = vsel %vm851, %v3282, %v3322
  %v3340 = vsel %vm851, %v3284, %v3324
  %v3349 = vrot.slane %v3333, 4
  %v3350 = vrot.slane %v3334, 4
  %v3351 = vrot.slane %v3335, 4
  %v3352 = vrot.slane %v3336, 4
  %v3353 = vrot.slane %v3337, 4
  %v3354 = vrot.slane %v3338, 4
  %v3355 = vrot.slane %v3339, 4
  %v3356 = vrot.slane %v3340, 4
  %vm3357 = vcmask 125952
  %3358 = vst.msk [vmem:[%s122 + $0x1] sm:$0xf] %vm3357, %v3333
  %3359 = vst.msk [vmem:[%s122 + $0x11] sm:$0xf] %vm3357, %v3334
  %3360 = vst.msk [vmem:[%s122 + $0x21] sm:$0xf] %vm3357, %v3335
  %3361 = vst.msk [vmem:[%s122 + $0x31] sm:$0xf] %vm3357, %v3336
  %3362 = vst.msk [vmem:[%s122 + $0xa1] sm:$0xf] %vm3357, %v3337
  %3363 = vst.msk [vmem:[%s122 + $0xb1] sm:$0xf] %vm3357, %v3338
  %3364 = vst.msk [vmem:[%s122 + $0xc1] sm:$0xf] %vm3357, %v3339
  %3365 = vst.msk [vmem:[%s122 + $0xd1] sm:$0xf] %vm3357, %v3340
  %3366 = vst [vmem:[#allocation1] ss:$2 sm:$0xff] %v3349
  %v3367 = vld.sshfl [vmem:[#allocation1] sm:$0xff pattern:$0x75316420]
  %s3368 = scalar_lea.vmem [#allocation1], 16
  %3369 = vst [vmem:[%s3368] ss:$2 sm:$0xff] %v3350
  %v3370 = vld.sshfl [vmem:[#allocation1 + $0x10] sm:$0xff pattern:$0x75316420]
  %s3371 = scalar_lea.vmem [#allocation1], 32
  %3372 = vst [vmem:[%s3371] ss:$2 sm:$0xff] %v3351
  %v3373 = vld.sshfl [vmem:[#allocation1 + $0x20] sm:$0xff pattern:$0x75316420]
  %s3374 = scalar_lea.vmem [#allocation1], 48
  %3375 = vst [vmem:[%s3374] ss:$2 sm:$0xff] %v3352
  %v3376 = vld.sshfl [vmem:[#allocation1 + $0x30] sm:$0xff pattern:$0x75316420]
  %3377 = vst [vmem:[#allocation1] ss:$2 sm:$0xff] %v3353
  %v3378 = vld.sshfl [vmem:[#allocation1] sm:$0xff pattern:$0x75316420]
  %3379 = vst [vmem:[%s3368] ss:$2 sm:$0xff] %v3354
  %v3380 = vld.sshfl [vmem:[#allocation1 + $0x10] sm:$0xff pattern:$0x75316420]
  %3381 = vst [vmem:[%s3371] ss:$2 sm:$0xff] %v3355
  %v3382 = vld.sshfl [vmem:[#allocation1 + $0x20] sm:$0xff pattern:$0x75316420]
  %3383 = vst [vmem:[%s3374] ss:$2 sm:$0xff] %v3356
  %v3384 = vld.sshfl [vmem:[#allocation1 + $0x30] sm:$0xff pattern:$0x75316420]
  %3385 = vrot.lane.b32.xlu0 %v3367, 16
  %v3386 = vpop.permute.xlu0 %3385
  %3387 = vrot.lane.b32.xlu0 %v3370, 16
  %v3388 = vpop.permute.xlu0 %3387
  %3389 = vrot.lane.b32.xlu0 %v3373, 16
  %v3390 = vpop.permute.xlu0 %3389
  %3391 = vrot.lane.b32.xlu0 %v3376, 16
  %v3392 = vpop.permute.xlu0 %3391
  %3393 = vrot.lane.b32.xlu0 %v3378, 16
  %v3394 = vpop.permute.xlu0 %3393
  %3395 = vrot.lane.b32.xlu0 %v3380, 16
  %v3396 = vpop.permute.xlu0 %3395
  %3397 = vrot.lane.b32.xlu0 %v3382, 16
  %v3398 = vpop.permute.xlu0 %3397
  %3399 = vrot.lane.b32.xlu0 %v3384, 16
  %v3400 = vpop.permute.xlu0 %3399
  %vm3409 = vcmask 257152
  %3410 = vst.msk [vmem:[%s122 + $0x1] sm:$0xf] %vm3409, %v3386
  %3411 = vst.msk [vmem:[%s122 + $0x11] sm:$0xf] %vm3409, %v3388
  %3412 = vst.msk [vmem:[%s122 + $0x21] sm:$0xf] %vm3409, %v3390
  %3413 = vst.msk [vmem:[%s122 + $0x31] sm:$0xf] %vm3409, %v3392
  %3414 = vst.msk [vmem:[%s122 + $0xa1] sm:$0xf] %vm3409, %v3394
  %3415 = vst.msk [vmem:[%s122 + $0xb1] sm:$0xf] %vm3409, %v3396
  %3416 = vst.msk [vmem:[%s122 + $0xc1] sm:$0xf] %vm3409, %v3398
  %3417 = vst.msk [vmem:[%s122 + $0xd1] sm:$0xf] %vm3409, %v3400
  %v3418 = vld [vmem:[#allocation2] sm:$0xf]
  %v3419 = vld [vmem:[#allocation2 + $0x10] sm:$0xf]
  %v3420 = vld [vmem:[#allocation2 + $0x20] sm:$0xf]
  %v3421 = vld [vmem:[#allocation2 + $0x30] sm:$0xf]
  %v3422 = vld [vmem:[#allocation2 + $0xa0] sm:$0xf]
  %v3423 = vld [vmem:[#allocation2 + $0xb0] sm:$0xf]
  %v3424 = vld [vmem:[#allocation2 + $0xc0] sm:$0xf]
  %v3425 = vld [vmem:[#allocation2 + $0xd0] sm:$0xf]
  %v3426 = vld [vmem:[#allocation2 + $0x1] sm:$0xf]
  %v3427 = vld [vmem:[#allocation2 + $0x11] sm:$0xf]
  %v3428 = vld [vmem:[#allocation2 + $0x21] sm:$0xf]
  %v3429 = vld [vmem:[#allocation2 + $0x31] sm:$0xf]
  %v3430 = vld [vmem:[#allocation2 + $0xa1] sm:$0xf]
  %v3431 = vld [vmem:[#allocation2 + $0xb1] sm:$0xf]
  %v3432 = vld [vmem:[#allocation2 + $0xc1] sm:$0xf]
  %v3433 = vld [vmem:[#allocation2 + $0xd1] sm:$0xf]
  %v3434 = vld [vmem:[%s122] sm:$0xf]
  %v3435 = vld [vmem:[%s122 + $0x10] sm:$0xf]
  %v3436 = vld [vmem:[%s122 + $0x20] sm:$0xf]
  %v3437 = vld [vmem:[%s122 + $0x30] sm:$0xf]
  %v3438 = vld [vmem:[%s122 + $0xa0] sm:$0xf]
  %v3439 = vld [vmem:[%s122 + $0xb0] sm:$0xf]
  %v3440 = vld [vmem:[%s122 + $0xc0] sm:$0xf]
  %v3441 = vld [vmem:[%s122 + $0xd0] sm:$0xf]
  %v3442 = vld [vmem:[%s122 + $0x1] sm:$0xf]
  %v3443 = vld [vmem:[%s122 + $0x11] sm:$0xf]
  %v3444 = vld [vmem:[%s122 + $0x21] sm:$0xf]
  %v3445 = vld [vmem:[%s122 + $0x31] sm:$0xf]
  %v3446 = vld [vmem:[%s122 + $0xa1] sm:$0xf]
  %v3447 = vld [vmem:[%s122 + $0xb1] sm:$0xf]
  %v3448 = vld [vmem:[%s122 + $0xc1] sm:$0xf]
  %v3449 = vld [vmem:[%s122 + $0xd1] sm:$0xf]
  %3458 = vrot.lane.b32.xlu0 %v3418, 104
  %v3459 = vpop.permute.xlu0 %3458
  %3460 = vrot.lane.b32.xlu0 %v3419, 104
  %v3461 = vpop.permute.xlu0 %3460
  %3462 = vrot.lane.b32.xlu0 %v3420, 104
  %v3463 = vpop.permute.xlu0 %3462
  %3464 = vrot.lane.b32.xlu0 %v3421, 104
  %v3465 = vpop.permute.xlu0 %3464
  %3466 = vrot.lane.b32.xlu0 %v3422, 104
  %v3467 = vpop.permute.xlu0 %3466
  %3468 = vrot.lane.b32.xlu0 %v3423, 104
  %v3469 = vpop.permute.xlu0 %3468
  %3470 = vrot.lane.b32.xlu0 %v3424, 104
  %v3471 = vpop.permute.xlu0 %3470
  %3472 = vrot.lane.b32.xlu0 %v3425, 104
  %v3473 = vpop.permute.xlu0 %3472
  %3490 = vrot.lane.b32.xlu0 %v3426, 120
  %v3491 = vpop.permute.xlu0 %3490
  %3492 = vrot.lane.b32.xlu0 %v3427, 120
  %v3493 = vpop.permute.xlu0 %3492
  %3494 = vrot.lane.b32.xlu0 %v3428, 120
  %v3495 = vpop.permute.xlu0 %3494
  %3496 = vrot.lane.b32.xlu0 %v3429, 120
  %v3497 = vpop.permute.xlu0 %3496
  %3498 = vrot.lane.b32.xlu0 %v3430, 120
  %v3499 = vpop.permute.xlu0 %3498
  %3500 = vrot.lane.b32.xlu0 %v3431, 120
  %v3501 = vpop.permute.xlu0 %3500
  %3502 = vrot.lane.b32.xlu0 %v3432, 120
  %v3503 = vpop.permute.xlu0 %3502
  %3504 = vrot.lane.b32.xlu0 %v3433, 120
  %v3505 = vpop.permute.xlu0 %3504
  %3522 = vrot.lane.b32.xlu0 %v3434, 16
  %v3523 = vpop.permute.xlu0 %3522
  %3524 = vrot.lane.b32.xlu0 %v3435, 16
  %v3525 = vpop.permute.xlu0 %3524
  %3526 = vrot.lane.b32.xlu0 %v3436, 16
  %v3527 = vpop.permute.xlu0 %3526
  %3528 = vrot.lane.b32.xlu0 %v3437, 16
  %v3529 = vpop.permute.xlu0 %3528
  %3530 = vrot.lane.b32.xlu0 %v3438, 16
  %v3531 = vpop.permute.xlu0 %3530
  %3532 = vrot.lane.b32.xlu0 %v3439, 16
  %v3533 = vpop.permute.xlu0 %3532
  %3534 = vrot.lane.b32.xlu0 %v3440, 16
  %v3535 = vpop.permute.xlu0 %3534
  %3536 = vrot.lane.b32.xlu0 %v3441, 16
  %v3537 = vpop.permute.xlu0 %3536
  %3554 = vrot.lane.b32.xlu0 %v3442, 32
  %v3555 = vpop.permute.xlu0 %3554
  %3556 = vrot.lane.b32.xlu0 %v3443, 32
  %v3557 = vpop.permute.xlu0 %3556
  %3558 = vrot.lane.b32.xlu0 %v3444, 32
  %v3559 = vpop.permute.xlu0 %3558
  %3560 = vrot.lane.b32.xlu0 %v3445, 32
  %v3561 = vpop.permute.xlu0 %3560
  %3562 = vrot.lane.b32.xlu0 %v3446, 32
  %v3563 = vpop.permute.xlu0 %3562
  %3564 = vrot.lane.b32.xlu0 %v3447, 32
  %v3565 = vpop.permute.xlu0 %3564
  %3566 = vrot.lane.b32.xlu0 %v3448, 32
  %v3567 = vpop.permute.xlu0 %3566
  %3568 = vrot.lane.b32.xlu0 %v3449, 32
  %v3569 = vpop.permute.xlu0 %3568
  %3578 = vrot.lane.b32.xlu0 %v3434, 24
  %v3579 = vpop.permute.xlu0 %3578
  %3580 = vrot.lane.b32.xlu0 %v3435, 24
  %v3581 = vpop.permute.xlu0 %3580
  %3582 = vrot.lane.b32.xlu0 %v3436, 24
  %v3583 = vpop.permute.xlu0 %3582
  %3584 = vrot.lane.b32.xlu0 %v3437, 24
  %v3585 = vpop.permute.xlu0 %3584
  %3586 = vrot.lane.b32.xlu0 %v3438, 24
  %v3587 = vpop.permute.xlu0 %3586
  %3588 = vrot.lane.b32.xlu0 %v3439, 24
  %v3589 = vpop.permute.xlu0 %3588
  %3590 = vrot.lane.b32.xlu0 %v3440, 24
  %v3591 = vpop.permute.xlu0 %3590
  %3592 = vrot.lane.b32.xlu0 %v3441, 24
  %v3593 = vpop.permute.xlu0 %3592
  %3602 = vrot.lane.b32.xlu0 %v3442, 40
  %v3603 = vpop.permute.xlu0 %3602
  %3604 = vrot.lane.b32.xlu0 %v3443, 40
  %v3605 = vpop.permute.xlu0 %3604
  %3606 = vrot.lane.b32.xlu0 %v3444, 40
  %v3607 = vpop.permute.xlu0 %3606
  %3608 = vrot.lane.b32.xlu0 %v3445, 40
  %v3609 = vpop.permute.xlu0 %3608
  %3610 = vrot.lane.b32.xlu0 %v3446, 40
  %v3611 = vpop.permute.xlu0 %3610
  %3612 = vrot.lane.b32.xlu0 %v3447, 40
  %v3613 = vpop.permute.xlu0 %3612
  %3614 = vrot.lane.b32.xlu0 %v3448, 40
  %v3615 = vpop.permute.xlu0 %3614
  %3616 = vrot.lane.b32.xlu0 %v3449, 40
  %v3617 = vpop.permute.xlu0 %3616
  %v3626 = vsel %vm851, %v3459, %v3491
  %v3627 = vsel %vm851, %v3461, %v3493
  %v3628 = vsel %vm851, %v3463, %v3495
  %v3629 = vsel %vm851, %v3465, %v3497
  %v3630 = vsel %vm851, %v3467, %v3499
  %v3631 = vsel %vm851, %v3469, %v3501
  %v3632 = vsel %vm851, %v3471, %v3503
  %v3633 = vsel %vm851, %v3473, %v3505
  %v3634 = vsel %vm1591, %v3626, %v3491
  %v3635 = vsel %vm1591, %v3627, %v3493
  %v3636 = vsel %vm1591, %v3628, %v3495
  %v3637 = vsel %vm1591, %v3629, %v3497
  %v3638 = vsel %vm1591, %v3630, %v3499
  %v3639 = vsel %vm1591, %v3631, %v3501
  %v3640 = vsel %vm1591, %v3632, %v3503
  %v3641 = vsel %vm1591, %v3633, %v3505
  %v3642 = vsel %vm673, %v3634, %v3523
  %v3643 = vsel %vm673, %v3635, %v3525
  %v3644 = vsel %vm673, %v3636, %v3527
  %v3645 = vsel %vm673, %v3637, %v3529
  %v3646 = vsel %vm673, %v3638, %v3531
  %v3647 = vsel %vm673, %v3639, %v3533
  %v3648 = vsel %vm673, %v3640, %v3535
  %v3649 = vsel %vm673, %v3641, %v3537
  %v3650 = vsel %vm1624, %v3642, %v3555
  %v3651 = vsel %vm1624, %v3643, %v3557
  %v3652 = vsel %vm1624, %v3644, %v3559
  %v3653 = vsel %vm1624, %v3645, %v3561
  %v3654 = vsel %vm1624, %v3646, %v3563
  %v3655 = vsel %vm1624, %v3647, %v3565
  %v3656 = vsel %vm1624, %v3648, %v3567
  %v3657 = vsel %vm1624, %v3649, %v3569
  %v3658 = vsel %vm1641, %v3650, %v3555
  %v3659 = vsel %vm1641, %v3651, %v3557
  %v3660 = vsel %vm1641, %v3652, %v3559
  %v3661 = vsel %vm1641, %v3653, %v3561
  %v3662 = vsel %vm1641, %v3654, %v3563
  %v3663 = vsel %vm1641, %v3655, %v3565
  %v3664 = vsel %vm1641, %v3656, %v3567
  %v3665 = vsel %vm1641, %v3657, %v3569
  %v3666 = vsel %vm1658, %v3658, %v3579
  %v3667 = vsel %vm1658, %v3659, %v3581
  %v3668 = vsel %vm1658, %v3660, %v3583
  %v3669 = vsel %vm1658, %v3661, %v3585
  %v3670 = vsel %vm1658, %v3662, %v3587
  %v3671 = vsel %vm1658, %v3663, %v3589
  %v3672 = vsel %vm1658, %v3664, %v3591
  %v3673 = vsel %vm1658, %v3665, %v3593
  %v3674 = vsel %vm1675, %v3666, %v3603
  %v3675 = vsel %vm1675, %v3667, %v3605
  %v3676 = vsel %vm1675, %v3668, %v3607
  %v3677 = vsel %vm1675, %v3669, %v3609
  %v3678 = vsel %vm1675, %v3670, %v3611
  %v3679 = vsel %vm1675, %v3671, %v3613
  %v3680 = vsel %vm1675, %v3672, %v3615
  %v3681 = vsel %vm1675, %v3673, %v3617
  %v3682 = vsel %vm1692, %v3674, %v3603
  %v3683 = vsel %vm1692, %v3675, %v3605
  %v3684 = vsel %vm1692, %v3676, %v3607
  %v3685 = vsel %vm1692, %v3677, %v3609
  %v3686 = vsel %vm1692, %v3678, %v3611
  %v3687 = vsel %vm1692, %v3679, %v3613
  %v3688 = vsel %vm1692, %v3680, %v3615
  %v3689 = vsel %vm1692, %v3681, %v3617
  %3698 = vst [vmem:[#allocation1] ss:$2 sm:$0xff] %v3682
  %s3699 = scalar_lea.vmem [#allocation1], 1
  %3700 = vst [vmem:[%s3699] ss:$2 sm:$0xff] %v3683
  %s3701 = scalar_lea.vmem [#allocation1], 16
  %3702 = vst [vmem:[%s3701] ss:$2 sm:$0xff] %v3684
  %s3703 = scalar_lea.vmem [#allocation1], 17
  %3704 = vst [vmem:[%s3703] ss:$2 sm:$0xff] %v3685
  %s3705 = scalar_lea.vmem [#allocation1], 32
  %3706 = vst [vmem:[%s3705] ss:$2 sm:$0xff] %v3686
  %s3707 = scalar_lea.vmem [#allocation1], 33
  %3708 = vst [vmem:[%s3707] ss:$2 sm:$0xff] %v3687
  %s3709 = scalar_lea.vmem [#allocation1], 48
  %3710 = vst [vmem:[%s3709] ss:$2 sm:$0xff] %v3688
  %s3711 = scalar_lea.vmem [#allocation1], 49
  %3712 = vst [vmem:[%s3711] ss:$2 sm:$0xff] %v3689
  %v3713 = vld.sshfl [vmem:[#allocation1] sm:$0xff pattern:$0x75316420]
  %v3714 = vld.sshfl [vmem:[#allocation1 + $0x10] sm:$0xff pattern:$0x75316420]
  %v3715 = vld.sshfl [vmem:[#allocation1 + $0x20] sm:$0xff pattern:$0x75316420]
  %v3716 = vld.sshfl [vmem:[#allocation1 + $0x30] sm:$0xff pattern:$0x75316420]
  %v3717 = vsel %vm1709, %v3713, 0
  %v3719 = vsel %vm1709, %v3714, 0
  %v3721 = vsel %vm1709, %v3715, 0
  %v3723 = vsel %vm1709, %v3716, 0
  %3725 = vmatpush.msra.mxu0 0.0
  %3726 = vmatpush.msra.mxu0 0.0
  %3727 = vmatpush.msra.mxu0 0.0
  %3728 = vmatpush.msra.mxu0 0.0
  %3729 = vmatpush.msra.mxu0 0.0
  %3730 = vmatpush.msra.mxu0 0.0
  %3731 = vmatpush.msra.mxu0 0.0
  %3732 = vmatpush.msra.mxu0 %v3220
  %3733 = vmatpush.msra.mxu0 %v3219
  %3734 = vmatpush.msra.mxu0 %v3218
  %3735 = vmatpush.msra.mxu0 %v3217
  %3736 = vmatpush.msra.mxu0 %v3216
  %3737 = vmatpush.msra.mxu0 %v3215
  %3738 = vmatpush.msra.mxu0 %v3214
  %3739 = vmatpush.msra.mxu0 %v3213
  %3740 = vmatpush.msra.mxu0 %v3212
  %3741 = vmatmul.f32.gmra.mxu0 %v3717
  %v3742 = vpop.f32.mrf.mxu0
  %v3743 = vadd.f32 0.0, %v3742
  %3744 = vmatmul.f32.gmra.mxu0 %v3719
  %v3745 = vpop.f32.mrf.mxu0
  %v3746 = vadd.f32 0.0, %v3745
  %3747 = vmatmul.f32.gmra.mxu0 %v3721
  %v3748 = vpop.f32.mrf.mxu0
  %v3749 = vadd.f32 0.0, %v3748
  %3750 = vmatmul.f32.gmra.mxu0 %v3723
  %v3751 = vpop.f32.mrf.mxu0
  %v3752 = vadd.f32 0.0, %v3751
  %3753 = vdwg.mxu0
  %v3754 = vsel %vm1591, %v3743, 0.0
  %v3755 = vsel %vm1591, %v3746, 0.0
  %v3756 = vadd.f32 %v3754, %v3755
  %v3757 = vsel %vm1591, %v3749, 0.0
  %v3758 = vadd.f32 %v3756, %v3757
  %v3759 = vsel %vm1591, %v3752, 0.0
  %v3760 = vadd.f32 %v3758, %v3759
  %v3761 = vrot.slane %v3760, 4
  %v3762 = vadd.f32 %v3760, %v3761
  %v3763 = vrot.slane %v3762, 2
  %v3764 = vadd.f32 %v3762, %v3763
  %v3765 = vrot.slane %v3764, 1
  %v3766 = vadd.f32 %v3764, %v3765
  %v3767 = vrcp.pop 32.0
  %v3768 = vmul.f32 32.0, %v3767
  %v3769 = vsub.f32 1.0, %v3768
  %v3770 = vmul.f32 %v3767, %v3769
  %v3771 = vadd.f32 %v3767, %v3770
  %vm3772 = vweird.f32 %v3767
  %v3773 = vsel %vm3772, %v3767, %v3771
  %v3774 = vmul.f32 %v3766, %v3773
  %v3775 = vsub.f32 %v3743, %v3774
  %v3776 = vsub.f32 %v3746, %v3774
  %v3777 = vsub.f32 %v3749, %v3774
  %v3778 = vsub.f32 %v3752, %v3774
  %v3779 = vmul.f32 %v3775, %v3775
  %v3780 = vmul.f32 %v3776, %v3776
  %v3781 = vmul.f32 %v3777, %v3777
  %v3782 = vmul.f32 %v3778, %v3778
  %v3783 = vsel %vm1591, %v3779, 0.0
  %v3784 = vsel %vm1591, %v3780, 0.0
  %v3785 = vadd.f32 %v3783, %v3784
  %v3786 = vsel %vm1591, %v3781, 0.0
  %v3787 = vadd.f32 %v3785, %v3786
  %v3788 = vsel %vm1591, %v3782, 0.0
  %v3789 = vadd.f32 %v3787, %v3788
  %v3790 = vrot.slane %v3789, 4
  %v3791 = vadd.f32 %v3789, %v3790
  %v3792 = vrot.slane %v3791, 2
  %v3793 = vadd.f32 %v3791, %v3792
  %v3794 = vrot.slane %v3793, 1
  %v3795 = vadd.f32 %v3793, %v3794
  %v3796 = vmul.f32 %v3795, %v3773
  %v3797 = vadd.f32 %v3796, 1e-05
  %v3798 = vrsqrt.pop %v3797
  %v3799 = vmul.f32 %v3798, %v3797
  %v3800 = vmul.f32 %v3799, %v3798
  %v3801 = vmul.f32 0.5, %v3800
  %v3802 = vsub.f32 1.5, %v3801
  %v3803 = vmul.f32 %v3798, %v3802
  %vm3804 = vweird.f32 %v3797
  %vm3805 = vweird.f32 %v3798
  %vm3806 = vmor %vm3804, %vm3805
  %v3807 = vsel %vm3806, %v3798, %v3803
  %v3808 = vmul.f32 %v3775, %v3807
  %v3809 = vmul.f32 %v3776, %v3807
  %v3810 = vmul.f32 %v3777, %v3807
  %v3811 = vmul.f32 %v3778, %v3807
  %v3813 = vperm.slane %v3221, 0
  %v3815 = vmul.f32 %v3808, %v3813
  %v3816 = vmul.f32 %v3809, %v3813
  %v3817 = vmul.f32 %v3810, %v3813
  %v3818 = vmul.f32 %v3811, %v3813
  %v3820 = vperm.slane %v3222, 0
  %v3822 = vadd.f32 %v3815, %v3820
  %v3823 = vadd.f32 %v3816, %v3820
  %v3824 = vadd.f32 %v3817, %v3820
  %v3825 = vadd.f32 %v3818, %v3820
  %v3826 = vmul.f32 %v3822, 0.2
  %v3827 = vmul.f32 %v3823, 0.2
  %v3828 = vmul.f32 %v3824, 0.2
  %v3829 = vmul.f32 %v3825, 0.2
  %v3830 = vmax.f32 %v3822, %v3826
  %v3831 = vmax.f32 %v3823, %v3827
  %v3832 = vmax.f32 %v3824, %v3828
  %v3833 = vmax.f32 %v3825, %v3829
  %v3834 = vld [vmem:[%s11] sm:$0xff]
  %v3835 = vld [vmem:[%s11 + $0x8] sm:$0xff]
  %v3836 = vld [vmem:[%s11 + $0x10] sm:$0xff]
  %v3837 = vld [vmem:[%s11 + $0x18] sm:$0xff]
  %v3838 = vld [vmem:[%s11 + $0x20] sm:$0xff]
  %v3839 = vld [vmem:[%s11 + $0x28] sm:$0xff]
  %v3840 = vld [vmem:[%s11 + $0x30] sm:$0xff]
  %v3841 = vld [vmem:[%s11 + $0x38] sm:$0xff]
  %v3842 = vld [vmem:[%s11 + $0x40] sm:$0xff]
  %v3843 = vld [vmem:[%s11 + $0x48] sm:$0xff]
  %v3844 = vld [vmem:[%s11 + $0x50] sm:$0xff]
  %v3845 = vld [vmem:[%s11 + $0x58] sm:$0xff]
  %v3846 = vld [vmem:[%s11 + $0x60] sm:$0xff]
  %v3847 = vld [vmem:[%s11 + $0x68] sm:$0xff]
  %v3848 = vld [vmem:[%s11 + $0x70] sm:$0xff]
  %v3849 = vld [vmem:[%s11 + $0x78] sm:$0xff]
  %v3850 = vld [vmem:[%s11 + $0x80] sm:$0xff]
  %v3851 = vld [vmem:[%s11 + $0x88] sm:$0xff]
  %v3852 = vld [vmem:[%s12] sm:$0x1]
  %v3853 = vld [vmem:[%s13] sm:$0x1]
  %vm3854 = vcmask 519168
  %3855 = vst.msk [vmem:[#allocation2] sm:$0xf] %vm3854, 0.0
  %3856 = vst.msk [vmem:[#allocation2 + $0xa0] sm:$0xf] %vm3854, 0.0
  %s3857 = scalar_lea.vmem [#allocation2], 48
  %3858 = vst.msk [vmem:[%s3857] sm:$0xf] %vm3854, 0.0
  %3859 = vst.msk [vmem:[%s3857 + $0xa0] sm:$0xf] %vm3854, 0.0
  %vm3860 = vcmask 516096
  %3861 = vst.msk [vmem:[#allocation2] sm:$0x1] %vm3860, 0.0
  %3862 = vst.msk [vmem:[#allocation2 + $0x10] sm:$0x1] %vm3860, 0.0
  %3863 = vst.msk [vmem:[#allocation2 + $0x20] sm:$0x1] %vm3860, 0.0
  %3864 = vst.msk [vmem:[#allocation2 + $0x30] sm:$0x1] %vm3860, 0.0
  %3865 = vst.msk [vmem:[#allocation2 + $0xa0] sm:$0x1] %vm3860, 0.0
  %3866 = vst.msk [vmem:[#allocation2 + $0xb0] sm:$0x1] %vm3860, 0.0
  %3867 = vst.msk [vmem:[#allocation2 + $0xc0] sm:$0x1] %vm3860, 0.0
  %3868 = vst.msk [vmem:[#allocation2 + $0xd0] sm:$0x1] %vm3860, 0.0
  %3869 = vst.msk [vmem:[#allocation2 + $0x3] sm:$0x1] %vm3860, 0.0
  %3870 = vst.msk [vmem:[#allocation2 + $0x13] sm:$0x1] %vm3860, 0.0
  %3871 = vst.msk [vmem:[#allocation2 + $0x23] sm:$0x1] %vm3860, 0.0
  %3872 = vst.msk [vmem:[#allocation2 + $0x33] sm:$0x1] %vm3860, 0.0
  %3873 = vst.msk [vmem:[#allocation2 + $0xa3] sm:$0x1] %vm3860, 0.0
  %3874 = vst.msk [vmem:[#allocation2 + $0xb3] sm:$0x1] %vm3860, 0.0
  %3875 = vst.msk [vmem:[#allocation2 + $0xc3] sm:$0x1] %vm3860, 0.0
  %3876 = vst.msk [vmem:[#allocation2 + $0xd3] sm:$0x1] %vm3860, 0.0
  %3877 = vst.msk [vmem:[#allocation3] sm:$0xff] %vm1591, %v3830
  %3878 = vst.msk [vmem:[#allocation3 + $0x8] sm:$0xff] %vm1591, %v3831
  %3879 = vst.msk [vmem:[#allocation3 + $0x10] sm:$0xff] %vm1591, %v3832
  %3880 = vst.msk [vmem:[#allocation3 + $0x18] sm:$0xff] %vm1591, %v3833
  %v3881 = vld [vmem:[#allocation3] ss:$2 sm:$0xff]
  %v3882 = vld [vmem:[%s3271] ss:$2 sm:$0xff]
  %v3883 = vld [vmem:[%s3285] ss:$2 sm:$0xff]
  %v3884 = vld [vmem:[%s3287] ss:$2 sm:$0xff]
  %3887 = vrot.lane.b32.xlu0 %v3883, 16
  %v3888 = vpop.permute.xlu0 %3887
  %3889 = vrot.lane.b32.xlu0 %v3884, 16
  %v3890 = vpop.permute.xlu0 %3889
  %v3893 = vsel %vm1591, %v3881, %v3888
  %v3894 = vsel %vm1591, %v3882, %v3890
  %v3897 = vrot.slane %v3893, 2
  %v3898 = vrot.slane %v3893, 4
  %v3899 = vrot.slane %v3893, 6
  %v3900 = vrot.slane %v3894, 2
  %v3901 = vrot.slane %v3894, 4
  %v3902 = vrot.slane %v3894, 6
  %vm3905 = vcmask 254976
  %3906 = vst.msk [vmem:[%s122 + $0x1] sm:$0x3] %vm3905, %v3893
  %3907 = vst.msk [vmem:[%s122 + $0x11] sm:$0x3] %vm3905, %v3898
  %3908 = vst.msk [vmem:[%s122 + $0xa1] sm:$0x3] %vm3905, %v3894
  %3909 = vst.msk [vmem:[%s122 + $0xb1] sm:$0x3] %vm3905, %v3901
  %3910 = vst [vmem:[#allocation1] ss:$4 sm:$0xff] %v3897
  %v3911 = vld.sshfl [vmem:[#allocation1] sm:$0xff pattern:$0x73625140]
  %s3912 = scalar_lea.vmem [#allocation1], 32
  %3913 = vst [vmem:[%s3912] ss:$4 sm:$0xff] %v3899
  %v3914 = vld.sshfl [vmem:[#allocation1 + $0x20] sm:$0xff pattern:$0x73625140]
  %3915 = vst [vmem:[#allocation1] ss:$4 sm:$0xff] %v3900
  %v3916 = vld.sshfl [vmem:[#allocation1] sm:$0xff pattern:$0x73625140]
  %3917 = vst [vmem:[%s3912] ss:$4 sm:$0xff] %v3902
  %v3918 = vld.sshfl [vmem:[#allocation1 + $0x20] sm:$0xff pattern:$0x73625140]
  %3919 = vrot.lane.b32.xlu0 %v3911, 32
  %v3920 = vpop.permute.xlu0 %3919
  %3921 = vrot.lane.b32.xlu0 %v3914, 32
  %v3922 = vpop.permute.xlu0 %3921
  %3923 = vrot.lane.b32.xlu0 %v3916, 32
  %v3924 = vpop.permute.xlu0 %3923
  %3925 = vrot.lane.b32.xlu0 %v3918, 32
  %v3926 = vpop.permute.xlu0 %3925
  %vm3931 = vcmask 517376
  %3932 = vst.msk [vmem:[%s122 + $0x1] sm:$0x3] %vm3931, %v3920
  %3933 = vst.msk [vmem:[%s122 + $0x11] sm:$0x3] %vm3931, %v3922
  %3934 = vst.msk [vmem:[%s122 + $0xa1] sm:$0x3] %vm3931, %v3924
  %3935 = vst.msk [vmem:[%s122 + $0xb1] sm:$0x3] %vm3931, %v3926
  %v3936 = vld [vmem:[#allocation2] sm:$0x3]
  %v3937 = vld [vmem:[#allocation2 + $0x10] sm:$0x3]
  %v3938 = vld [vmem:[#allocation2 + $0xa0] sm:$0x3]
  %v3939 = vld [vmem:[#allocation2 + $0xb0] sm:$0x3]
  %v3940 = vld [vmem:[#allocation2 + $0x1] sm:$0x3]
  %v3941 = vld [vmem:[#allocation2 + $0x11] sm:$0x3]
  %v3942 = vld [vmem:[#allocation2 + $0xa1] sm:$0x3]
  %v3943 = vld [vmem:[#allocation2 + $0xb1] sm:$0x3]
  %v3944 = vld [vmem:[%s122] sm:$0x3]
  %v3945 = vld [vmem:[%s122 + $0x10] sm:$0x3]
  %v3946 = vld [vmem:[%s122 + $0xa0] sm:$0x3]
  %v3947 = vld [vmem:[%s122 + $0xb0] sm:$0x3]
  %v3948 = vld [vmem:[%s122 + $0x1] sm:$0x3]
  %v3949 = vld [vmem:[%s122 + $0x11] sm:$0x3]
  %v3950 = vld [vmem:[%s122 + $0xa1] sm:$0x3]
  %v3951 = vld [vmem:[%s122 + $0xb1] sm:$0x3]
  %3956 = vrot.lane.b32.xlu0 %v3936, 80
  %v3957 = vpop.permute.xlu0 %3956
  %3958 = vrot.lane.b32.xlu0 %v3937, 80
  %v3959 = vpop.permute.xlu0 %3958
  %3960 = vrot.lane.b32.xlu0 %v3938, 80
  %v3961 = vpop.permute.xlu0 %3960
  %3962 = vrot.lane.b32.xlu0 %v3939, 80
  %v3963 = vpop.permute.xlu0 %3962
  %3972 = vrot.lane.b32.xlu0 %v3940, 112
  %v3973 = vpop.permute.xlu0 %3972
  %3974 = vrot.lane.b32.xlu0 %v3941, 112
  %v3975 = vpop.permute.xlu0 %3974
  %3976 = vrot.lane.b32.xlu0 %v3942, 112
  %v3977 = vpop.permute.xlu0 %3976
  %3978 = vrot.lane.b32.xlu0 %v3943, 112
  %v3979 = vpop.permute.xlu0 %3978
  %3988 = vrot.lane.b32.xlu0 %v3944, 32
  %v3989 = vpop.permute.xlu0 %3988
  %3990 = vrot.lane.b32.xlu0 %v3945, 32
  %v3991 = vpop.permute.xlu0 %3990
  %3992 = vrot.lane.b32.xlu0 %v3946, 32
  %v3993 = vpop.permute.xlu0 %3992
  %3994 = vrot.lane.b32.xlu0 %v3947, 32
  %v3995 = vpop.permute.xlu0 %3994
  %4004 = vrot.lane.b32.xlu0 %v3948, 64
  %v4005 = vpop.permute.xlu0 %4004
  %4006 = vrot.lane.b32.xlu0 %v3949, 64
  %v4007 = vpop.permute.xlu0 %4006
  %4008 = vrot.lane.b32.xlu0 %v3950, 64
  %v4009 = vpop.permute.xlu0 %4008
  %4010 = vrot.lane.b32.xlu0 %v3951, 64
  %v4011 = vpop.permute.xlu0 %4010
  %4016 = vrot.lane.b32.xlu0 %v3944, 48
  %v4017 = vpop.permute.xlu0 %4016
  %4018 = vrot.lane.b32.xlu0 %v3945, 48
  %v4019 = vpop.permute.xlu0 %4018
  %4020 = vrot.lane.b32.xlu0 %v3946, 48
  %v4021 = vpop.permute.xlu0 %4020
  %4022 = vrot.lane.b32.xlu0 %v3947, 48
  %v4023 = vpop.permute.xlu0 %4022
  %4028 = vrot.lane.b32.xlu0 %v3948, 80
  %v4029 = vpop.permute.xlu0 %4028
  %4030 = vrot.lane.b32.xlu0 %v3949, 80
  %v4031 = vpop.permute.xlu0 %4030
  %4032 = vrot.lane.b32.xlu0 %v3950, 80
  %v4033 = vpop.permute.xlu0 %4032
  %4034 = vrot.lane.b32.xlu0 %v3951, 80
  %v4035 = vpop.permute.xlu0 %4034
  %v4040 = vsel %vm1591, %v3957, %v3973
  %v4041 = vsel %vm1591, %v3959, %v3975
  %v4042 = vsel %vm1591, %v3961, %v3977
  %v4043 = vsel %vm1591, %v3963, %v3979
  %v4044 = vsel %vm1624, %v4040, %v3973
  %v4045 = vsel %vm1624, %v4041, %v3975
  %v4046 = vsel %vm1624, %v4042, %v3977
  %v4047 = vsel %vm1624, %v4043, %v3979
  %v4048 = vsel %vm1658, %v4044, %v3989
  %v4049 = vsel %vm1658, %v4045, %v3991
  %v4050 = vsel %vm1658, %v4046, %v3993
  %v4051 = vsel %vm1658, %v4047, %v3995
  %v4052 = vsel %vm1692, %v4048, %v4005
  %v4053 = vsel %vm1692, %v4049, %v4007
  %v4054 = vsel %vm1692, %v4050, %v4009
  %v4055 = vsel %vm1692, %v4051, %v4011
  %vm4056 = vcmask 654336
  %v4057 = vsel %vm4056, %v4052, %v4005
  %v4058 = vsel %vm4056, %v4053, %v4007
  %v4059 = vsel %vm4056, %v4054, %v4009
  %v4060 = vsel %vm4056, %v4055, %v4011
  %vm4061 = vcmask 785408
  %v4062 = vsel %vm4061, %v4057, %v4017
  %v4063 = vsel %vm4061, %v4058, %v4019
  %v4064 = vsel %vm4061, %v4059, %v4021
  %v4065 = vsel %vm4061, %v4060, %v4023
  %vm4066 = vcmask 916480
  %v4067 = vsel %vm4066, %v4062, %v4029
  %v4068 = vsel %vm4066, %v4063, %v4031
  %v4069 = vsel %vm4066, %v4064, %v4033
  %v4070 = vsel %vm4066, %v4065, %v4035
  %v4075 = vrot.slane %v4029, 6
  %v4076 = vrot.slane %v4031, 6
  %v4077 = vrot.slane %v4033, 6
  %v4078 = vrot.slane %v4035, 6
  %vm4079 = vcmask 1041408
  %v4080 = vsel %vm4079, %v4067, %v4075
  %v4081 = vsel %vm4079, %v4068, %v4076
  %v4082 = vsel %vm4079, %v4069, %v4077
  %v4083 = vsel %vm4079, %v4070, %v4078
  %4084 = vst [vmem:[#allocation1] ss:$4 sm:$0xff] %v4080
  %s4085 = scalar_lea.vmem [#allocation1], 1
  %4086 = vst [vmem:[%s4085] ss:$4 sm:$0xff] %v4081
  %s4087 = scalar_lea.vmem [#allocation1], 2
  %4088 = vst [vmem:[%s4087] ss:$4 sm:$0xff] %v4082
  %s4089 = scalar_lea.vmem [#allocation1], 3
  %4090 = vst [vmem:[%s4089] ss:$4 sm:$0xff] %v4083
  %v4091 = vld.sshfl [vmem:[#allocation1] sm:$0xff pattern:$0x73625140]
  %v4092 = vld.sshfl [vmem:[#allocation1 + $0x8] sm:$0xff pattern:$0x73625140]
  %v4094 = vsel %vm1591, %v4092, 0
  %4096 = vmatpush.msra.mxu0 %v3849
  %4097 = vmatpush.msra.mxu0 %v3848
  %4098 = vmatpush.msra.mxu0 %v3847
  %4099 = vmatpush.msra.mxu0 %v3846
  %4100 = vmatpush.msra.mxu0 %v3845
  %4101 = vmatpush.msra.mxu0 %v3844
  %4102 = vmatpush.msra.mxu0 %v3843
  %4103 = vmatpush.msra.mxu0 %v3842
  %4104 = vmatpush.msra.mxu0 %v3841
  %4105 = vmatpush.msra.mxu0 %v3840
  %4106 = vmatpush.msra.mxu0 %v3839
  %4107 = vmatpush.msra.mxu0 %v3838
  %4108 = vmatpush.msra.mxu0 %v3837
  %4109 = vmatpush.msra.mxu0 %v3836
  %4110 = vmatpush.msra.mxu0 %v3835
  %4111 = vmatpush.msra.mxu0 %v3834
  %4112 = vmatmul.f32.gmra.mxu0 %v4091
  %v4113 = vpop.f32.mrf.mxu0
  %v4114 = vadd.f32 0.0, %v4113
  %4115 = vdwg.mxu0
  %4116 = vmatpush.msra.mxu0 0.0
  %4117 = vmatpush.msra.mxu0 0.0
  %4118 = vmatpush.msra.mxu0 0.0
  %4119 = vmatpush.msra.mxu0 0.0
  %4120 = vmatpush.msra.mxu0 0.0
  %4121 = vmatpush.msra.mxu0 0.0
  %4122 = vmatpush.msra.mxu0 0.0
  %4123 = vmatpush.msra.mxu0 0.0
  %4124 = vmatpush.msra.mxu0 0.0
  %4125 = vmatpush.msra.mxu0 0.0
  %4126 = vmatpush.msra.mxu0 0.0
  %4127 = vmatpush.msra.mxu0 0.0
  %4128 = vmatpush.msra.mxu0 0.0
  %4129 = vmatpush.msra.mxu0 0.0
  %4130 = vmatpush.msra.mxu0 %v3851
  %4131 = vmatpush.msra.mxu0 %v3850
  %4132 = vmatmul.f32.gmra.mxu0 %v4094
  %v4133 = vpop.f32.mrf.mxu0
  %v4134 = vadd.f32 %v4114, %v4133
  %4135 = vdwg.mxu0
  %v4136 = vsel %vm1624, %v4134, 0.0
  %v4137 = vrot.slane %v4136, 4
  %v4138 = vadd.f32 %v4136, %v4137
  %v4139 = vrot.slane %v4138, 2
  %v4140 = vadd.f32 %v4138, %v4139
  %v4141 = vrot.slane %v4140, 1
  %v4142 = vadd.f32 %v4140, %v4141
  %v4143 = vrcp.pop 8.0
  %v4144 = vmul.f32 8.0, %v4143
  %v4145 = vsub.f32 1.0, %v4144
  %v4146 = vmul.f32 %v4143, %v4145
  %v4147 = vadd.f32 %v4143, %v4146
  %vm4148 = vweird.f32 %v4143
  %v4149 = vsel %vm4148, %v4143, %v4147
  %v4150 = vmul.f32 %v4142, %v4149
  %v4151 = vsub.f32 %v4134, %v4150
  %v4152 = vmul.f32 %v4151, %v4151
  %v4153 = vsel %vm1624, %v4152, 0.0
  %v4154 = vrot.slane %v4153, 4
  %v4155 = vadd.f32 %v4153, %v4154
  %v4156 = vrot.slane %v4155, 2
  %v4157 = vadd.f32 %v4155, %v4156
  %v4158 = vrot.slane %v4157, 1
  %v4159 = vadd.f32 %v4157, %v4158
  %v4160 = vmul.f32 %v4159, %v4149
  %v4161 = vadd.f32 %v4160, 1e-05
  %v4162 = vrsqrt.pop %v4161
  %v4163 = vmul.f32 %v4162, %v4161
  %v4164 = vmul.f32 %v4163, %v4162
  %v4165 = vmul.f32 0.5, %v4164
  %v4166 = vsub.f32 1.5, %v4165
  %v4167 = vmul.f32 %v4162, %v4166
  %vm4168 = vweird.f32 %v4161
  %vm4169 = vweird.f32 %v4162
  %vm4170 = vmor %vm4168, %vm4169
  %v4171 = vsel %vm4170, %v4162, %v4167
  %v4172 = vmul.f32 %v4151, %v4171
  %v4174 = vperm.slane %v3852, 0
  %v4176 = vmul.f32 %v4172, %v4174
  %v4178 = vperm.slane %v3853, 0
  %v4180 = vadd.f32 %v4176, %v4178
  %v4181 = vmul.f32 %v4180, 0.2
  %v4182 = vmax.f32 %v4180, %v4181
  %v4183 = vld [vmem:[%s14] sm:$0xf]
  %v4185 = vrot.slane %v4182, 4
  %v4187 = vmul.f32 %v4182, %v4183
  %v4188 = vmul.f32 %v4185, %v4183
  %vm4189 = vcmask 257024
  %v4190 = vsel %vm4189, %v4187, 0.0
  %4191 = vadd.xlane.f32.xlu0 %v4190
  %v4192 = vpop.xlane.xlu0 %4191
  %v4193 = vsel %vm4189, %v4188, 0.0
  %4194 = vadd.xlane.f32.xlu0 %v4193
  %v4195 = vpop.xlane.xlu0 %4194
  %vm4196 = vcmask 1043456
  %v4197 = vsel %vm4196, %v4192, 0.0
  %v4198 = vrot.slane %v4197, 4
  %v4199 = vadd.f32 %v4197, %v4198
  %v4200 = vrot.slane %v4199, 2
  %v4201 = vadd.f32 %v4199, %v4200
  %v4202 = vrot.slane %v4201, 1
  %v4203 = vadd.f32 %v4201, %v4202
  %v4204 = vsel %vm4196, %v4195, 0.0
  %v4205 = vrot.slane %v4204, 4
  %v4206 = vadd.f32 %v4204, %v4205
  %v4207 = vrot.slane %v4206, 2
  %v4208 = vadd.f32 %v4206, %v4207
  %v4209 = vrot.slane %v4208, 1
  %v4210 = vadd.f32 %v4208, %v4209
  %vm4213 = vcmask 1041409
  %v4214 = vsel %vm4213, %v4210, %v4203
  %vm4216 = vcmask 1024
  %4217 = vst.msk [vmem:[%s15] sm:$0x3] %vm4216, %v4214
  // Predicated region
  $region62: #{tpu_custom_call.1} parent=0 // pred_check
    _
  $region63: #{tpu_custom_call.1} parent=0 // pred_check_branch
    %4219 = sbr.rel (0) target = $region65
  $region64: #{tpu_custom_call.1} parent=0 // pred_region
    _
  $region65: #{tpu_custom_call.1} parent=0 // pred_fallthru
    _
  // Predicated region
  $region66: #{tpu_custom_call.1} parent=0 // pred_check
    _
  $region67: #{tpu_custom_call.1} parent=0 // pred_check_branch
    %4221 = sbr.rel (0) target = $region69
  $region68: #{tpu_custom_call.1} parent=0 // pred_region
    _
  $region69: #{tpu_custom_call.1} parent=0 // pred_fallthru
    _

</llo_original>
